<compile_context>
chip_gen: v7x
topology: tpu7x:2x2x1
jax: 0.10.0
libtpu: 0.0.40
codegen_flags: <defaults>
</compile_context>

<pallas_src>
import math

import jax
import jax.numpy as jnp
from jax.experimental import pallas as pl
from jax.experimental.pallas import tpu as pltpu

NEG_SLOPE = 0.01                                   # PyTorch LeakyReLU default
BN_EPS = 1e-5                                      # BatchNorm1d default eps
BN_SCALE = 1.0 / math.sqrt(1.0 + BN_EPS)           # eval-mode BN with fresh stats


def _leaky(y):
    return jnp.where(y > 0, y, NEG_SLOPE * y)


def _dense(x, w_ref, b_ref, *, act):
    """Linear on the MXU (bf16 inputs, f32 accumulate) + optional LeakyReLU.

    BatchNorm (eval mode) is already folded into w/b where applicable.
    """
    y = jnp.dot(x.astype(jnp.bfloat16), w_ref[...],
                preferred_element_type=jnp.float32) + b_ref[...]
    return _leaky(y) if act else y


def triamese_kernel(wt_ref, mut_ref,
                    sw1, sb1, sw2, sb2,                 # siamese shared tower (BN folded)
                    shw1a, shw1b, shb1, shw2, shb2,     # siamese head (shw1 split)
                    mw1, mb1, mw2, mb2, mw3, mb3,       # mlp branch
                    hw1a, hw1b, hb1, hw2, hb2,          # fusion head (hw1 split, hw2 = column)
                    out_ref):
    wt = wt_ref[...]                                    # (TM, 768) f32
    mut = mut_ref[...]
    tm = wt.shape[0]

    # ---- Siamese shared tower: stack wt/mut along the batch axis so the shared
    # weights are loaded into the MXU once and effective M doubles. ----
    x = jnp.concatenate([wt, mut], axis=0)              # (2*TM, 768)
    x = _dense(x, sw1, sb1, act=True)
    x = _dense(x, sw2, sb2, act=True)                   # (2*TM, 256)
    wt_h = x[:tm]
    mu_h = x[tm:]

    # ---- Siamese head: concat([wt_h, mu_h]) @ shw1 as two half-K matmuls ----
    s = (jnp.dot(wt_h.astype(jnp.bfloat16), shw1a[...],
                 preferred_element_type=jnp.float32)
         + jnp.dot(mu_h.astype(jnp.bfloat16), shw1b[...],
                   preferred_element_type=jnp.float32)
         + shb1[...])
    s = _leaky(s)
    sim = _dense(s, shw2, shb2, act=False)              # plain Linear -> (TM, 256)

    # ---- MLP branch on diff(wt, mut) = mut - wt ----
    d = mut - wt
    r = _dense(d, mw1, mb1, act=True)
    r = _dense(r, mw2, mb2, act=True)
    reg = _dense(r, mw3, mb3, act=False)                # plain Linear -> (TM, 256)

    # ---- Fusion head: concat([sim, reg]) @ hw1 as two half-K matmuls ----
    h = (jnp.dot(sim.astype(jnp.bfloat16), hw1a[...],
                 preferred_element_type=jnp.float32)
         + jnp.dot(reg.astype(jnp.bfloat16), hw1b[...],
                   preferred_element_type=jnp.float32)
         + hb1[...])
    h = _leaky(h)

    # ---- Final Linear(256 -> 1): VPU multiply + lane reduction (no padded
    # matmul, no dead output lanes). ----
    out_ref[...] = jnp.sum(h * hw2[...], axis=-1, keepdims=True) + hb2[...]


def _linear_params(key, fan_in, fan_out):
    """Deterministic PyTorch-style nn.Linear init: U(-1/sqrt(fan_in), 1/sqrt(fan_in))."""
    kw, kb = jax.random.split(key)
    bound = 1.0 / math.sqrt(float(fan_in))
    w = jax.random.uniform(kw, (fan_in, fan_out), jnp.float32, -bound, bound)
    b = jax.random.uniform(kb, (1, fan_out), jnp.float32, -bound, bound)
    return w, b


def build_params(key, in_shape=768, hidden=256, sim_out=256, reg_out=256,
                 head_hidden=256, head_out=1):
    ks = jax.random.split(key, 9)

    def fold(w, b):
        # Fold eval-mode BN scale into the preceding Linear; weights -> bf16.
        return (BN_SCALE * w).astype(jnp.bfloat16), BN_SCALE * b

    # Siamese shared tower (block = Linear + LeakyReLU + BN + Dropout)
    sw1, sb1 = fold(*_linear_params(ks[0], in_shape, hidden))
    sw2, sb2 = fold(*_linear_params(ks[1], hidden, hidden))
    # Siamese head: block(2*hidden -> hidden) + Linear(hidden -> sim_out)
    shw1, shb1 = fold(*_linear_params(ks[2], 2 * hidden, hidden))
    shw1a, shw1b = shw1[:hidden], shw1[hidden:]
    shw2, shb2 = _linear_params(ks[3], hidden, sim_out)
    shw2 = shw2.astype(jnp.bfloat16)
    # MLP branch: block(in -> hidden), block(hidden -> hidden), Linear(hidden -> reg_out)
    mw1, mb1 = fold(*_linear_params(ks[4], in_shape, hidden))
    mw2, mb2 = fold(*_linear_params(ks[5], hidden, hidden))
    mw3, mb3 = _linear_params(ks[6], hidden, reg_out)
    mw3 = mw3.astype(jnp.bfloat16)
    # Fusion head: block(sim_out + reg_out -> head_hidden) + Linear(head_hidden -> head_out)
    hw1, hb1 = fold(*_linear_params(ks[7], sim_out + reg_out, head_hidden))
    hw1a, hw1b = hw1[:sim_out], hw1[sim_out:]
    hw2, hb2 = _linear_params(ks[8], head_hidden, head_out)
    hw2_row = hw2.T.reshape(1, head_hidden)             # (1, 256) f32 column, as a row
    hb2 = hb2.reshape(1, head_out)                      # (1, 1) f32

    params = (sw1, sb1, sw2, sb2,
              shw1a, shw1b, shb1, shw2, shb2,
              mw1, mb1, mw2, mb2, mw3, mb3,
              hw1a, hw1b, hb1, hw2_row, hb2)
    return params, head_out


def triamese_forward(wt, mut, params, head_out=1):
    B, in_shape = wt.shape
    hidden = 256

    # Batch tile: sublane-aligned, sized for v7x's 64 MiB VMEM budget (TM<=256).
    tm = min(256, -(-B // 8) * 8)
    b_pad = -(-B // tm) * tm
    if b_pad != B:
        wt = jnp.pad(wt, ((0, b_pad - B), (0, 0)))
        mut = jnp.pad(mut, ((0, b_pad - B), (0, 0)))

    def resident(p):
        # Full-array block, same index every grid step -> stays in VMEM (no re-DMA).
        return pl.BlockSpec(p.shape, lambda i: (0, 0))

    in_specs = [pl.BlockSpec((tm, in_shape), lambda i: (i, 0)),
                pl.BlockSpec((tm, in_shape), lambda i: (i, 0))]
    in_specs += [resident(p) for p in params]
    out_spec = pl.BlockSpec((tm, head_out), lambda i: (i, 0))

    # Advisory cost estimate so XLA can schedule around the custom call.
    flops = 2 * b_pad * (2 * in_shape * hidden + 2 * hidden * hidden   # shared tower (2 rows/batch)
                         + 2 * hidden * hidden + hidden * hidden       # siamese head
                         + in_shape * hidden + 2 * hidden * hidden     # mlp branch
                         + 2 * hidden * hidden                         # fusion hidden
                         + hidden)                                     # final column
    bytes_accessed = (sum(int(p.size) * p.dtype.itemsize for p in params)
                      + 2 * b_pad * in_shape * 4 + b_pad * head_out * 4)
    cost = pl.CostEstimate(flops=int(flops), transcendentals=0,
                           bytes_accessed=int(bytes_accessed))

    out = pl.pallas_call(
        triamese_kernel,
        out_shape=jax.ShapeDtypeStruct((b_pad, head_out), jnp.float32),
        grid=(b_pad // tm,),
        in_specs=in_specs,
        out_specs=out_spec,
        compiler_params=pltpu.CompilerParams(
            dimension_semantics=("parallel",)),   # shards batch across v7x's 2 TCs
        cost_estimate=cost,
    )(wt, mut, *params)
    return out[:B]                                      # (B, 1), matching TriameseNetwork


if __name__ == "__main__":
    key = jax.random.PRNGKey(0)
    k_wt, k_mut, k_params = jax.random.split(key, 3)

    B, IN_SHAPE = 8, 768
    wt = jax.random.normal(k_wt, (B, IN_SHAPE), jnp.float32)
    mut = jax.random.normal(k_mut, (B, IN_SHAPE), jnp.float32)

    params, head_out = build_params(k_params, in_shape=IN_SHAPE)

    out = triamese_forward(wt, mut, params, head_out)
    jax.block_until_ready(out)
    assert out.shape == (B, head_out), out.shape
    print("KERNEL_OK")
</pallas_src>

<mosaic_0001>
module attributes {stable_mosaic.version = 11 : i64} {
  func.func @triamese_kernel(%arg0: i32, %arg1: memref<8x768xf32, #tpu.memory_space<vmem>>, %arg2: memref<8x768xf32, #tpu.memory_space<vmem>>, %arg3: memref<768x256xbf16, #tpu.memory_space<vmem>>, %arg4: memref<1x256xf32, #tpu.memory_space<vmem>>, %arg5: memref<256x256xbf16, #tpu.memory_space<vmem>>, %arg6: memref<1x256xf32, #tpu.memory_space<vmem>>, %arg7: memref<256x256xbf16, #tpu.memory_space<vmem>>, %arg8: memref<256x256xbf16, #tpu.memory_space<vmem>>, %arg9: memref<1x256xf32, #tpu.memory_space<vmem>>, %arg10: memref<256x256xbf16, #tpu.memory_space<vmem>>, %arg11: memref<1x256xf32, #tpu.memory_space<vmem>>, %arg12: memref<768x256xbf16, #tpu.memory_space<vmem>>, %arg13: memref<1x256xf32, #tpu.memory_space<vmem>>, %arg14: memref<256x256xbf16, #tpu.memory_space<vmem>>, %arg15: memref<1x256xf32, #tpu.memory_space<vmem>>, %arg16: memref<256x256xbf16, #tpu.memory_space<vmem>>, %arg17: memref<1x256xf32, #tpu.memory_space<vmem>>, %arg18: memref<256x256xbf16, #tpu.memory_space<vmem>>, %arg19: memref<256x256xbf16, #tpu.memory_space<vmem>>, %arg20: memref<1x256xf32, #tpu.memory_space<vmem>>, %arg21: memref<1x256xf32, #tpu.memory_space<vmem>>, %arg22: memref<1x1xf32, #tpu.memory_space<vmem>>, %arg23: memref<8x1xf32, #tpu.memory_space<vmem>>) attributes {dimension_semantics = [#tpu.dimension_semantics<parallel>], iteration_bounds = array<i64: 1>, scalar_prefetch = 0 : i64, scratch_operands = 0 : i64, tpu.core_type = #tpu.core_type<tc>, window_params = [{transform_indices = @transform_0, window_bounds = array<i64: 8, 768>}, {transform_indices = @transform_1, window_bounds = array<i64: 8, 768>}, {pipeline_mode = #tpu.pipeline_mode<synchronous>, transform_indices = @transform_2, window_bounds = array<i64: 768, 256>}, {pipeline_mode = #tpu.pipeline_mode<synchronous>, transform_indices = @transform_3, window_bounds = array<i64: 1, 256>}, {pipeline_mode = #tpu.pipeline_mode<synchronous>, transform_indices = @transform_4, window_bounds = array<i64: 256, 256>}, {pipeline_mode = #tpu.pipeline_mode<synchronous>, transform_indices = @transform_5, window_bounds = array<i64: 1, 256>}, {pipeline_mode = #tpu.pipeline_mode<synchronous>, transform_indices = @transform_6, window_bounds = array<i64: 256, 256>}, {pipeline_mode = #tpu.pipeline_mode<synchronous>, transform_indices = @transform_7, window_bounds = array<i64: 256, 256>}, {pipeline_mode = #tpu.pipeline_mode<synchronous>, transform_indices = @transform_8, window_bounds = array<i64: 1, 256>}, {pipeline_mode = #tpu.pipeline_mode<synchronous>, transform_indices = @transform_9, window_bounds = array<i64: 256, 256>}, {pipeline_mode = #tpu.pipeline_mode<synchronous>, transform_indices = @transform_10, window_bounds = array<i64: 1, 256>}, {pipeline_mode = #tpu.pipeline_mode<synchronous>, transform_indices = @transform_11, window_bounds = array<i64: 768, 256>}, {pipeline_mode = #tpu.pipeline_mode<synchronous>, transform_indices = @transform_12, window_bounds = array<i64: 1, 256>}, {pipeline_mode = #tpu.pipeline_mode<synchronous>, transform_indices = @transform_13, window_bounds = array<i64: 256, 256>}, {pipeline_mode = #tpu.pipeline_mode<synchronous>, transform_indices = @transform_14, window_bounds = array<i64: 1, 256>}, {pipeline_mode = #tpu.pipeline_mode<synchronous>, transform_indices = @transform_15, window_bounds = array<i64: 256, 256>}, {pipeline_mode = #tpu.pipeline_mode<synchronous>, transform_indices = @transform_16, window_bounds = array<i64: 1, 256>}, {pipeline_mode = #tpu.pipeline_mode<synchronous>, transform_indices = @transform_17, window_bounds = array<i64: 256, 256>}, {pipeline_mode = #tpu.pipeline_mode<synchronous>, transform_indices = @transform_18, window_bounds = array<i64: 256, 256>}, {pipeline_mode = #tpu.pipeline_mode<synchronous>, transform_indices = @transform_19, window_bounds = array<i64: 1, 256>}, {pipeline_mode = #tpu.pipeline_mode<synchronous>, transform_indices = @transform_20, window_bounds = array<i64: 1, 256>}, {pipeline_mode = #tpu.pipeline_mode<synchronous>, transform_indices = @transform_21, window_bounds = array<i64: 1, 1>}, {transform_indices = @transform_22, window_bounds = array<i64: 8, 1>}]} {
    %c0 = arith.constant 0 : index
    %c0_0 = arith.constant 0 : index
    %0 = vector.load %arg1[%c0, %c0_0] : memref<8x768xf32, #tpu.memory_space<vmem>>, vector<8x768xf32>
    %c0_1 = arith.constant 0 : index
    %c0_2 = arith.constant 0 : index
    %1 = vector.load %arg2[%c0_1, %c0_2] : memref<8x768xf32, #tpu.memory_space<vmem>>, vector<8x768xf32>
    %2 = tpu.concatenate %0, %1 in 0 : vector<8x768xf32>, vector<8x768xf32> -> vector<16x768xf32>
    %3 = arith.truncf %2 : vector<16x768xf32> to vector<16x768xbf16>
    %c0_3 = arith.constant 0 : index
    %c0_4 = arith.constant 0 : index
    %4 = vector.load %arg3[%c0_3, %c0_4] : memref<768x256xbf16, #tpu.memory_space<vmem>>, vector<768x256xbf16>
    %cst = arith.constant dense<0.000000e+00> : vector<16x256xf32>
    %5 = tpu.matmul %3, %4, %cst {dimension_numbers = #tpu.dot_dimension_numbers<[1], [0], [0], [1], [0, 0, 1, 1], [], []>} : vector<16x768xbf16>, vector<768x256xbf16>, vector<16x256xf32> -> vector<16x256xf32>
    %c0_5 = arith.constant 0 : index
    %c0_6 = arith.constant 0 : index
    %6 = vector.load %arg4[%c0_5, %c0_6] : memref<1x256xf32, #tpu.memory_space<vmem>>, vector<1x256xf32>
    %7 = vector.broadcast %6 : vector<1x256xf32> to vector<16x256xf32>
    %8 = arith.addf %5, %7 : vector<16x256xf32>
    %cst_7 = arith.constant 0.000000e+00 : f32
    %9 = vector.broadcast %cst_7 : f32 to vector<16x256xf32>
    %10 = arith.cmpf ogt, %8, %9 : vector<16x256xf32>
    %cst_8 = arith.constant 0.00999999977 : f32
    %11 = vector.broadcast %cst_8 : f32 to vector<16x256xf32>
    %12 = arith.mulf %11, %8 : vector<16x256xf32>
    %13 = arith.select %10, %8, %12 : vector<16x256xi1>, vector<16x256xf32>
    %14 = arith.truncf %13 : vector<16x256xf32> to vector<16x256xbf16>
    %c0_9 = arith.constant 0 : index
    %c0_10 = arith.constant 0 : index
    %15 = vector.load %arg5[%c0_9, %c0_10] : memref<256x256xbf16, #tpu.memory_space<vmem>>, vector<256x256xbf16>
    %cst_11 = arith.constant dense<0.000000e+00> : vector<16x256xf32>
    %16 = tpu.matmul %14, %15, %cst_11 {dimension_numbers = #tpu.dot_dimension_numbers<[1], [0], [0], [1], [0, 0, 1, 1], [], []>} : vector<16x256xbf16>, vector<256x256xbf16>, vector<16x256xf32> -> vector<16x256xf32>
    %c0_12 = arith.constant 0 : index
    %c0_13 = arith.constant 0 : index
    %17 = vector.load %arg6[%c0_12, %c0_13] : memref<1x256xf32, #tpu.memory_space<vmem>>, vector<1x256xf32>
    %18 = vector.broadcast %17 : vector<1x256xf32> to vector<16x256xf32>
    %19 = arith.addf %16, %18 : vector<16x256xf32>
    %cst_14 = arith.constant 0.000000e+00 : f32
    %20 = vector.broadcast %cst_14 : f32 to vector<16x256xf32>
    %21 = arith.cmpf ogt, %19, %20 : vector<16x256xf32>
    %cst_15 = arith.constant 0.00999999977 : f32
    %22 = vector.broadcast %cst_15 : f32 to vector<16x256xf32>
    %23 = arith.mulf %22, %19 : vector<16x256xf32>
    %24 = arith.select %21, %19, %23 : vector<16x256xi1>, vector<16x256xf32>
    %25 = vector.extract_strided_slice %24 {offsets = [0, 0], sizes = [8, 256], strides = [1, 1]} : vector<16x256xf32> to vector<8x256xf32>
    %26 = vector.extract_strided_slice %24 {offsets = [8, 0], sizes = [8, 256], strides = [1, 1]} : vector<16x256xf32> to vector<8x256xf32>
    %27 = arith.truncf %25 : vector<8x256xf32> to vector<8x256xbf16>
    %c0_16 = arith.constant 0 : index
    %c0_17 = arith.constant 0 : index
    %28 = vector.load %arg7[%c0_16, %c0_17] : memref<256x256xbf16, #tpu.memory_space<vmem>>, vector<256x256xbf16>
    %cst_18 = arith.constant dense<0.000000e+00> : vector<8x256xf32>
    %29 = tpu.matmul %27, %28, %cst_18 {dimension_numbers = #tpu.dot_dimension_numbers<[1], [0], [0], [1], [0, 0, 1, 1], [], []>} : vector<8x256xbf16>, vector<256x256xbf16>, vector<8x256xf32> -> vector<8x256xf32>
    %30 = arith.truncf %26 : vector<8x256xf32> to vector<8x256xbf16>
    %c0_19 = arith.constant 0 : index
    %c0_20 = arith.constant 0 : index
    %31 = vector.load %arg8[%c0_19, %c0_20] : memref<256x256xbf16, #tpu.memory_space<vmem>>, vector<256x256xbf16>
    %cst_21 = arith.constant dense<0.000000e+00> : vector<8x256xf32>
    %32 = tpu.matmul %30, %31, %cst_21 {dimension_numbers = #tpu.dot_dimension_numbers<[1], [0], [0], [1], [0, 0, 1, 1], [], []>} : vector<8x256xbf16>, vector<256x256xbf16>, vector<8x256xf32> -> vector<8x256xf32>
    %33 = arith.addf %29, %32 : vector<8x256xf32>
    %c0_22 = arith.constant 0 : index
    %c0_23 = arith.constant 0 : index
    %34 = vector.load %arg9[%c0_22, %c0_23] : memref<1x256xf32, #tpu.memory_space<vmem>>, vector<1x256xf32>
    %35 = vector.broadcast %34 : vector<1x256xf32> to vector<8x256xf32>
    %36 = arith.addf %33, %35 : vector<8x256xf32>
    %cst_24 = arith.constant 0.000000e+00 : f32
    %37 = vector.broadcast %cst_24 : f32 to vector<8x256xf32>
    %38 = arith.cmpf ogt, %36, %37 : vector<8x256xf32>
    %cst_25 = arith.constant 0.00999999977 : f32
    %39 = vector.broadcast %cst_25 : f32 to vector<8x256xf32>
    %40 = arith.mulf %39, %36 : vector<8x256xf32>
    %41 = arith.select %38, %36, %40 : vector<8x256xi1>, vector<8x256xf32>
    %42 = arith.truncf %41 : vector<8x256xf32> to vector<8x256xbf16>
    %c0_26 = arith.constant 0 : index
    %c0_27 = arith.constant 0 : index
    %43 = vector.load %arg10[%c0_26, %c0_27] : memref<256x256xbf16, #tpu.memory_space<vmem>>, vector<256x256xbf16>
    %cst_28 = arith.constant dense<0.000000e+00> : vector<8x256xf32>
    %44 = tpu.matmul %42, %43, %cst_28 {dimension_numbers = #tpu.dot_dimension_numbers<[1], [0], [0], [1], [0, 0, 1, 1], [], []>} : vector<8x256xbf16>, vector<256x256xbf16>, vector<8x256xf32> -> vector<8x256xf32>
    %c0_29 = arith.constant 0 : index
    %c0_30 = arith.constant 0 : index
    %45 = vector.load %arg11[%c0_29, %c0_30] : memref<1x256xf32, #tpu.memory_space<vmem>>, vector<1x256xf32>
    %46 = vector.broadcast %45 : vector<1x256xf32> to vector<8x256xf32>
    %47 = arith.addf %44, %46 : vector<8x256xf32>
    %48 = arith.subf %1, %0 : vector<8x768xf32>
    %49 = arith.truncf %48 : vector<8x768xf32> to vector<8x768xbf16>
    %c0_31 = arith.constant 0 : index
    %c0_32 = arith.constant 0 : index
    %50 = vector.load %arg12[%c0_31, %c0_32] : memref<768x256xbf16, #tpu.memory_space<vmem>>, vector<768x256xbf16>
    %cst_33 = arith.constant dense<0.000000e+00> : vector<8x256xf32>
    %51 = tpu.matmul %49, %50, %cst_33 {dimension_numbers = #tpu.dot_dimension_numbers<[1], [0], [0], [1], [0, 0, 1, 1], [], []>} : vector<8x768xbf16>, vector<768x256xbf16>, vector<8x256xf32> -> vector<8x256xf32>
    %c0_34 = arith.constant 0 : index
    %c0_35 = arith.constant 0 : index
    %52 = vector.load %arg13[%c0_34, %c0_35] : memref<1x256xf32, #tpu.memory_space<vmem>>, vector<1x256xf32>
    %53 = vector.broadcast %52 : vector<1x256xf32> to vector<8x256xf32>
    %54 = arith.addf %51, %53 : vector<8x256xf32>
    %cst_36 = arith.constant 0.000000e+00 : f32
    %55 = vector.broadcast %cst_36 : f32 to vector<8x256xf32>
    %56 = arith.cmpf ogt, %54, %55 : vector<8x256xf32>
    %cst_37 = arith.constant 0.00999999977 : f32
    %57 = vector.broadcast %cst_37 : f32 to vector<8x256xf32>
    %58 = arith.mulf %57, %54 : vector<8x256xf32>
    %59 = arith.select %56, %54, %58 : vector<8x256xi1>, vector<8x256xf32>
    %60 = arith.truncf %59 : vector<8x256xf32> to vector<8x256xbf16>
    %c0_38 = arith.constant 0 : index
    %c0_39 = arith.constant 0 : index
    %61 = vector.load %arg14[%c0_38, %c0_39] : memref<256x256xbf16, #tpu.memory_space<vmem>>, vector<256x256xbf16>
    %cst_40 = arith.constant dense<0.000000e+00> : vector<8x256xf32>
    %62 = tpu.matmul %60, %61, %cst_40 {dimension_numbers = #tpu.dot_dimension_numbers<[1], [0], [0], [1], [0, 0, 1, 1], [], []>} : vector<8x256xbf16>, vector<256x256xbf16>, vector<8x256xf32> -> vector<8x256xf32>
    %c0_41 = arith.constant 0 : index
    %c0_42 = arith.constant 0 : index
    %63 = vector.load %arg15[%c0_41, %c0_42] : memref<1x256xf32, #tpu.memory_space<vmem>>, vector<1x256xf32>
    %64 = vector.broadcast %63 : vector<1x256xf32> to vector<8x256xf32>
    %65 = arith.addf %62, %64 : vector<8x256xf32>
    %cst_43 = arith.constant 0.000000e+00 : f32
    %66 = vector.broadcast %cst_43 : f32 to vector<8x256xf32>
    %67 = arith.cmpf ogt, %65, %66 : vector<8x256xf32>
    %cst_44 = arith.constant 0.00999999977 : f32
    %68 = vector.broadcast %cst_44 : f32 to vector<8x256xf32>
    %69 = arith.mulf %68, %65 : vector<8x256xf32>
    %70 = arith.select %67, %65, %69 : vector<8x256xi1>, vector<8x256xf32>
    %71 = arith.truncf %70 : vector<8x256xf32> to vector<8x256xbf16>
    %c0_45 = arith.constant 0 : index
    %c0_46 = arith.constant 0 : index
    %72 = vector.load %arg16[%c0_45, %c0_46] : memref<256x256xbf16, #tpu.memory_space<vmem>>, vector<256x256xbf16>
    %cst_47 = arith.constant dense<0.000000e+00> : vector<8x256xf32>
    %73 = tpu.matmul %71, %72, %cst_47 {dimension_numbers = #tpu.dot_dimension_numbers<[1], [0], [0], [1], [0, 0, 1, 1], [], []>} : vector<8x256xbf16>, vector<256x256xbf16>, vector<8x256xf32> -> vector<8x256xf32>
    %c0_48 = arith.constant 0 : index
    %c0_49 = arith.constant 0 : index
    %74 = vector.load %arg17[%c0_48, %c0_49] : memref<1x256xf32, #tpu.memory_space<vmem>>, vector<1x256xf32>
    %75 = vector.broadcast %74 : vector<1x256xf32> to vector<8x256xf32>
    %76 = arith.addf %73, %75 : vector<8x256xf32>
    %77 = arith.truncf %47 : vector<8x256xf32> to vector<8x256xbf16>
    %c0_50 = arith.constant 0 : index
    %c0_51 = arith.constant 0 : index
    %78 = vector.load %arg18[%c0_50, %c0_51] : memref<256x256xbf16, #tpu.memory_space<vmem>>, vector<256x256xbf16>
    %cst_52 = arith.constant dense<0.000000e+00> : vector<8x256xf32>
    %79 = tpu.matmul %77, %78, %cst_52 {dimension_numbers = #tpu.dot_dimension_numbers<[1], [0], [0], [1], [0, 0, 1, 1], [], []>} : vector<8x256xbf16>, vector<256x256xbf16>, vector<8x256xf32> -> vector<8x256xf32>
    %80 = arith.truncf %76 : vector<8x256xf32> to vector<8x256xbf16>
    %c0_53 = arith.constant 0 : index
    %c0_54 = arith.constant 0 : index
    %81 = vector.load %arg19[%c0_53, %c0_54] : memref<256x256xbf16, #tpu.memory_space<vmem>>, vector<256x256xbf16>
    %cst_55 = arith.constant dense<0.000000e+00> : vector<8x256xf32>
    %82 = tpu.matmul %80, %81, %cst_55 {dimension_numbers = #tpu.dot_dimension_numbers<[1], [0], [0], [1], [0, 0, 1, 1], [], []>} : vector<8x256xbf16>, vector<256x256xbf16>, vector<8x256xf32> -> vector<8x256xf32>
    %83 = arith.addf %79, %82 : vector<8x256xf32>
    %c0_56 = arith.constant 0 : index
    %c0_57 = arith.constant 0 : index
    %84 = vector.load %arg20[%c0_56, %c0_57] : memref<1x256xf32, #tpu.memory_space<vmem>>, vector<1x256xf32>
    %85 = vector.broadcast %84 : vector<1x256xf32> to vector<8x256xf32>
    %86 = arith.addf %83, %85 : vector<8x256xf32>
    %cst_58 = arith.constant 0.000000e+00 : f32
    %87 = vector.broadcast %cst_58 : f32 to vector<8x256xf32>
    %88 = arith.cmpf ogt, %86, %87 : vector<8x256xf32>
    %cst_59 = arith.constant 0.00999999977 : f32
    %89 = vector.broadcast %cst_59 : f32 to vector<8x256xf32>
    %90 = arith.mulf %89, %86 : vector<8x256xf32>
    %91 = arith.select %88, %86, %90 : vector<8x256xi1>, vector<8x256xf32>
    %c0_60 = arith.constant 0 : index
    %c0_61 = arith.constant 0 : index
    %92 = vector.load %arg21[%c0_60, %c0_61] : memref<1x256xf32, #tpu.memory_space<vmem>>, vector<1x256xf32>
    %93 = vector.broadcast %92 : vector<1x256xf32> to vector<8x256xf32>
    %94 = arith.mulf %91, %93 : vector<8x256xf32>
    %cst_62 = arith.constant dense<0.000000e+00> : vector<8xf32>
    %95 = vector.multi_reduction <add>, %94, %cst_62 [1] : vector<8x256xf32> to vector<8xf32>
    %96 = vector.shape_cast %95 : vector<8xf32> to vector<8x1xf32>
    %c0_63 = arith.constant 0 : index
    %c0_64 = arith.constant 0 : index
    %97 = vector.load %arg22[%c0_63, %c0_64] : memref<1x1xf32, #tpu.memory_space<vmem>>, vector<1x1xf32>
    %98 = vector.broadcast %97 : vector<1x1xf32> to vector<8x1xf32>
    %99 = arith.addf %96, %98 : vector<8x1xf32>
    %c0_65 = arith.constant 0 : index
    %c0_66 = arith.constant 0 : index
    %100 = vector.load %arg23[%c0_65, %c0_66] : memref<8x1xf32, #tpu.memory_space<vmem>>, vector<8x1xf32>
    tpu.vector_store %arg23[%c0_65, %c0_66], %99 {strides = array<i32>} : memref<8x1xf32, #tpu.memory_space<vmem>>, vector<8x1xf32>,
    return
  }
  func.func @transform_0(%arg0: i32) -> (i32, i32) {
    %c0_i32 = arith.constant 0 : i32
    %c0_i32_0 = arith.constant 0 : i32
    return %arg0, %c0_i32 : i32, i32
  }
  func.func @transform_1(%arg0: i32) -> (i32, i32) {
    %c0_i32 = arith.constant 0 : i32
    %c0_i32_0 = arith.constant 0 : i32
    return %arg0, %c0_i32 : i32, i32
  }
  func.func @transform_2(%arg0: i32) -> (i32, i32) {
    %c0_i32 = arith.constant 0 : i32
    %c0_i32_0 = arith.constant 0 : i32
    %c0_i32_1 = arith.constant 0 : i32
    return %c0_i32, %c0_i32_0 : i32, i32
  }
  func.func @transform_3(%arg0: i32) -> (i32, i32) {
    %c0_i32 = arith.constant 0 : i32
    %c0_i32_0 = arith.constant 0 : i32
    %c0_i32_1 = arith.constant 0 : i32
    return %c0_i32, %c0_i32_0 : i32, i32
  }
  func.func @transform_4(%arg0: i32) -> (i32, i32) {
    %c0_i32 = arith.constant 0 : i32
    %c0_i32_0 = arith.constant 0 : i32
    %c0_i32_1 = arith.constant 0 : i32
    return %c0_i32, %c0_i32_0 : i32, i32
  }
  func.func @transform_5(%arg0: i32) -> (i32, i32) {
    %c0_i32 = arith.constant 0 : i32
    %c0_i32_0 = arith.constant 0 : i32
    %c0_i32_1 = arith.constant 0 : i32
    return %c0_i32, %c0_i32_0 : i32, i32
  }
  func.func @transform_6(%arg0: i32) -> (i32, i32) {
    %c0_i32 = arith.constant 0 : i32
    %c0_i32_0 = arith.constant 0 : i32
    %c0_i32_1 = arith.constant 0 : i32
    return %c0_i32, %c0_i32_0 : i32, i32
  }
  func.func @transform_7(%arg0: i32) -> (i32, i32) {
    %c0_i32 = arith.constant 0 : i32
    %c0_i32_0 = arith.constant 0 : i32
    %c0_i32_1 = arith.constant 0 : i32
    return %c0_i32, %c0_i32_0 : i32, i32
  }
  func.func @transform_8(%arg0: i32) -> (i32, i32) {
    %c0_i32 = arith.constant 0 : i32
    %c0_i32_0 = arith.constant 0 : i32
    %c0_i32_1 = arith.constant 0 : i32
    return %c0_i32, %c0_i32_0 : i32, i32
  }
  func.func @transform_9(%arg0: i32) -> (i32, i32) {
    %c0_i32 = arith.constant 0 : i32
    %c0_i32_0 = arith.constant 0 : i32
    %c0_i32_1 = arith.constant 0 : i32
    return %c0_i32, %c0_i32_0 : i32, i32
  }
  func.func @transform_10(%arg0: i32) -> (i32, i32) {
    %c0_i32 = arith.constant 0 : i32
    %c0_i32_0 = arith.constant 0 : i32
    %c0_i32_1 = arith.constant 0 : i32
    return %c0_i32, %c0_i32_0 : i32, i32
  }
  func.func @transform_11(%arg0: i32) -> (i32, i32) {
    %c0_i32 = arith.constant 0 : i32
    %c0_i32_0 = arith.constant 0 : i32
    %c0_i32_1 = arith.constant 0 : i32
    return %c0_i32, %c0_i32_0 : i32, i32
  }
  func.func @transform_12(%arg0: i32) -> (i32, i32) {
    %c0_i32 = arith.constant 0 : i32
    %c0_i32_0 = arith.constant 0 : i32
    %c0_i32_1 = arith.constant 0 : i32
    return %c0_i32, %c0_i32_0 : i32, i32
  }
  func.func @transform_13(%arg0: i32) -> (i32, i32) {
    %c0_i32 = arith.constant 0 : i32
    %c0_i32_0 = arith.constant 0 : i32
    %c0_i32_1 = arith.constant 0 : i32
    return %c0_i32, %c0_i32_0 : i32, i32
  }
  func.func @transform_14(%arg0: i32) -> (i32, i32) {
    %c0_i32 = arith.constant 0 : i32
    %c0_i32_0 = arith.constant 0 : i32
    %c0_i32_1 = arith.constant 0 : i32
    return %c0_i32, %c0_i32_0 : i32, i32
  }
  func.func @transform_15(%arg0: i32) -> (i32, i32) {
    %c0_i32 = arith.constant 0 : i32
    %c0_i32_0 = arith.constant 0 : i32
    %c0_i32_1 = arith.constant 0 : i32
    return %c0_i32, %c0_i32_0 : i32, i32
  }
  func.func @transform_16(%arg0: i32) -> (i32, i32) {
    %c0_i32 = arith.constant 0 : i32
    %c0_i32_0 = arith.constant 0 : i32
    %c0_i32_1 = arith.constant 0 : i32
    return %c0_i32, %c0_i32_0 : i32, i32
  }
  func.func @transform_17(%arg0: i32) -> (i32, i32) {
    %c0_i32 = arith.constant 0 : i32
    %c0_i32_0 = arith.constant 0 : i32
    %c0_i32_1 = arith.constant 0 : i32
    return %c0_i32, %c0_i32_0 : i32, i32
  }
  func.func @transform_18(%arg0: i32) -> (i32, i32) {
    %c0_i32 = arith.constant 0 : i32
    %c0_i32_0 = arith.constant 0 : i32
    %c0_i32_1 = arith.constant 0 : i32
    return %c0_i32, %c0_i32_0 : i32, i32
  }
  func.func @transform_19(%arg0: i32) -> (i32, i32) {
    %c0_i32 = arith.constant 0 : i32
    %c0_i32_0 = arith.constant 0 : i32
    %c0_i32_1 = arith.constant 0 : i32
    return %c0_i32, %c0_i32_0 : i32, i32
  }
  func.func @transform_20(%arg0: i32) -> (i32, i32) {
    %c0_i32 = arith.constant 0 : i32
    %c0_i32_0 = arith.constant 0 : i32
    %c0_i32_1 = arith.constant 0 : i32
    return %c0_i32, %c0_i32_0 : i32, i32
  }
  func.func @transform_21(%arg0: i32) -> (i32, i32) {
    %c0_i32 = arith.constant 0 : i32
    %c0_i32_0 = arith.constant 0 : i32
    %c0_i32_1 = arith.constant 0 : i32
    return %c0_i32, %c0_i32_0 : i32, i32
  }
  func.func @transform_22(%arg0: i32) -> (i32, i32) {
    %c0_i32 = arith.constant 0 : i32
    %c0_i32_0 = arith.constant 0 : i32
    return %arg0, %c0_i32 : i32, i32
  }
}

</mosaic_0001>

<llo_original>
// kernel: tpu_custom_call.1
$region0: #{tpu_custom_call.1}
  #allocation0 [shape = 'u32[]', space=smem, size = 0x4, offset = 0x4, fixed_abs, tag = 'smem constant byte address 0x4 - core index']
  #allocation1 [shape = 'u32[144,128]{1,0:T(1,128)}', space=vmem, size = 0x12000, scoped, tag = 'internal scratch']
  #allocation2 [shape = 'f32[1,1]{1,0:T(1,128)S(1)}', space=vmem, size = 0x200, scoped, tag = 'scoped memory for tpu_custom_call.1']
  %s0 = inlined_call_operand.hbm [shape: f32[8,768], index: 0, kind: input, shape index: {}]
  %s1 = inlined_call_operand.hbm [shape: f32[8,768], index: 1, kind: input, shape index: {}]
  %s2 = inlined_call_operand.hbm [shape: bf16[768,256], index: 2, kind: input, shape index: {}]
  %s3 = inlined_call_operand.vmem [shape: f32[1,256], index: 3, kind: input, shape index: {}]
  %s4 = inlined_call_operand.hbm [shape: bf16[256,256], index: 4, kind: input, shape index: {}]
  %s5 = inlined_call_operand.vmem [shape: f32[1,256], index: 5, kind: input, shape index: {}]
  %s6 = inlined_call_operand.hbm [shape: bf16[256,256], index: 6, kind: input, shape index: {}]
  %s7 = inlined_call_operand.hbm [shape: bf16[256,256], index: 7, kind: input, shape index: {}]
  %s8 = inlined_call_operand.vmem [shape: f32[1,256], index: 8, kind: input, shape index: {}]
  %s9 = inlined_call_operand.hbm [shape: bf16[256,256], index: 9, kind: input, shape index: {}]
  %s10 = inlined_call_operand.vmem [shape: f32[1,256], index: 10, kind: input, shape index: {}]
  %s11 = inlined_call_operand.hbm [shape: bf16[768,256], index: 11, kind: input, shape index: {}]
  %s12 = inlined_call_operand.vmem [shape: f32[1,256], index: 12, kind: input, shape index: {}]
  %s13 = inlined_call_operand.hbm [shape: bf16[256,256], index: 13, kind: input, shape index: {}]
  %s14 = inlined_call_operand.vmem [shape: f32[1,256], index: 14, kind: input, shape index: {}]
  %s15 = inlined_call_operand.hbm [shape: bf16[256,256], index: 15, kind: input, shape index: {}]
  %s16 = inlined_call_operand.vmem [shape: f32[1,256], index: 16, kind: input, shape index: {}]
  %s17 = inlined_call_operand.hbm [shape: bf16[256,256], index: 17, kind: input, shape index: {}]
  %s18 = inlined_call_operand.hbm [shape: bf16[256,256], index: 18, kind: input, shape index: {}]
  %s19 = inlined_call_operand.vmem [shape: f32[1,256], index: 19, kind: input, shape index: {}]
  %s20 = inlined_call_operand.vmem [shape: f32[1,256], index: 20, kind: input, shape index: {}]
  %s21 = inlined_call_operand.<no memory space> [shape: f32[1,1], index: 21, kind: input, shape index: {}]
  %s22 = inlined_call_operand.vmem [shape: f32[8,1], index: 22, kind: output, shape index: {}]
  %s23 = sld [smem:[#allocation0]]
  $region146: #{tpu_custom_call.1} parent=0
    _
  %s25 = ssub.s32 1, %s23
  %s26 = scalar_select 0, %s25, %s23
  %v27 = vstv %s21
  %28 = vst [vmem:[#allocation2] sm:$0x1] %v27
  $region1: #{tpu_custom_call.1} parent=0
    #allocation3 [shape = 'u8[24576]{0}', space=vmem, size = 0x6000, scoped, tag = 'input window, operand 0, single buffered']
    #allocation4 [shape = 's32[1]{0}', space=sflag, size = 0x4, scoped, tag = 'scoped memory for tpu_custom_call.1']
    #allocation5 [shape = 'u8[24576]{0}', space=vmem, size = 0x6000, scoped, tag = 'input window, operand 1, single buffered']
    #allocation6 [shape = 's32[1]{0}', space=sflag, size = 0x4, scoped, tag = 'scoped memory for tpu_custom_call.1']
    #allocation7 [shape = 'u8[393216]{0}', space=vmem, size = 0x60000, scoped, tag = 'input window, operand 2, single buffered']
    #allocation8 [shape = 'u8[131072]{0}', space=vmem, size = 0x20000, scoped, tag = 'input window, operand 4, single buffered']
    #allocation9 [shape = 's32[1]{0}', space=sflag, size = 0x4, scoped, tag = 'scoped memory for tpu_custom_call.1']
    #allocation10 [shape = 'u8[131072]{0}', space=vmem, size = 0x20000, scoped, tag = 'input window, operand 6, single buffered']
    #allocation11 [shape = 'u8[131072]{0}', space=vmem, size = 0x20000, scoped, tag = 'input window, operand 7, single buffered']
    #allocation12 [shape = 's32[1]{0}', space=sflag, size = 0x4, scoped, tag = 'scoped memory for tpu_custom_call.1']
    #allocation13 [shape = 'u8[131072]{0}', space=vmem, size = 0x20000, scoped, tag = 'input window, operand 9, single buffered']
    #allocation14 [shape = 'u8[393216]{0}', space=vmem, size = 0x60000, scoped, tag = 'input window, operand 11, single buffered']
    #allocation15 [shape = 's32[1]{0}', space=sflag, size = 0x4, scoped, tag = 'scoped memory for tpu_custom_call.1']
    #allocation16 [shape = 'u8[131072]{0}', space=vmem, size = 0x20000, scoped, tag = 'input window, operand 13, single buffered']
    #allocation17 [shape = 'u8[131072]{0}', space=vmem, size = 0x20000, scoped, tag = 'input window, operand 15, single buffered']
    #allocation18 [shape = 's32[1]{0}', space=sflag, size = 0x4, scoped, tag = 'scoped memory for tpu_custom_call.1']
    #allocation19 [shape = 'u8[131072]{0}', space=vmem, size = 0x20000, scoped, tag = 'input window, operand 17, single buffered']
    #allocation20 [shape = 'u8[131072]{0}', space=vmem, size = 0x20000, scoped, tag = 'input window, operand 18, single buffered']
    #allocation21 [shape = 's32[1]{0}', space=sflag, size = 0x4, scoped, tag = 'scoped memory for tpu_custom_call.1']
    %29 = vsyncpa [#allocation4], 0
    %30 = vsyncpa [#allocation6], 0
    %31 = vsyncpa [#allocation9], 0
    %32 = vsyncpa [#allocation12], 0
    %33 = vsyncpa [#allocation15], 0
    %34 = vsyncpa [#allocation18], 0
    %35 = vsyncpa [#allocation21], 0
    // Predicated region
    $region2: #{tpu_custom_call.1} parent=1 // pred_check
      _
    $region3: #{tpu_custom_call.1} parent=1 // pred_check_branch
      %37 = sbr.rel (0) target = $region5
    $region4: #{tpu_custom_call.1} parent=1 // pred_region
      %s39 = ssub.s32 768, 768
      %40 = vsyncadd [#allocation4], %s39
      %s42 = sshll.u32 [#allocation3], 4
      %s43 = int_to_ptr.vmem [resolvable:$true] %s42
      %45 = dma.hbm_to_vmem [thread:$0]  %s0, 768, %s43, [#allocation4]
    $region5: #{tpu_custom_call.1} parent=1 // pred_fallthru
      _
    // Predicated region
    $region6: #{tpu_custom_call.1} parent=1 // pred_check
      _
    $region7: #{tpu_custom_call.1} parent=1 // pred_check_branch
      %47 = sbr.rel (0) target = $region9
    $region8: #{tpu_custom_call.1} parent=1 // pred_region
      %s49 = ssub.s32 768, 768
      %50 = vsyncadd [#allocation6], %s49
      %s52 = sshll.u32 [#allocation5], 4
      %s53 = int_to_ptr.vmem [resolvable:$true] %s52
      %55 = dma.hbm_to_vmem [thread:$0]  %s1, 768, %s53, [#allocation6]
    $region9: #{tpu_custom_call.1} parent=1 // pred_fallthru
      _
    // Predicated region
    $region10: #{tpu_custom_call.1} parent=1 // pred_check
      _
    $region11: #{tpu_custom_call.1} parent=1 // pred_check_branch
      %57 = sbr.rel (0) target = $region13
    $region12: #{tpu_custom_call.1} parent=1 // pred_region
      %s59 = ssub.s32 12288, 12288
      %60 = vsyncadd [#allocation6], %s59
      %s61 = sshll.u32 [#allocation7], 4
      %s62 = int_to_ptr.vmem [resolvable:$true] %s61
      %67 = dma.hbm_to_vmem [thread:$0]  %s2, 12288, %s62, [#allocation6], 128, 128, 8
    $region13: #{tpu_custom_call.1} parent=1 // pred_fallthru
      _
    // Predicated region
    $region14: #{tpu_custom_call.1} parent=1 // pred_check
      _
    $region15: #{tpu_custom_call.1} parent=1 // pred_check_branch
      %69 = sbr.rel (0) target = $region17
    $region16: #{tpu_custom_call.1} parent=1 // pred_region
      _
    $region17: #{tpu_custom_call.1} parent=1 // pred_fallthru
      _
    // Predicated region
    $region18: #{tpu_custom_call.1} parent=1 // pred_check
      _
    $region19: #{tpu_custom_call.1} parent=1 // pred_check_branch
      %71 = sbr.rel (0) target = $region21
    $region20: #{tpu_custom_call.1} parent=1 // pred_region
      %s73 = ssub.s32 4096, 4096
      %74 = vsyncadd [#allocation9], %s73
      %s75 = sshll.u32 [#allocation8], 4
      %s76 = int_to_ptr.vmem [resolvable:$true] %s75
      %81 = dma.hbm_to_vmem [thread:$0]  %s4, 4096, %s76, [#allocation9], 128, 128, 8
    $region21: #{tpu_custom_call.1} parent=1 // pred_fallthru
      _
    // Predicated region
    $region22: #{tpu_custom_call.1} parent=1 // pred_check
      _
    $region23: #{tpu_custom_call.1} parent=1 // pred_check_branch
      %83 = sbr.rel (0) target = $region25
    $region24: #{tpu_custom_call.1} parent=1 // pred_region
      _
    $region25: #{tpu_custom_call.1} parent=1 // pred_fallthru
      _
    // Predicated region
    $region26: #{tpu_custom_call.1} parent=1 // pred_check
      _
    $region27: #{tpu_custom_call.1} parent=1 // pred_check_branch
      %85 = sbr.rel (0) target = $region29
    $region28: #{tpu_custom_call.1} parent=1 // pred_region
      %s87 = ssub.s32 4096, 4096
      %88 = vsyncadd [#allocation9], %s87
      %s89 = sshll.u32 [#allocation10], 4
      %s90 = int_to_ptr.vmem [resolvable:$true] %s89
      %95 = dma.hbm_to_vmem [thread:$0]  %s6, 4096, %s90, [#allocation9], 128, 128, 8
    $region29: #{tpu_custom_call.1} parent=1 // pred_fallthru
      _
    // Predicated region
    $region30: #{tpu_custom_call.1} parent=1 // pred_check
      _
    $region31: #{tpu_custom_call.1} parent=1 // pred_check_branch
      %97 = sbr.rel (0) target = $region33
    $region32: #{tpu_custom_call.1} parent=1 // pred_region
      %s99 = ssub.s32 4096, 4096
      %100 = vsyncadd [#allocation12], %s99
      %s101 = sshll.u32 [#allocation11], 4
      %s102 = int_to_ptr.vmem [resolvable:$true] %s101
      %107 = dma.hbm_to_vmem [thread:$0]  %s7, 4096, %s102, [#allocation12], 128, 128, 8
    $region33: #{tpu_custom_call.1} parent=1 // pred_fallthru
      _
    // Predicated region
    $region34: #{tpu_custom_call.1} parent=1 // pred_check
      _
    $region35: #{tpu_custom_call.1} parent=1 // pred_check_branch
      %109 = sbr.rel (0) target = $region37
    $region36: #{tpu_custom_call.1} parent=1 // pred_region
      _
    $region37: #{tpu_custom_call.1} parent=1 // pred_fallthru
      _
    // Predicated region
    $region38: #{tpu_custom_call.1} parent=1 // pred_check
      _
    $region39: #{tpu_custom_call.1} parent=1 // pred_check_branch
      %111 = sbr.rel (0) target = $region41
    $region40: #{tpu_custom_call.1} parent=1 // pred_region
      %s113 = ssub.s32 4096, 4096
      %114 = vsyncadd [#allocation12], %s113
      %s115 = sshll.u32 [#allocation13], 4
      %s116 = int_to_ptr.vmem [resolvable:$true] %s115
      %121 = dma.hbm_to_vmem [thread:$0]  %s9, 4096, %s116, [#allocation12], 128, 128, 8
    $region41: #{tpu_custom_call.1} parent=1 // pred_fallthru
      _
    // Predicated region
    $region42: #{tpu_custom_call.1} parent=1 // pred_check
      _
    $region43: #{tpu_custom_call.1} parent=1 // pred_check_branch
      %123 = sbr.rel (0) target = $region45
    $region44: #{tpu_custom_call.1} parent=1 // pred_region
      _
    $region45: #{tpu_custom_call.1} parent=1 // pred_fallthru
      _
    // Predicated region
    $region46: #{tpu_custom_call.1} parent=1 // pred_check
      _
    $region47: #{tpu_custom_call.1} parent=1 // pred_check_branch
      %125 = sbr.rel (0) target = $region49
    $region48: #{tpu_custom_call.1} parent=1 // pred_region
      %s127 = ssub.s32 12288, 12288
      %128 = vsyncadd [#allocation15], %s127
      %s129 = sshll.u32 [#allocation14], 4
      %s130 = int_to_ptr.vmem [resolvable:$true] %s129
      %135 = dma.hbm_to_vmem [thread:$0]  %s11, 12288, %s130, [#allocation15], 128, 128, 8
    $region49: #{tpu_custom_call.1} parent=1 // pred_fallthru
      _
    // Predicated region
    $region50: #{tpu_custom_call.1} parent=1 // pred_check
      _
    $region51: #{tpu_custom_call.1} parent=1 // pred_check_branch
      %137 = sbr.rel (0) target = $region53
    $region52: #{tpu_custom_call.1} parent=1 // pred_region
      _
    $region53: #{tpu_custom_call.1} parent=1 // pred_fallthru
      _
    // Predicated region
    $region54: #{tpu_custom_call.1} parent=1 // pred_check
      _
    $region55: #{tpu_custom_call.1} parent=1 // pred_check_branch
      %139 = sbr.rel (0) target = $region57
    $region56: #{tpu_custom_call.1} parent=1 // pred_region
      %s141 = ssub.s32 4096, 4096
      %142 = vsyncadd [#allocation15], %s141
      %s143 = sshll.u32 [#allocation16], 4
      %s144 = int_to_ptr.vmem [resolvable:$true] %s143
      %149 = dma.hbm_to_vmem [thread:$0]  %s13, 4096, %s144, [#allocation15], 128, 128, 8
    $region57: #{tpu_custom_call.1} parent=1 // pred_fallthru
      _
    // Predicated region
    $region58: #{tpu_custom_call.1} parent=1 // pred_check
      _
    $region59: #{tpu_custom_call.1} parent=1 // pred_check_branch
      %151 = sbr.rel (0) target = $region61
    $region60: #{tpu_custom_call.1} parent=1 // pred_region
      _
    $region61: #{tpu_custom_call.1} parent=1 // pred_fallthru
      _
    // Predicated region
    $region62: #{tpu_custom_call.1} parent=1 // pred_check
      _
    $region63: #{tpu_custom_call.1} parent=1 // pred_check_branch
      %153 = sbr.rel (0) target = $region65
    $region64: #{tpu_custom_call.1} parent=1 // pred_region
      %s155 = ssub.s32 4096, 4096
      %156 = vsyncadd [#allocation18], %s155
      %s157 = sshll.u32 [#allocation17], 4
      %s158 = int_to_ptr.vmem [resolvable:$true] %s157
      %163 = dma.hbm_to_vmem [thread:$0]  %s15, 4096, %s158, [#allocation18], 128, 128, 8
    $region65: #{tpu_custom_call.1} parent=1 // pred_fallthru
      _
    // Predicated region
    $region66: #{tpu_custom_call.1} parent=1 // pred_check
      _
    $region67: #{tpu_custom_call.1} parent=1 // pred_check_branch
      %165 = sbr.rel (0) target = $region69
    $region68: #{tpu_custom_call.1} parent=1 // pred_region
      _
    $region69: #{tpu_custom_call.1} parent=1 // pred_fallthru
      _
    // Predicated region
    $region70: #{tpu_custom_call.1} parent=1 // pred_check
      _
    $region71: #{tpu_custom_call.1} parent=1 // pred_check_branch
      %167 = sbr.rel (0) target = $region73
    $region72: #{tpu_custom_call.1} parent=1 // pred_region
      %s169 = ssub.s32 4096, 4096
      %170 = vsyncadd [#allocation18], %s169
      %s171 = sshll.u32 [#allocation19], 4
      %s172 = int_to_ptr.vmem [resolvable:$true] %s171
      %177 = dma.hbm_to_vmem [thread:$0]  %s17, 4096, %s172, [#allocation18], 128, 128, 8
    $region73: #{tpu_custom_call.1} parent=1 // pred_fallthru
      _
    // Predicated region
    $region74: #{tpu_custom_call.1} parent=1 // pred_check
      _
    $region75: #{tpu_custom_call.1} parent=1 // pred_check_branch
      %179 = sbr.rel (0) target = $region77
    $region76: #{tpu_custom_call.1} parent=1 // pred_region
      %s181 = ssub.s32 4096, 4096
      %182 = vsyncadd [#allocation21], %s181
      %s183 = sshll.u32 [#allocation20], 4
      %s184 = int_to_ptr.vmem [resolvable:$true] %s183
      %189 = dma.hbm_to_vmem [thread:$0]  %s18, 4096, %s184, [#allocation21], 128, 128, 8
    $region77: #{tpu_custom_call.1} parent=1 // pred_fallthru
      _
    // Predicated region
    $region78: #{tpu_custom_call.1} parent=1 // pred_check
      _
    $region79: #{tpu_custom_call.1} parent=1 // pred_check_branch
      %191 = sbr.rel (0) target = $region81
    $region80: #{tpu_custom_call.1} parent=1 // pred_region
      _
    $region81: #{tpu_custom_call.1} parent=1 // pred_fallthru
      _
    // Predicated region
    $region82: #{tpu_custom_call.1} parent=1 // pred_check
      _
    $region83: #{tpu_custom_call.1} parent=1 // pred_check_branch
      %193 = sbr.rel (0) target = $region85
    $region84: #{tpu_custom_call.1} parent=1 // pred_region
      _
    $region85: #{tpu_custom_call.1} parent=1 // pred_fallthru
      _
    // Predicated region
    $region86: #{tpu_custom_call.1} parent=1 // pred_check
      _
    $region87: #{tpu_custom_call.1} parent=1 // pred_check_branch
      %195 = sbr.rel (0) target = $region89
    $region88: #{tpu_custom_call.1} parent=1 // pred_region
      _
    $region89: #{tpu_custom_call.1} parent=1 // pred_fallthru
      _
    // Predicated region
    $region90: #{tpu_custom_call.1} parent=1 // pred_check
      _
    $region91: #{tpu_custom_call.1} parent=1 // pred_check_branch
      %197 = sbr.rel (0) target = $region93
    $region92: #{tpu_custom_call.1} parent=1 // pred_region
      %198 = dma.done [#allocation4], 768
    $region93: #{tpu_custom_call.1} parent=1 // pred_fallthru
      _
    // Predicated region
    $region94: #{tpu_custom_call.1} parent=1 // pred_check
      _
    $region95: #{tpu_custom_call.1} parent=1 // pred_check_branch
      %200 = sbr.rel (0) target = $region97
    $region96: #{tpu_custom_call.1} parent=1 // pred_region
      %201 = dma.done [#allocation6], 768
    $region97: #{tpu_custom_call.1} parent=1 // pred_fallthru
      _
    // Predicated region
    $region98: #{tpu_custom_call.1} parent=1 // pred_check
      _
    $region99: #{tpu_custom_call.1} parent=1 // pred_check_branch
      %203 = sbr.rel (0) target = $region101
    $region100: #{tpu_custom_call.1} parent=1 // pred_region
      %204 = dma.done [#allocation6], 12288
    $region101: #{tpu_custom_call.1} parent=1 // pred_fallthru
      _
    // Predicated region
    $region102: #{tpu_custom_call.1} parent=1 // pred_check
      _
    $region103: #{tpu_custom_call.1} parent=1 // pred_check_branch
      %206 = sbr.rel (0) target = $region105
    $region104: #{tpu_custom_call.1} parent=1 // pred_region
      %207 = dma.done [#allocation9], 4096
    $region105: #{tpu_custom_call.1} parent=1 // pred_fallthru
      _
    // Predicated region
    $region106: #{tpu_custom_call.1} parent=1 // pred_check
      _
    $region107: #{tpu_custom_call.1} parent=1 // pred_check_branch
      %209 = sbr.rel (0) target = $region109
    $region108: #{tpu_custom_call.1} parent=1 // pred_region
      %210 = dma.done [#allocation9], 4096
    $region109: #{tpu_custom_call.1} parent=1 // pred_fallthru
      _
    // Predicated region
    $region110: #{tpu_custom_call.1} parent=1 // pred_check
      _
    $region111: #{tpu_custom_call.1} parent=1 // pred_check_branch
      %212 = sbr.rel (0) target = $region113
    $region112: #{tpu_custom_call.1} parent=1 // pred_region
      %213 = dma.done [#allocation12], 4096
    $region113: #{tpu_custom_call.1} parent=1 // pred_fallthru
      _
    // Predicated region
    $region114: #{tpu_custom_call.1} parent=1 // pred_check
      _
    $region115: #{tpu_custom_call.1} parent=1 // pred_check_branch
      %215 = sbr.rel (0) target = $region117
    $region116: #{tpu_custom_call.1} parent=1 // pred_region
      %216 = dma.done [#allocation12], 4096
    $region117: #{tpu_custom_call.1} parent=1 // pred_fallthru
      _
    // Predicated region
    $region118: #{tpu_custom_call.1} parent=1 // pred_check
      _
    $region119: #{tpu_custom_call.1} parent=1 // pred_check_branch
      %218 = sbr.rel (0) target = $region121
    $region120: #{tpu_custom_call.1} parent=1 // pred_region
      %219 = dma.done [#allocation15], 12288
    $region121: #{tpu_custom_call.1} parent=1 // pred_fallthru
      _
    // Predicated region
    $region122: #{tpu_custom_call.1} parent=1 // pred_check
      _
    $region123: #{tpu_custom_call.1} parent=1 // pred_check_branch
      %221 = sbr.rel (0) target = $region125
    $region124: #{tpu_custom_call.1} parent=1 // pred_region
      %222 = dma.done [#allocation15], 4096
    $region125: #{tpu_custom_call.1} parent=1 // pred_fallthru
      _
    // Predicated region
    $region126: #{tpu_custom_call.1} parent=1 // pred_check
      _
    $region127: #{tpu_custom_call.1} parent=1 // pred_check_branch
      %224 = sbr.rel (0) target = $region129
    $region128: #{tpu_custom_call.1} parent=1 // pred_region
      %225 = dma.done [#allocation18], 4096
    $region129: #{tpu_custom_call.1} parent=1 // pred_fallthru
      _
    // Predicated region
    $region130: #{tpu_custom_call.1} parent=1 // pred_check
      _
    $region131: #{tpu_custom_call.1} parent=1 // pred_check_branch
      %227 = sbr.rel (0) target = $region133
    $region132: #{tpu_custom_call.1} parent=1 // pred_region
      %228 = dma.done [#allocation18], 4096
    $region133: #{tpu_custom_call.1} parent=1 // pred_fallthru
      _
    // Predicated region
    $region134: #{tpu_custom_call.1} parent=1 // pred_check
      _
    $region135: #{tpu_custom_call.1} parent=1 // pred_check_branch
      %230 = sbr.rel (0) target = $region137
    $region136: #{tpu_custom_call.1} parent=1 // pred_region
      %231 = dma.done [#allocation21], 4096
    $region137: #{tpu_custom_call.1} parent=1 // pred_fallthru
      _
    %v232 = vld [vmem:[#allocation3] sm:$0xff]
    %v233 = vld [vmem:[#allocation3 + $0x8] sm:$0xff]
    %v234 = vld [vmem:[#allocation3 + $0x10] sm:$0xff]
    %v235 = vld [vmem:[#allocation3 + $0x18] sm:$0xff]
    %v236 = vld [vmem:[#allocation3 + $0x20] sm:$0xff]
    %v237 = vld [vmem:[#allocation3 + $0x28] sm:$0xff]
    %v238 = vld [vmem:[#allocation5] sm:$0xff]
    %v239 = vld [vmem:[#allocation5 + $0x8] sm:$0xff]
    %v240 = vld [vmem:[#allocation5 + $0x10] sm:$0xff]
    %v241 = vld [vmem:[#allocation5 + $0x18] sm:$0xff]
    %v242 = vld [vmem:[#allocation5 + $0x20] sm:$0xff]
    %v243 = vld [vmem:[#allocation5 + $0x28] sm:$0xff]
    %v244 = vpack.c.bf16 %v238, %v232
    %v245 = vpack.c.bf16 %v239, %v233
    %v246 = vpack.c.bf16 %v240, %v234
    %v247 = vpack.c.bf16 %v241, %v235
    %v248 = vpack.c.bf16 %v242, %v236
    %v249 = vpack.c.bf16 %v243, %v237
    %v250 = vld [vmem:[#allocation7] sm:$0xff]
    %v251 = vld [vmem:[#allocation7 + $0x8] sm:$0xff]
    %v252 = vld [vmem:[#allocation7 + $0x10] sm:$0xff]
    %v253 = vld [vmem:[#allocation7 + $0x18] sm:$0xff]
    %v254 = vld [vmem:[#allocation7 + $0x20] sm:$0xff]
    %v255 = vld [vmem:[#allocation7 + $0x28] sm:$0xff]
    %v256 = vld [vmem:[#allocation7 + $0x30] sm:$0xff]
    %v257 = vld [vmem:[#allocation7 + $0x38] sm:$0xff]
    %v258 = vld [vmem:[#allocation7 + $0x40] sm:$0xff]
    %v259 = vld [vmem:[#allocation7 + $0x48] sm:$0xff]
    %v260 = vld [vmem:[#allocation7 + $0x50] sm:$0xff]
    %v261 = vld [vmem:[#allocation7 + $0x58] sm:$0xff]
    %v262 = vld [vmem:[#allocation7 + $0x60] sm:$0xff]
    %v263 = vld [vmem:[#allocation7 + $0x68] sm:$0xff]
    %v264 = vld [vmem:[#allocation7 + $0x70] sm:$0xff]
    %v265 = vld [vmem:[#allocation7 + $0x78] sm:$0xff]
    %v266 = vld [vmem:[#allocation7 + $0x80] sm:$0xff]
    %v267 = vld [vmem:[#allocation7 + $0x88] sm:$0xff]
    %v268 = vld [vmem:[#allocation7 + $0x90] sm:$0xff]
    %v269 = vld [vmem:[#allocation7 + $0x98] sm:$0xff]
    %v270 = vld [vmem:[#allocation7 + $0xa0] sm:$0xff]
    %v271 = vld [vmem:[#allocation7 + $0xa8] sm:$0xff]
    %v272 = vld [vmem:[#allocation7 + $0xb0] sm:$0xff]
    %v273 = vld [vmem:[#allocation7 + $0xb8] sm:$0xff]
    %v274 = vld [vmem:[#allocation7 + $0xc0] sm:$0xff]
    %v275 = vld [vmem:[#allocation7 + $0xc8] sm:$0xff]
    %v276 = vld [vmem:[#allocation7 + $0xd0] sm:$0xff]
    %v277 = vld [vmem:[#allocation7 + $0xd8] sm:$0xff]
    %v278 = vld [vmem:[#allocation7 + $0xe0] sm:$0xff]
    %v279 = vld [vmem:[#allocation7 + $0xe8] sm:$0xff]
    %v280 = vld [vmem:[#allocation7 + $0xf0] sm:$0xff]
    %v281 = vld [vmem:[#allocation7 + $0xf8] sm:$0xff]
    %v282 = vld [vmem:[#allocation7 + $0x100] sm:$0xff]
    %v283 = vld [vmem:[#allocation7 + $0x108] sm:$0xff]
    %v284 = vld [vmem:[#allocation7 + $0x110] sm:$0xff]
    %v285 = vld [vmem:[#allocation7 + $0x118] sm:$0xff]
    %v286 = vld [vmem:[#allocation7 + $0x120] sm:$0xff]
    %v287 = vld [vmem:[#allocation7 + $0x128] sm:$0xff]
    %v288 = vld [vmem:[#allocation7 + $0x130] sm:$0xff]
    %v289 = vld [vmem:[#allocation7 + $0x138] sm:$0xff]
    %v290 = vld [vmem:[#allocation7 + $0x140] sm:$0xff]
    %v291 = vld [vmem:[#allocation7 + $0x148] sm:$0xff]
    %v292 = vld [vmem:[#allocation7 + $0x150] sm:$0xff]
    %v293 = vld [vmem:[#allocation7 + $0x158] sm:$0xff]
    %v294 = vld [vmem:[#allocation7 + $0x160] sm:$0xff]
    %v295 = vld [vmem:[#allocation7 + $0x168] sm:$0xff]
    %v296 = vld [vmem:[#allocation7 + $0x170] sm:$0xff]
    %v297 = vld [vmem:[#allocation7 + $0x178] sm:$0xff]
    %v298 = vld [vmem:[#allocation7 + $0x180] sm:$0xff]
    %v299 = vld [vmem:[#allocation7 + $0x188] sm:$0xff]
    %v300 = vld [vmem:[#allocation7 + $0x190] sm:$0xff]
    %v301 = vld [vmem:[#allocation7 + $0x198] sm:$0xff]
    %v302 = vld [vmem:[#allocation7 + $0x1a0] sm:$0xff]
    %v303 = vld [vmem:[#allocation7 + $0x1a8] sm:$0xff]
    %v304 = vld [vmem:[#allocation7 + $0x1b0] sm:$0xff]
    %v305 = vld [vmem:[#allocation7 + $0x1b8] sm:$0xff]
    %v306 = vld [vmem:[#allocation7 + $0x1c0] sm:$0xff]
    %v307 = vld [vmem:[#allocation7 + $0x1c8] sm:$0xff]
    %v308 = vld [vmem:[#allocation7 + $0x1d0] sm:$0xff]
    %v309 = vld [vmem:[#allocation7 + $0x1d8] sm:$0xff]
    %v310 = vld [vmem:[#allocation7 + $0x1e0] sm:$0xff]
    %v311 = vld [vmem:[#allocation7 + $0x1e8] sm:$0xff]
    %v312 = vld [vmem:[#allocation7 + $0x1f0] sm:$0xff]
    %v313 = vld [vmem:[#allocation7 + $0x1f8] sm:$0xff]
    %v314 = vld [vmem:[#allocation7 + $0x200] sm:$0xff]
    %v315 = vld [vmem:[#allocation7 + $0x208] sm:$0xff]
    %v316 = vld [vmem:[#allocation7 + $0x210] sm:$0xff]
    %v317 = vld [vmem:[#allocation7 + $0x218] sm:$0xff]
    %v318 = vld [vmem:[#allocation7 + $0x220] sm:$0xff]
    %v319 = vld [vmem:[#allocation7 + $0x228] sm:$0xff]
    %v320 = vld [vmem:[#allocation7 + $0x230] sm:$0xff]
    %v321 = vld [vmem:[#allocation7 + $0x238] sm:$0xff]
    %v322 = vld [vmem:[#allocation7 + $0x240] sm:$0xff]
    %v323 = vld [vmem:[#allocation7 + $0x248] sm:$0xff]
    %v324 = vld [vmem:[#allocation7 + $0x250] sm:$0xff]
    %v325 = vld [vmem:[#allocation7 + $0x258] sm:$0xff]
    %v326 = vld [vmem:[#allocation7 + $0x260] sm:$0xff]
    %v327 = vld [vmem:[#allocation7 + $0x268] sm:$0xff]
    %v328 = vld [vmem:[#allocation7 + $0x270] sm:$0xff]
    %v329 = vld [vmem:[#allocation7 + $0x278] sm:$0xff]
    %v330 = vld [vmem:[#allocation7 + $0x280] sm:$0xff]
    %v331 = vld [vmem:[#allocation7 + $0x288] sm:$0xff]
    %v332 = vld [vmem:[#allocation7 + $0x290] sm:$0xff]
    %v333 = vld [vmem:[#allocation7 + $0x298] sm:$0xff]
    %v334 = vld [vmem:[#allocation7 + $0x2a0] sm:$0xff]
    %v335 = vld [vmem:[#allocation7 + $0x2a8] sm:$0xff]
    %v336 = vld [vmem:[#allocation7 + $0x2b0] sm:$0xff]
    %v337 = vld [vmem:[#allocation7 + $0x2b8] sm:$0xff]
    %v338 = vld [vmem:[#allocation7 + $0x2c0] sm:$0xff]
    %v339 = vld [vmem:[#allocation7 + $0x2c8] sm:$0xff]
    %v340 = vld [vmem:[#allocation7 + $0x2d0] sm:$0xff]
    %v341 = vld [vmem:[#allocation7 + $0x2d8] sm:$0xff]
    %v342 = vld [vmem:[#allocation7 + $0x2e0] sm:$0xff]
    %v343 = vld [vmem:[#allocation7 + $0x2e8] sm:$0xff]
    %v344 = vld [vmem:[#allocation7 + $0x2f0] sm:$0xff]
    %v345 = vld [vmem:[#allocation7 + $0x2f8] sm:$0xff]
    %v346 = vld [vmem:[%s3] sm:$0x3]
    %v348 = vlaneseq
    %v349 = vshrl.u32 %v348, 7
    %v350 = vsub.s32 0, %v349
    %v351 = vrot.slane %v346, %v350
    %v352 = vlaneseq
    %v353 = vshrl.u32 %v352, 7
    %v354 = vsub.s32 1, %v353
    %v355 = vrot.slane %v346, %v354
    %v454 = vunpack.c.l.b16 %v250
    %v455 = vunpack.c.h.b16 %v250
    %v456 = vunpack.c.l.b16 %v251
    %v457 = vunpack.c.h.b16 %v251
    %v458 = vunpack.c.l.b16 %v252
    %v459 = vunpack.c.h.b16 %v252
    %v460 = vunpack.c.l.b16 %v253
    %v461 = vunpack.c.h.b16 %v253
    %v462 = vunpack.c.l.b16 %v254
    %v463 = vunpack.c.h.b16 %v254
    %v464 = vunpack.c.l.b16 %v255
    %v465 = vunpack.c.h.b16 %v255
    %v466 = vunpack.c.l.b16 %v256
    %v467 = vunpack.c.h.b16 %v256
    %v468 = vunpack.c.l.b16 %v257
    %v469 = vunpack.c.h.b16 %v257
    %v470 = vunpack.c.l.b16 %v258
    %v471 = vunpack.c.h.b16 %v258
    %v472 = vunpack.c.l.b16 %v259
    %v473 = vunpack.c.h.b16 %v259
    %v474 = vunpack.c.l.b16 %v260
    %v475 = vunpack.c.h.b16 %v260
    %v476 = vunpack.c.l.b16 %v261
    %v477 = vunpack.c.h.b16 %v261
    %v478 = vunpack.c.l.b16 %v262
    %v479 = vunpack.c.h.b16 %v262
    %v480 = vunpack.c.l.b16 %v263
    %v481 = vunpack.c.h.b16 %v263
    %v482 = vunpack.c.l.b16 %v264
    %v483 = vunpack.c.h.b16 %v264
    %v484 = vunpack.c.l.b16 %v265
    %v485 = vunpack.c.h.b16 %v265
    %v486 = vunpack.c.l.b16 %v266
    %v487 = vunpack.c.h.b16 %v266
    %v488 = vunpack.c.l.b16 %v267
    %v489 = vunpack.c.h.b16 %v267
    %v490 = vunpack.c.l.b16 %v268
    %v491 = vunpack.c.h.b16 %v268
    %v492 = vunpack.c.l.b16 %v269
    %v493 = vunpack.c.h.b16 %v269
    %v494 = vunpack.c.l.b16 %v270
    %v495 = vunpack.c.h.b16 %v270
    %v496 = vunpack.c.l.b16 %v271
    %v497 = vunpack.c.h.b16 %v271
    %v498 = vunpack.c.l.b16 %v272
    %v499 = vunpack.c.h.b16 %v272
    %v500 = vunpack.c.l.b16 %v273
    %v501 = vunpack.c.h.b16 %v273
    %v502 = vunpack.c.l.b16 %v274
    %v503 = vunpack.c.h.b16 %v274
    %v504 = vunpack.c.l.b16 %v275
    %v505 = vunpack.c.h.b16 %v275
    %v506 = vunpack.c.l.b16 %v276
    %v507 = vunpack.c.h.b16 %v276
    %v508 = vunpack.c.l.b16 %v277
    %v509 = vunpack.c.h.b16 %v277
    %v510 = vunpack.c.l.b16 %v278
    %v511 = vunpack.c.h.b16 %v278
    %v512 = vunpack.c.l.b16 %v279
    %v513 = vunpack.c.h.b16 %v279
    %v514 = vunpack.c.l.b16 %v280
    %v515 = vunpack.c.h.b16 %v280
    %v516 = vunpack.c.l.b16 %v281
    %v517 = vunpack.c.h.b16 %v281
    %v518 = vunpack.c.l.b16 %v282
    %v519 = vunpack.c.h.b16 %v282
    %v520 = vunpack.c.l.b16 %v283
    %v521 = vunpack.c.h.b16 %v283
    %v522 = vunpack.c.l.b16 %v284
    %v523 = vunpack.c.h.b16 %v284
    %v524 = vunpack.c.l.b16 %v285
    %v525 = vunpack.c.h.b16 %v285
    %v526 = vunpack.c.l.b16 %v286
    %v527 = vunpack.c.h.b16 %v286
    %v528 = vunpack.c.l.b16 %v287
    %v529 = vunpack.c.h.b16 %v287
    %v530 = vunpack.c.l.b16 %v288
    %v531 = vunpack.c.h.b16 %v288
    %v532 = vunpack.c.l.b16 %v289
    %v533 = vunpack.c.h.b16 %v289
    %v534 = vunpack.c.l.b16 %v290
    %v535 = vunpack.c.h.b16 %v290
    %v536 = vunpack.c.l.b16 %v291
    %v537 = vunpack.c.h.b16 %v291
    %v538 = vunpack.c.l.b16 %v292
    %v539 = vunpack.c.h.b16 %v292
    %v540 = vunpack.c.l.b16 %v293
    %v541 = vunpack.c.h.b16 %v293
    %v542 = vunpack.c.l.b16 %v294
    %v543 = vunpack.c.h.b16 %v294
    %v544 = vunpack.c.l.b16 %v295
    %v545 = vunpack.c.h.b16 %v295
    %v546 = vunpack.c.l.b16 %v296
    %v547 = vunpack.c.h.b16 %v296
    %v548 = vunpack.c.l.b16 %v297
    %v549 = vunpack.c.h.b16 %v297
    %v550 = vunpack.c.l.b16 %v298
    %v551 = vunpack.c.h.b16 %v298
    %v552 = vunpack.c.l.b16 %v299
    %v553 = vunpack.c.h.b16 %v299
    %v554 = vunpack.c.l.b16 %v300
    %v555 = vunpack.c.h.b16 %v300
    %v556 = vunpack.c.l.b16 %v301
    %v557 = vunpack.c.h.b16 %v301
    %v558 = vunpack.c.l.b16 %v302
    %v559 = vunpack.c.h.b16 %v302
    %v560 = vunpack.c.l.b16 %v303
    %v561 = vunpack.c.h.b16 %v303
    %v562 = vunpack.c.l.b16 %v304
    %v563 = vunpack.c.h.b16 %v304
    %v564 = vunpack.c.l.b16 %v305
    %v565 = vunpack.c.h.b16 %v305
    %v566 = vunpack.c.l.b16 %v306
    %v567 = vunpack.c.h.b16 %v306
    %v568 = vunpack.c.l.b16 %v307
    %v569 = vunpack.c.h.b16 %v307
    %v570 = vunpack.c.l.b16 %v308
    %v571 = vunpack.c.h.b16 %v308
    %v572 = vunpack.c.l.b16 %v309
    %v573 = vunpack.c.h.b16 %v309
    %v574 = vunpack.c.l.b16 %v310
    %v575 = vunpack.c.h.b16 %v310
    %v576 = vunpack.c.l.b16 %v311
    %v577 = vunpack.c.h.b16 %v311
    %v578 = vunpack.c.l.b16 %v312
    %v579 = vunpack.c.h.b16 %v312
    %v580 = vunpack.c.l.b16 %v313
    %v581 = vunpack.c.h.b16 %v313
    %v582 = vunpack.c.l.b16 %v314
    %v583 = vunpack.c.h.b16 %v314
    %v584 = vunpack.c.l.b16 %v315
    %v585 = vunpack.c.h.b16 %v315
    %v586 = vunpack.c.l.b16 %v316
    %v587 = vunpack.c.h.b16 %v316
    %v588 = vunpack.c.l.b16 %v317
    %v589 = vunpack.c.h.b16 %v317
    %v590 = vunpack.c.l.b16 %v318
    %v591 = vunpack.c.h.b16 %v318
    %v592 = vunpack.c.l.b16 %v319
    %v593 = vunpack.c.h.b16 %v319
    %v594 = vunpack.c.l.b16 %v320
    %v595 = vunpack.c.h.b16 %v320
    %v596 = vunpack.c.l.b16 %v321
    %v597 = vunpack.c.h.b16 %v321
    %v598 = vunpack.c.l.b16 %v322
    %v599 = vunpack.c.h.b16 %v322
    %v600 = vunpack.c.l.b16 %v323
    %v601 = vunpack.c.h.b16 %v323
    %v602 = vunpack.c.l.b16 %v324
    %v603 = vunpack.c.h.b16 %v324
    %v604 = vunpack.c.l.b16 %v325
    %v605 = vunpack.c.h.b16 %v325
    %v606 = vunpack.c.l.b16 %v326
    %v607 = vunpack.c.h.b16 %v326
    %v608 = vunpack.c.l.b16 %v327
    %v609 = vunpack.c.h.b16 %v327
    %v610 = vunpack.c.l.b16 %v328
    %v611 = vunpack.c.h.b16 %v328
    %v612 = vunpack.c.l.b16 %v329
    %v613 = vunpack.c.h.b16 %v329
    %v614 = vunpack.c.l.b16 %v330
    %v615 = vunpack.c.h.b16 %v330
    %v616 = vunpack.c.l.b16 %v331
    %v617 = vunpack.c.h.b16 %v331
    %v618 = vunpack.c.l.b16 %v332
    %v619 = vunpack.c.h.b16 %v332
    %v620 = vunpack.c.l.b16 %v333
    %v621 = vunpack.c.h.b16 %v333
    %v622 = vunpack.c.l.b16 %v334
    %v623 = vunpack.c.h.b16 %v334
    %v624 = vunpack.c.l.b16 %v335
    %v625 = vunpack.c.h.b16 %v335
    %v626 = vunpack.c.l.b16 %v336
    %v627 = vunpack.c.h.b16 %v336
    %v628 = vunpack.c.l.b16 %v337
    %v629 = vunpack.c.h.b16 %v337
    %v630 = vunpack.c.l.b16 %v338
    %v631 = vunpack.c.h.b16 %v338
    %v632 = vunpack.c.l.b16 %v339
    %v633 = vunpack.c.h.b16 %v339
    %v634 = vunpack.c.l.b16 %v340
    %v635 = vunpack.c.h.b16 %v340
    %v636 = vunpack.c.l.b16 %v341
    %v637 = vunpack.c.h.b16 %v341
    %v638 = vunpack.c.l.b16 %v342
    %v639 = vunpack.c.h.b16 %v342
    %v640 = vunpack.c.l.b16 %v343
    %v641 = vunpack.c.h.b16 %v343
    %v642 = vunpack.c.l.b16 %v344
    %v643 = vunpack.c.h.b16 %v344
    %v644 = vunpack.c.l.b16 %v345
    %v645 = vunpack.c.h.b16 %v345
    %v646 = vpack.c.b16 %v456, %v454
    %v647 = vpack.c.b16 %v457, %v455
    %v648 = vpack.c.b16 %v460, %v458
    %v649 = vpack.c.b16 %v461, %v459
    %v650 = vpack.c.b16 %v464, %v462
    %v651 = vpack.c.b16 %v465, %v463
    %v652 = vpack.c.b16 %v468, %v466
    %v653 = vpack.c.b16 %v469, %v467
    %v654 = vpack.c.b16 %v472, %v470
    %v655 = vpack.c.b16 %v473, %v471
    %v656 = vpack.c.b16 %v476, %v474
    %v657 = vpack.c.b16 %v477, %v475
    %v658 = vpack.c.b16 %v480, %v478
    %v659 = vpack.c.b16 %v481, %v479
    %v660 = vpack.c.b16 %v484, %v482
    %v661 = vpack.c.b16 %v485, %v483
    %v662 = vpack.c.b16 %v488, %v486
    %v663 = vpack.c.b16 %v489, %v487
    %v664 = vpack.c.b16 %v492, %v490
    %v665 = vpack.c.b16 %v493, %v491
    %v666 = vpack.c.b16 %v496, %v494
    %v667 = vpack.c.b16 %v497, %v495
    %v668 = vpack.c.b16 %v500, %v498
    %v669 = vpack.c.b16 %v501, %v499
    %v670 = vpack.c.b16 %v504, %v502
    %v671 = vpack.c.b16 %v505, %v503
    %v672 = vpack.c.b16 %v508, %v506
    %v673 = vpack.c.b16 %v509, %v507
    %v674 = vpack.c.b16 %v512, %v510
    %v675 = vpack.c.b16 %v513, %v511
    %v676 = vpack.c.b16 %v516, %v514
    %v677 = vpack.c.b16 %v517, %v515
    %v678 = vpack.c.b16 %v520, %v518
    %v679 = vpack.c.b16 %v521, %v519
    %v680 = vpack.c.b16 %v524, %v522
    %v681 = vpack.c.b16 %v525, %v523
    %v682 = vpack.c.b16 %v528, %v526
    %v683 = vpack.c.b16 %v529, %v527
    %v684 = vpack.c.b16 %v532, %v530
    %v685 = vpack.c.b16 %v533, %v531
    %v686 = vpack.c.b16 %v536, %v534
    %v687 = vpack.c.b16 %v537, %v535
    %v688 = vpack.c.b16 %v540, %v538
    %v689 = vpack.c.b16 %v541, %v539
    %v690 = vpack.c.b16 %v544, %v542
    %v691 = vpack.c.b16 %v545, %v543
    %v692 = vpack.c.b16 %v548, %v546
    %v693 = vpack.c.b16 %v549, %v547
    %v694 = vpack.c.b16 %v552, %v550
    %v695 = vpack.c.b16 %v553, %v551
    %v696 = vpack.c.b16 %v556, %v554
    %v697 = vpack.c.b16 %v557, %v555
    %v698 = vpack.c.b16 %v560, %v558
    %v699 = vpack.c.b16 %v561, %v559
    %v700 = vpack.c.b16 %v564, %v562
    %v701 = vpack.c.b16 %v565, %v563
    %v702 = vpack.c.b16 %v568, %v566
    %v703 = vpack.c.b16 %v569, %v567
    %v704 = vpack.c.b16 %v572, %v570
    %v705 = vpack.c.b16 %v573, %v571
    %v706 = vpack.c.b16 %v576, %v574
    %v707 = vpack.c.b16 %v577, %v575
    %v708 = vpack.c.b16 %v580, %v578
    %v709 = vpack.c.b16 %v581, %v579
    %v710 = vpack.c.b16 %v584, %v582
    %v711 = vpack.c.b16 %v585, %v583
    %v712 = vpack.c.b16 %v588, %v586
    %v713 = vpack.c.b16 %v589, %v587
    %v714 = vpack.c.b16 %v592, %v590
    %v715 = vpack.c.b16 %v593, %v591
    %v716 = vpack.c.b16 %v596, %v594
    %v717 = vpack.c.b16 %v597, %v595
    %v718 = vpack.c.b16 %v600, %v598
    %v719 = vpack.c.b16 %v601, %v599
    %v720 = vpack.c.b16 %v604, %v602
    %v721 = vpack.c.b16 %v605, %v603
    %v722 = vpack.c.b16 %v608, %v606
    %v723 = vpack.c.b16 %v609, %v607
    %v724 = vpack.c.b16 %v612, %v610
    %v725 = vpack.c.b16 %v613, %v611
    %v726 = vpack.c.b16 %v616, %v614
    %v727 = vpack.c.b16 %v617, %v615
    %v728 = vpack.c.b16 %v620, %v618
    %v729 = vpack.c.b16 %v621, %v619
    %v730 = vpack.c.b16 %v624, %v622
    %v731 = vpack.c.b16 %v625, %v623
    %v732 = vpack.c.b16 %v628, %v626
    %v733 = vpack.c.b16 %v629, %v627
    %v734 = vpack.c.b16 %v632, %v630
    %v735 = vpack.c.b16 %v633, %v631
    %v736 = vpack.c.b16 %v636, %v634
    %v737 = vpack.c.b16 %v637, %v635
    %v738 = vpack.c.b16 %v640, %v638
    %v739 = vpack.c.b16 %v641, %v639
    %v740 = vpack.c.b16 %v644, %v642
    %v741 = vpack.c.b16 %v645, %v643
    %838 = vmatprep.subr.bf16.mxu0 %v647
    %839 = vmatpush1.bf16.msra.mxu0 %v646
    %840 = vmatprep.subr.bf16.mxu0 %v649
    %841 = vmatpush1.bf16.msra.mxu0 %v648
    %842 = vmatprep.subr.bf16.mxu0 %v651
    %843 = vmatpush1.bf16.msra.mxu0 %v650
    %844 = vmatprep.subr.bf16.mxu0 %v653
    %845 = vmatpush1.bf16.msra.mxu0 %v652
    %846 = vmatprep.subr.bf16.mxu0 %v655
    %847 = vmatpush1.bf16.msra.mxu0 %v654
    %848 = vmatprep.subr.bf16.mxu0 %v657
    %849 = vmatpush1.bf16.msra.mxu0 %v656
    %850 = vmatprep.subr.bf16.mxu0 %v659
    %851 = vmatpush1.bf16.msra.mxu0 %v658
    %852 = vmatprep.subr.bf16.mxu0 %v661
    %853 = vmatpush1.bf16.msra.mxu0 %v660
    %854 = vmatprep.subr.bf16.mxu0 %v663
    %855 = vmatpush1.bf16.msra.mxu0 %v662
    %856 = vmatprep.subr.bf16.mxu0 %v665
    %857 = vmatpush1.bf16.msra.mxu0 %v664
    %858 = vmatprep.subr.bf16.mxu0 %v667
    %859 = vmatpush1.bf16.msra.mxu0 %v666
    %860 = vmatprep.subr.bf16.mxu0 %v669
    %861 = vmatpush1.bf16.msra.mxu0 %v668
    %862 = vmatprep.subr.bf16.mxu0 %v671
    %863 = vmatpush1.bf16.msra.mxu0 %v670
    %864 = vmatprep.subr.bf16.mxu0 %v673
    %865 = vmatpush1.bf16.msra.mxu0 %v672
    %866 = vmatprep.subr.bf16.mxu0 %v675
    %867 = vmatpush1.bf16.msra.mxu0 %v674
    %868 = vmatprep.subr.bf16.mxu0 %v677
    %869 = vmatpush1.bf16.msra.mxu0 %v676
    %870 = vmatprep.mubr.bf16.mxu0 %v245
    %871 = vmatmul.mubr.bf16.gmra.mrb[0].mxu0 %v244
    %v872 = vpop.f32.mrb[0].mxu0
    %v873 = vadd.f32 %v351, %v872
    %v874 = vpop.f32.mrb[0].mxu0
    %v875 = vadd.f32 %v355, %v874
    %v876 = vpop.f32.mrb[0].mxu0
    %v877 = vadd.f32 %v351, %v876
    %v878 = vpop.f32.mrb[0].mxu0
    %v879 = vadd.f32 %v355, %v878
    %880 = vdwg.mxu0
    %881 = vmatprep.subr.bf16.mxu0 %v679
    %882 = vmatpush1.bf16.msra.mxu0 %v678
    %883 = vmatprep.subr.bf16.mxu0 %v681
    %884 = vmatpush1.bf16.msra.mxu0 %v680
    %885 = vmatprep.subr.bf16.mxu0 %v683
    %886 = vmatpush1.bf16.msra.mxu0 %v682
    %887 = vmatprep.subr.bf16.mxu0 %v685
    %888 = vmatpush1.bf16.msra.mxu0 %v684
    %889 = vmatprep.subr.bf16.mxu0 %v687
    %890 = vmatpush1.bf16.msra.mxu0 %v686
    %891 = vmatprep.subr.bf16.mxu0 %v689
    %892 = vmatpush1.bf16.msra.mxu0 %v688
    %893 = vmatprep.subr.bf16.mxu0 %v691
    %894 = vmatpush1.bf16.msra.mxu0 %v690
    %895 = vmatprep.subr.bf16.mxu0 %v693
    %896 = vmatpush1.bf16.msra.mxu0 %v692
    %897 = vmatprep.subr.bf16.mxu0 %v695
    %898 = vmatpush1.bf16.msra.mxu0 %v694
    %899 = vmatprep.subr.bf16.mxu0 %v697
    %900 = vmatpush1.bf16.msra.mxu0 %v696
    %901 = vmatprep.subr.bf16.mxu0 %v699
    %902 = vmatpush1.bf16.msra.mxu0 %v698
    %903 = vmatprep.subr.bf16.mxu0 %v701
    %904 = vmatpush1.bf16.msra.mxu0 %v700
    %905 = vmatprep.subr.bf16.mxu0 %v703
    %906 = vmatpush1.bf16.msra.mxu0 %v702
    %907 = vmatprep.subr.bf16.mxu0 %v705
    %908 = vmatpush1.bf16.msra.mxu0 %v704
    %909 = vmatprep.subr.bf16.mxu0 %v707
    %910 = vmatpush1.bf16.msra.mxu0 %v706
    %911 = vmatprep.subr.bf16.mxu0 %v709
    %912 = vmatpush1.bf16.msra.mxu0 %v708
    %913 = vmatprep.mubr.bf16.mxu0 %v247
    %914 = vmatmul.mubr.bf16.gmra.mrb[0].mxu0 %v246
    %v915 = vpop.f32.mrb[0].mxu0
    %v916 = vadd.f32 %v873, %v915
    %v917 = vpop.f32.mrb[0].mxu0
    %v918 = vadd.f32 %v875, %v917
    %v919 = vpop.f32.mrb[0].mxu0
    %v920 = vadd.f32 %v877, %v919
    %v921 = vpop.f32.mrb[0].mxu0
    %v922 = vadd.f32 %v879, %v921
    %923 = vdwg.mxu0
    %924 = vmatprep.subr.bf16.mxu0 %v711
    %925 = vmatpush1.bf16.msra.mxu0 %v710
    %926 = vmatprep.subr.bf16.mxu0 %v713
    %927 = vmatpush1.bf16.msra.mxu0 %v712
    %928 = vmatprep.subr.bf16.mxu0 %v715
    %929 = vmatpush1.bf16.msra.mxu0 %v714
    %930 = vmatprep.subr.bf16.mxu0 %v717
    %931 = vmatpush1.bf16.msra.mxu0 %v716
    %932 = vmatprep.subr.bf16.mxu0 %v719
    %933 = vmatpush1.bf16.msra.mxu0 %v718
    %934 = vmatprep.subr.bf16.mxu0 %v721
    %935 = vmatpush1.bf16.msra.mxu0 %v720
    %936 = vmatprep.subr.bf16.mxu0 %v723
    %937 = vmatpush1.bf16.msra.mxu0 %v722
    %938 = vmatprep.subr.bf16.mxu0 %v725
    %939 = vmatpush1.bf16.msra.mxu0 %v724
    %940 = vmatprep.subr.bf16.mxu0 %v727
    %941 = vmatpush1.bf16.msra.mxu0 %v726
    %942 = vmatprep.subr.bf16.mxu0 %v729
    %943 = vmatpush1.bf16.msra.mxu0 %v728
    %944 = vmatprep.subr.bf16.mxu0 %v731
    %945 = vmatpush1.bf16.msra.mxu0 %v730
    %946 = vmatprep.subr.bf16.mxu0 %v733
    %947 = vmatpush1.bf16.msra.mxu0 %v732
    %948 = vmatprep.subr.bf16.mxu0 %v735
    %949 = vmatpush1.bf16.msra.mxu0 %v734
    %950 = vmatprep.subr.bf16.mxu0 %v737
    %951 = vmatpush1.bf16.msra.mxu0 %v736
    %952 = vmatprep.subr.bf16.mxu0 %v739
    %953 = vmatpush1.bf16.msra.mxu0 %v738
    %954 = vmatprep.subr.bf16.mxu0 %v741
    %955 = vmatpush1.bf16.msra.mxu0 %v740
    %956 = vmatprep.mubr.bf16.mxu0 %v249
    %957 = vmatmul.mubr.bf16.gmra.mrb[0].mxu0 %v248
    %v958 = vpop.f32.mrb[0].mxu0
    %v959 = vadd.f32 %v916, %v958
    %v960 = vpop.f32.mrb[0].mxu0
    %v961 = vadd.f32 %v918, %v960
    %v962 = vpop.f32.mrb[0].mxu0
    %v963 = vadd.f32 %v920, %v962
    %v964 = vpop.f32.mrb[0].mxu0
    %v965 = vadd.f32 %v922, %v964
    %966 = vdwg.mxu0
    %vm967 = vcmp.gt.f32.partialorder %v959, 0.0
    %vm968 = vcmp.gt.f32.partialorder %v961, 0.0
    %vm969 = vcmp.gt.f32.partialorder %v963, 0.0
    %vm970 = vcmp.gt.f32.partialorder %v965, 0.0
    %v971 = vmul.f32 %v959, 0.01
    %v972 = vmul.f32 %v961, 0.01
    %v973 = vmul.f32 %v963, 0.01
    %v974 = vmul.f32 %v965, 0.01
    %v975 = vsel %vm967, %v959, %v971
    %v976 = vsel %vm968, %v961, %v972
    %v977 = vsel %vm969, %v963, %v973
    %v978 = vsel %vm970, %v965, %v974
    %v979 = vpack.c.bf16 %v977, %v975
    %v980 = vpack.c.bf16 %v978, %v976
    %v981 = vld [vmem:[#allocation8] sm:$0xff]
    %v982 = vld [vmem:[#allocation8 + $0x8] sm:$0xff]
    %v983 = vld [vmem:[#allocation8 + $0x10] sm:$0xff]
    %v984 = vld [vmem:[#allocation8 + $0x18] sm:$0xff]
    %v985 = vld [vmem:[#allocation8 + $0x20] sm:$0xff]
    %v986 = vld [vmem:[#allocation8 + $0x28] sm:$0xff]
    %v987 = vld [vmem:[#allocation8 + $0x30] sm:$0xff]
    %v988 = vld [vmem:[#allocation8 + $0x38] sm:$0xff]
    %v989 = vld [vmem:[#allocation8 + $0x40] sm:$0xff]
    %v990 = vld [vmem:[#allocation8 + $0x48] sm:$0xff]
    %v991 = vld [vmem:[#allocation8 + $0x50] sm:$0xff]
    %v992 = vld [vmem:[#allocation8 + $0x58] sm:$0xff]
    %v993 = vld [vmem:[#allocation8 + $0x60] sm:$0xff]
    %v994 = vld [vmem:[#allocation8 + $0x68] sm:$0xff]
    %v995 = vld [vmem:[#allocation8 + $0x70] sm:$0xff]
    %v996 = vld [vmem:[#allocation8 + $0x78] sm:$0xff]
    %v997 = vld [vmem:[#allocation8 + $0x80] sm:$0xff]
    %v998 = vld [vmem:[#allocation8 + $0x88] sm:$0xff]
    %v999 = vld [vmem:[#allocation8 + $0x90] sm:$0xff]
    %v1000 = vld [vmem:[#allocation8 + $0x98] sm:$0xff]
    %v1001 = vld [vmem:[#allocation8 + $0xa0] sm:$0xff]
    %v1002 = vld [vmem:[#allocation8 + $0xa8] sm:$0xff]
    %v1003 = vld [vmem:[#allocation8 + $0xb0] sm:$0xff]
    %v1004 = vld [vmem:[#allocation8 + $0xb8] sm:$0xff]
    %v1005 = vld [vmem:[#allocation8 + $0xc0] sm:$0xff]
    %v1006 = vld [vmem:[#allocation8 + $0xc8] sm:$0xff]
    %v1007 = vld [vmem:[#allocation8 + $0xd0] sm:$0xff]
    %v1008 = vld [vmem:[#allocation8 + $0xd8] sm:$0xff]
    %v1009 = vld [vmem:[#allocation8 + $0xe0] sm:$0xff]
    %v1010 = vld [vmem:[#allocation8 + $0xe8] sm:$0xff]
    %v1011 = vld [vmem:[#allocation8 + $0xf0] sm:$0xff]
    %v1012 = vld [vmem:[#allocation8 + $0xf8] sm:$0xff]
    %v1013 = vld [vmem:[%s5] sm:$0x3]
    %v1015 = vlaneseq
    %v1016 = vshrl.u32 %v1015, 7
    %v1017 = vsub.s32 0, %v1016
    %v1018 = vrot.slane %v1013, %v1017
    %v1019 = vlaneseq
    %v1020 = vshrl.u32 %v1019, 7
    %v1021 = vsub.s32 1, %v1020
    %v1022 = vrot.slane %v1013, %v1021
    %v1057 = vunpack.c.l.b16 %v981
    %v1058 = vunpack.c.h.b16 %v981
    %v1059 = vunpack.c.l.b16 %v982
    %v1060 = vunpack.c.h.b16 %v982
    %v1061 = vunpack.c.l.b16 %v983
    %v1062 = vunpack.c.h.b16 %v983
    %v1063 = vunpack.c.l.b16 %v984
    %v1064 = vunpack.c.h.b16 %v984
    %v1065 = vunpack.c.l.b16 %v985
    %v1066 = vunpack.c.h.b16 %v985
    %v1067 = vunpack.c.l.b16 %v986
    %v1068 = vunpack.c.h.b16 %v986
    %v1069 = vunpack.c.l.b16 %v987
    %v1070 = vunpack.c.h.b16 %v987
    %v1071 = vunpack.c.l.b16 %v988
    %v1072 = vunpack.c.h.b16 %v988
    %v1073 = vunpack.c.l.b16 %v989
    %v1074 = vunpack.c.h.b16 %v989
    %v1075 = vunpack.c.l.b16 %v990
    %v1076 = vunpack.c.h.b16 %v990
    %v1077 = vunpack.c.l.b16 %v991
    %v1078 = vunpack.c.h.b16 %v991
    %v1079 = vunpack.c.l.b16 %v992
    %v1080 = vunpack.c.h.b16 %v992
    %v1081 = vunpack.c.l.b16 %v993
    %v1082 = vunpack.c.h.b16 %v993
    %v1083 = vunpack.c.l.b16 %v994
    %v1084 = vunpack.c.h.b16 %v994
    %v1085 = vunpack.c.l.b16 %v995
    %v1086 = vunpack.c.h.b16 %v995
    %v1087 = vunpack.c.l.b16 %v996
    %v1088 = vunpack.c.h.b16 %v996
    %v1089 = vunpack.c.l.b16 %v997
    %v1090 = vunpack.c.h.b16 %v997
    %v1091 = vunpack.c.l.b16 %v998
    %v1092 = vunpack.c.h.b16 %v998
    %v1093 = vunpack.c.l.b16 %v999
    %v1094 = vunpack.c.h.b16 %v999
    %v1095 = vunpack.c.l.b16 %v1000
    %v1096 = vunpack.c.h.b16 %v1000
    %v1097 = vunpack.c.l.b16 %v1001
    %v1098 = vunpack.c.h.b16 %v1001
    %v1099 = vunpack.c.l.b16 %v1002
    %v1100 = vunpack.c.h.b16 %v1002
    %v1101 = vunpack.c.l.b16 %v1003
    %v1102 = vunpack.c.h.b16 %v1003
    %v1103 = vunpack.c.l.b16 %v1004
    %v1104 = vunpack.c.h.b16 %v1004
    %v1105 = vunpack.c.l.b16 %v1005
    %v1106 = vunpack.c.h.b16 %v1005
    %v1107 = vunpack.c.l.b16 %v1006
    %v1108 = vunpack.c.h.b16 %v1006
    %v1109 = vunpack.c.l.b16 %v1007
    %v1110 = vunpack.c.h.b16 %v1007
    %v1111 = vunpack.c.l.b16 %v1008
    %v1112 = vunpack.c.h.b16 %v1008
    %v1113 = vunpack.c.l.b16 %v1009
    %v1114 = vunpack.c.h.b16 %v1009
    %v1115 = vunpack.c.l.b16 %v1010
    %v1116 = vunpack.c.h.b16 %v1010
    %v1117 = vunpack.c.l.b16 %v1011
    %v1118 = vunpack.c.h.b16 %v1011
    %v1119 = vunpack.c.l.b16 %v1012
    %v1120 = vunpack.c.h.b16 %v1012
    %v1121 = vpack.c.b16 %v1059, %v1057
    %v1122 = vpack.c.b16 %v1060, %v1058
    %v1123 = vpack.c.b16 %v1063, %v1061
    %v1124 = vpack.c.b16 %v1064, %v1062
    %v1125 = vpack.c.b16 %v1067, %v1065
    %v1126 = vpack.c.b16 %v1068, %v1066
    %v1127 = vpack.c.b16 %v1071, %v1069
    %v1128 = vpack.c.b16 %v1072, %v1070
    %v1129 = vpack.c.b16 %v1075, %v1073
    %v1130 = vpack.c.b16 %v1076, %v1074
    %v1131 = vpack.c.b16 %v1079, %v1077
    %v1132 = vpack.c.b16 %v1080, %v1078
    %v1133 = vpack.c.b16 %v1083, %v1081
    %v1134 = vpack.c.b16 %v1084, %v1082
    %v1135 = vpack.c.b16 %v1087, %v1085
    %v1136 = vpack.c.b16 %v1088, %v1086
    %v1137 = vpack.c.b16 %v1091, %v1089
    %v1138 = vpack.c.b16 %v1092, %v1090
    %v1139 = vpack.c.b16 %v1095, %v1093
    %v1140 = vpack.c.b16 %v1096, %v1094
    %v1141 = vpack.c.b16 %v1099, %v1097
    %v1142 = vpack.c.b16 %v1100, %v1098
    %v1143 = vpack.c.b16 %v1103, %v1101
    %v1144 = vpack.c.b16 %v1104, %v1102
    %v1145 = vpack.c.b16 %v1107, %v1105
    %v1146 = vpack.c.b16 %v1108, %v1106
    %v1147 = vpack.c.b16 %v1111, %v1109
    %v1148 = vpack.c.b16 %v1112, %v1110
    %v1149 = vpack.c.b16 %v1115, %v1113
    %v1150 = vpack.c.b16 %v1116, %v1114
    %v1151 = vpack.c.b16 %v1119, %v1117
    %v1152 = vpack.c.b16 %v1120, %v1118
    %1185 = vmatprep.subr.bf16.mxu0 %v1122
    %1186 = vmatpush1.bf16.msra.mxu0 %v1121
    %1187 = vmatprep.subr.bf16.mxu0 %v1124
    %1188 = vmatpush1.bf16.msra.mxu0 %v1123
    %1189 = vmatprep.subr.bf16.mxu0 %v1126
    %1190 = vmatpush1.bf16.msra.mxu0 %v1125
    %1191 = vmatprep.subr.bf16.mxu0 %v1128
    %1192 = vmatpush1.bf16.msra.mxu0 %v1127
    %1193 = vmatprep.subr.bf16.mxu0 %v1130
    %1194 = vmatpush1.bf16.msra.mxu0 %v1129
    %1195 = vmatprep.subr.bf16.mxu0 %v1132
    %1196 = vmatpush1.bf16.msra.mxu0 %v1131
    %1197 = vmatprep.subr.bf16.mxu0 %v1134
    %1198 = vmatpush1.bf16.msra.mxu0 %v1133
    %1199 = vmatprep.subr.bf16.mxu0 %v1136
    %1200 = vmatpush1.bf16.msra.mxu0 %v1135
    %1201 = vmatprep.subr.bf16.mxu0 %v1138
    %1202 = vmatpush1.bf16.msra.mxu0 %v1137
    %1203 = vmatprep.subr.bf16.mxu0 %v1140
    %1204 = vmatpush1.bf16.msra.mxu0 %v1139
    %1205 = vmatprep.subr.bf16.mxu0 %v1142
    %1206 = vmatpush1.bf16.msra.mxu0 %v1141
    %1207 = vmatprep.subr.bf16.mxu0 %v1144
    %1208 = vmatpush1.bf16.msra.mxu0 %v1143
    %1209 = vmatprep.subr.bf16.mxu0 %v1146
    %1210 = vmatpush1.bf16.msra.mxu0 %v1145
    %1211 = vmatprep.subr.bf16.mxu0 %v1148
    %1212 = vmatpush1.bf16.msra.mxu0 %v1147
    %1213 = vmatprep.subr.bf16.mxu0 %v1150
    %1214 = vmatpush1.bf16.msra.mxu0 %v1149
    %1215 = vmatprep.subr.bf16.mxu0 %v1152
    %1216 = vmatpush1.bf16.msra.mxu0 %v1151
    %1217 = vmatprep.mubr.bf16.mxu0 %v980
    %1218 = vmatmul.mubr.bf16.gmra.mrb[0].mxu0 %v979
    %v1219 = vpop.f32.mrb[0].mxu0
    %v1220 = vadd.f32 %v1018, %v1219
    %v1221 = vpop.f32.mrb[0].mxu0
    %v1222 = vadd.f32 %v1022, %v1221
    %v1223 = vpop.f32.mrb[0].mxu0
    %v1224 = vadd.f32 %v1018, %v1223
    %v1225 = vpop.f32.mrb[0].mxu0
    %v1226 = vadd.f32 %v1022, %v1225
    %1227 = vdwg.mxu0
    %vm1228 = vcmp.gt.f32.partialorder %v1220, 0.0
    %vm1229 = vcmp.gt.f32.partialorder %v1222, 0.0
    %vm1230 = vcmp.gt.f32.partialorder %v1224, 0.0
    %vm1231 = vcmp.gt.f32.partialorder %v1226, 0.0
    %v1232 = vmul.f32 %v1220, 0.01
    %v1233 = vmul.f32 %v1222, 0.01
    %v1234 = vmul.f32 %v1224, 0.01
    %v1235 = vmul.f32 %v1226, 0.01
    %v1236 = vsel %vm1228, %v1220, %v1232
    %v1237 = vsel %vm1229, %v1222, %v1233
    %v1238 = vsel %vm1230, %v1224, %v1234
    %v1239 = vsel %vm1231, %v1226, %v1235
    %v1240 = vpack.c.bf16 %v1236, %v1236
    %v1241 = vpack.c.bf16 %v1237, %v1237
    %v1242 = vld [vmem:[#allocation10] sm:$0xff]
    %v1243 = vld [vmem:[#allocation10 + $0x8] sm:$0xff]
    %v1244 = vld [vmem:[#allocation10 + $0x10] sm:$0xff]
    %v1245 = vld [vmem:[#allocation10 + $0x18] sm:$0xff]
    %v1246 = vld [vmem:[#allocation10 + $0x20] sm:$0xff]
    %v1247 = vld [vmem:[#allocation10 + $0x28] sm:$0xff]
    %v1248 = vld [vmem:[#allocation10 + $0x30] sm:$0xff]
    %v1249 = vld [vmem:[#allocation10 + $0x38] sm:$0xff]
    %v1250 = vld [vmem:[#allocation10 + $0x40] sm:$0xff]
    %v1251 = vld [vmem:[#allocation10 + $0x48] sm:$0xff]
    %v1252 = vld [vmem:[#allocation10 + $0x50] sm:$0xff]
    %v1253 = vld [vmem:[#allocation10 + $0x58] sm:$0xff]
    %v1254 = vld [vmem:[#allocation10 + $0x60] sm:$0xff]
    %v1255 = vld [vmem:[#allocation10 + $0x68] sm:$0xff]
    %v1256 = vld [vmem:[#allocation10 + $0x70] sm:$0xff]
    %v1257 = vld [vmem:[#allocation10 + $0x78] sm:$0xff]
    %v1258 = vld [vmem:[#allocation10 + $0x80] sm:$0xff]
    %v1259 = vld [vmem:[#allocation10 + $0x88] sm:$0xff]
    %v1260 = vld [vmem:[#allocation10 + $0x90] sm:$0xff]
    %v1261 = vld [vmem:[#allocation10 + $0x98] sm:$0xff]
    %v1262 = vld [vmem:[#allocation10 + $0xa0] sm:$0xff]
    %v1263 = vld [vmem:[#allocation10 + $0xa8] sm:$0xff]
    %v1264 = vld [vmem:[#allocation10 + $0xb0] sm:$0xff]
    %v1265 = vld [vmem:[#allocation10 + $0xb8] sm:$0xff]
    %v1266 = vld [vmem:[#allocation10 + $0xc0] sm:$0xff]
    %v1267 = vld [vmem:[#allocation10 + $0xc8] sm:$0xff]
    %v1268 = vld [vmem:[#allocation10 + $0xd0] sm:$0xff]
    %v1269 = vld [vmem:[#allocation10 + $0xd8] sm:$0xff]
    %v1270 = vld [vmem:[#allocation10 + $0xe0] sm:$0xff]
    %v1271 = vld [vmem:[#allocation10 + $0xe8] sm:$0xff]
    %v1272 = vld [vmem:[#allocation10 + $0xf0] sm:$0xff]
    %v1273 = vld [vmem:[#allocation10 + $0xf8] sm:$0xff]
    %v1274 = vpack.c.bf16 %v1238, %v1238
    %v1275 = vpack.c.bf16 %v1239, %v1239
    %v1276 = vld [vmem:[#allocation11] sm:$0xff]
    %v1277 = vld [vmem:[#allocation11 + $0x8] sm:$0xff]
    %v1278 = vld [vmem:[#allocation11 + $0x10] sm:$0xff]
    %v1279 = vld [vmem:[#allocation11 + $0x18] sm:$0xff]
    %v1280 = vld [vmem:[#allocation11 + $0x20] sm:$0xff]
    %v1281 = vld [vmem:[#allocation11 + $0x28] sm:$0xff]
    %v1282 = vld [vmem:[#allocation11 + $0x30] sm:$0xff]
    %v1283 = vld [vmem:[#allocation11 + $0x38] sm:$0xff]
    %v1284 = vld [vmem:[#allocation11 + $0x40] sm:$0xff]
    %v1285 = vld [vmem:[#allocation11 + $0x48] sm:$0xff]
    %v1286 = vld [vmem:[#allocation11 + $0x50] sm:$0xff]
    %v1287 = vld [vmem:[#allocation11 + $0x58] sm:$0xff]
    %v1288 = vld [vmem:[#allocation11 + $0x60] sm:$0xff]
    %v1289 = vld [vmem:[#allocation11 + $0x68] sm:$0xff]
    %v1290 = vld [vmem:[#allocation11 + $0x70] sm:$0xff]
    %v1291 = vld [vmem:[#allocation11 + $0x78] sm:$0xff]
    %v1292 = vld [vmem:[#allocation11 + $0x80] sm:$0xff]
    %v1293 = vld [vmem:[#allocation11 + $0x88] sm:$0xff]
    %v1294 = vld [vmem:[#allocation11 + $0x90] sm:$0xff]
    %v1295 = vld [vmem:[#allocation11 + $0x98] sm:$0xff]
    %v1296 = vld [vmem:[#allocation11 + $0xa0] sm:$0xff]
    %v1297 = vld [vmem:[#allocation11 + $0xa8] sm:$0xff]
    %v1298 = vld [vmem:[#allocation11 + $0xb0] sm:$0xff]
    %v1299 = vld [vmem:[#allocation11 + $0xb8] sm:$0xff]
    %v1300 = vld [vmem:[#allocation11 + $0xc0] sm:$0xff]
    %v1301 = vld [vmem:[#allocation11 + $0xc8] sm:$0xff]
    %v1302 = vld [vmem:[#allocation11 + $0xd0] sm:$0xff]
    %v1303 = vld [vmem:[#allocation11 + $0xd8] sm:$0xff]
    %v1304 = vld [vmem:[#allocation11 + $0xe0] sm:$0xff]
    %v1305 = vld [vmem:[#allocation11 + $0xe8] sm:$0xff]
    %v1306 = vld [vmem:[#allocation11 + $0xf0] sm:$0xff]
    %v1307 = vld [vmem:[#allocation11 + $0xf8] sm:$0xff]
    %v1340 = vunpack.c.l.b16 %v1276
    %v1341 = vunpack.c.h.b16 %v1276
    %v1342 = vunpack.c.l.b16 %v1277
    %v1343 = vunpack.c.h.b16 %v1277
    %v1344 = vunpack.c.l.b16 %v1278
    %v1345 = vunpack.c.h.b16 %v1278
    %v1346 = vunpack.c.l.b16 %v1279
    %v1347 = vunpack.c.h.b16 %v1279
    %v1348 = vunpack.c.l.b16 %v1280
    %v1349 = vunpack.c.h.b16 %v1280
    %v1350 = vunpack.c.l.b16 %v1281
    %v1351 = vunpack.c.h.b16 %v1281
    %v1352 = vunpack.c.l.b16 %v1282
    %v1353 = vunpack.c.h.b16 %v1282
    %v1354 = vunpack.c.l.b16 %v1283
    %v1355 = vunpack.c.h.b16 %v1283
    %v1356 = vunpack.c.l.b16 %v1284
    %v1357 = vunpack.c.h.b16 %v1284
    %v1358 = vunpack.c.l.b16 %v1285
    %v1359 = vunpack.c.h.b16 %v1285
    %v1360 = vunpack.c.l.b16 %v1286
    %v1361 = vunpack.c.h.b16 %v1286
    %v1362 = vunpack.c.l.b16 %v1287
    %v1363 = vunpack.c.h.b16 %v1287
    %v1364 = vunpack.c.l.b16 %v1288
    %v1365 = vunpack.c.h.b16 %v1288
    %v1366 = vunpack.c.l.b16 %v1289
    %v1367 = vunpack.c.h.b16 %v1289
    %v1368 = vunpack.c.l.b16 %v1290
    %v1369 = vunpack.c.h.b16 %v1290
    %v1370 = vunpack.c.l.b16 %v1291
    %v1371 = vunpack.c.h.b16 %v1291
    %v1372 = vunpack.c.l.b16 %v1292
    %v1373 = vunpack.c.h.b16 %v1292
    %v1374 = vunpack.c.l.b16 %v1293
    %v1375 = vunpack.c.h.b16 %v1293
    %v1376 = vunpack.c.l.b16 %v1294
    %v1377 = vunpack.c.h.b16 %v1294
    %v1378 = vunpack.c.l.b16 %v1295
    %v1379 = vunpack.c.h.b16 %v1295
    %v1380 = vunpack.c.l.b16 %v1296
    %v1381 = vunpack.c.h.b16 %v1296
    %v1382 = vunpack.c.l.b16 %v1297
    %v1383 = vunpack.c.h.b16 %v1297
    %v1384 = vunpack.c.l.b16 %v1298
    %v1385 = vunpack.c.h.b16 %v1298
    %v1386 = vunpack.c.l.b16 %v1299
    %v1387 = vunpack.c.h.b16 %v1299
    %v1388 = vunpack.c.l.b16 %v1300
    %v1389 = vunpack.c.h.b16 %v1300
    %v1390 = vunpack.c.l.b16 %v1301
    %v1391 = vunpack.c.h.b16 %v1301
    %v1392 = vunpack.c.l.b16 %v1302
    %v1393 = vunpack.c.h.b16 %v1302
    %v1394 = vunpack.c.l.b16 %v1303
    %v1395 = vunpack.c.h.b16 %v1303
    %v1396 = vunpack.c.l.b16 %v1304
    %v1397 = vunpack.c.h.b16 %v1304
    %v1398 = vunpack.c.l.b16 %v1305
    %v1399 = vunpack.c.h.b16 %v1305
    %v1400 = vunpack.c.l.b16 %v1306
    %v1401 = vunpack.c.h.b16 %v1306
    %v1402 = vunpack.c.l.b16 %v1307
    %v1403 = vunpack.c.h.b16 %v1307
    %v1404 = vpack.c.b16 %v1342, %v1340
    %v1405 = vpack.c.b16 %v1343, %v1341
    %v1406 = vpack.c.b16 %v1346, %v1344
    %v1407 = vpack.c.b16 %v1347, %v1345
    %v1408 = vpack.c.b16 %v1350, %v1348
    %v1409 = vpack.c.b16 %v1351, %v1349
    %v1410 = vpack.c.b16 %v1354, %v1352
    %v1411 = vpack.c.b16 %v1355, %v1353
    %v1412 = vpack.c.b16 %v1358, %v1356
    %v1413 = vpack.c.b16 %v1359, %v1357
    %v1414 = vpack.c.b16 %v1362, %v1360
    %v1415 = vpack.c.b16 %v1363, %v1361
    %v1416 = vpack.c.b16 %v1366, %v1364
    %v1417 = vpack.c.b16 %v1367, %v1365
    %v1418 = vpack.c.b16 %v1370, %v1368
    %v1419 = vpack.c.b16 %v1371, %v1369
    %v1420 = vpack.c.b16 %v1374, %v1372
    %v1421 = vpack.c.b16 %v1375, %v1373
    %v1422 = vpack.c.b16 %v1378, %v1376
    %v1423 = vpack.c.b16 %v1379, %v1377
    %v1424 = vpack.c.b16 %v1382, %v1380
    %v1425 = vpack.c.b16 %v1383, %v1381
    %v1426 = vpack.c.b16 %v1386, %v1384
    %v1427 = vpack.c.b16 %v1387, %v1385
    %v1428 = vpack.c.b16 %v1390, %v1388
    %v1429 = vpack.c.b16 %v1391, %v1389
    %v1430 = vpack.c.b16 %v1394, %v1392
    %v1431 = vpack.c.b16 %v1395, %v1393
    %v1432 = vpack.c.b16 %v1398, %v1396
    %v1433 = vpack.c.b16 %v1399, %v1397
    %v1434 = vpack.c.b16 %v1402, %v1400
    %v1435 = vpack.c.b16 %v1403, %v1401
    %1468 = vmatprep.subr.bf16.mxu0 %v1405
    %1469 = vmatpush1.bf16.msra.mxu0 %v1404
    %1470 = vmatprep.subr.bf16.mxu0 %v1407
    %1471 = vmatpush1.bf16.msra.mxu0 %v1406
    %1472 = vmatprep.subr.bf16.mxu0 %v1409
    %1473 = vmatpush1.bf16.msra.mxu0 %v1408
    %1474 = vmatprep.subr.bf16.mxu0 %v1411
    %1475 = vmatpush1.bf16.msra.mxu0 %v1410
    %1476 = vmatprep.subr.bf16.mxu0 %v1413
    %1477 = vmatpush1.bf16.msra.mxu0 %v1412
    %1478 = vmatprep.subr.bf16.mxu0 %v1415
    %1479 = vmatpush1.bf16.msra.mxu0 %v1414
    %1480 = vmatprep.subr.bf16.mxu0 %v1417
    %1481 = vmatpush1.bf16.msra.mxu0 %v1416
    %1482 = vmatprep.subr.bf16.mxu0 %v1419
    %1483 = vmatpush1.bf16.msra.mxu0 %v1418
    %1484 = vmatprep.subr.bf16.mxu0 %v1421
    %1485 = vmatpush1.bf16.msra.mxu0 %v1420
    %1486 = vmatprep.subr.bf16.mxu0 %v1423
    %1487 = vmatpush1.bf16.msra.mxu0 %v1422
    %1488 = vmatprep.subr.bf16.mxu0 %v1425
    %1489 = vmatpush1.bf16.msra.mxu0 %v1424
    %1490 = vmatprep.subr.bf16.mxu0 %v1427
    %1491 = vmatpush1.bf16.msra.mxu0 %v1426
    %1492 = vmatprep.subr.bf16.mxu0 %v1429
    %1493 = vmatpush1.bf16.msra.mxu0 %v1428
    %1494 = vmatprep.subr.bf16.mxu0 %v1431
    %1495 = vmatpush1.bf16.msra.mxu0 %v1430
    %1496 = vmatprep.subr.bf16.mxu0 %v1433
    %1497 = vmatpush1.bf16.msra.mxu0 %v1432
    %1498 = vmatprep.subr.bf16.mxu0 %v1435
    %1499 = vmatpush1.bf16.msra.mxu0 %v1434
    %1500 = vmatprep.mubr.bf16.mxu0 %v1275
    %1501 = vmatmul.mubr.bf16.gmra.mrb[0].mxu0 %v1274
    %v1502 = vpop.f32.mrb[0].mxu0
    %v1503 = vadd.f32 0.0, %v1502
    %v1504 = vpop.f32.mrb[0].mxu0
    %v1505 = vadd.f32 0.0, %v1504
    %v1506 = vpop.f32.mrb[0].mxu0
    %v1507 = vpop.f32.mrb[0].mxu0
    %1508 = vdwg.mxu0
    %v1541 = vunpack.c.l.b16 %v1242
    %v1542 = vunpack.c.h.b16 %v1242
    %v1543 = vunpack.c.l.b16 %v1243
    %v1544 = vunpack.c.h.b16 %v1243
    %v1545 = vunpack.c.l.b16 %v1244
    %v1546 = vunpack.c.h.b16 %v1244
    %v1547 = vunpack.c.l.b16 %v1245
    %v1548 = vunpack.c.h.b16 %v1245
    %v1549 = vunpack.c.l.b16 %v1246
    %v1550 = vunpack.c.h.b16 %v1246
    %v1551 = vunpack.c.l.b16 %v1247
    %v1552 = vunpack.c.h.b16 %v1247
    %v1553 = vunpack.c.l.b16 %v1248
    %v1554 = vunpack.c.h.b16 %v1248
    %v1555 = vunpack.c.l.b16 %v1249
    %v1556 = vunpack.c.h.b16 %v1249
    %v1557 = vunpack.c.l.b16 %v1250
    %v1558 = vunpack.c.h.b16 %v1250
    %v1559 = vunpack.c.l.b16 %v1251
    %v1560 = vunpack.c.h.b16 %v1251
    %v1561 = vunpack.c.l.b16 %v1252
    %v1562 = vunpack.c.h.b16 %v1252
    %v1563 = vunpack.c.l.b16 %v1253
    %v1564 = vunpack.c.h.b16 %v1253
    %v1565 = vunpack.c.l.b16 %v1254
    %v1566 = vunpack.c.h.b16 %v1254
    %v1567 = vunpack.c.l.b16 %v1255
    %v1568 = vunpack.c.h.b16 %v1255
    %v1569 = vunpack.c.l.b16 %v1256
    %v1570 = vunpack.c.h.b16 %v1256
    %v1571 = vunpack.c.l.b16 %v1257
    %v1572 = vunpack.c.h.b16 %v1257
    %v1573 = vunpack.c.l.b16 %v1258
    %v1574 = vunpack.c.h.b16 %v1258
    %v1575 = vunpack.c.l.b16 %v1259
    %v1576 = vunpack.c.h.b16 %v1259
    %v1577 = vunpack.c.l.b16 %v1260
    %v1578 = vunpack.c.h.b16 %v1260
    %v1579 = vunpack.c.l.b16 %v1261
    %v1580 = vunpack.c.h.b16 %v1261
    %v1581 = vunpack.c.l.b16 %v1262
    %v1582 = vunpack.c.h.b16 %v1262
    %v1583 = vunpack.c.l.b16 %v1263
    %v1584 = vunpack.c.h.b16 %v1263
    %v1585 = vunpack.c.l.b16 %v1264
    %v1586 = vunpack.c.h.b16 %v1264
    %v1587 = vunpack.c.l.b16 %v1265
    %v1588 = vunpack.c.h.b16 %v1265
    %v1589 = vunpack.c.l.b16 %v1266
    %v1590 = vunpack.c.h.b16 %v1266
    %v1591 = vunpack.c.l.b16 %v1267
    %v1592 = vunpack.c.h.b16 %v1267
    %v1593 = vunpack.c.l.b16 %v1268
    %v1594 = vunpack.c.h.b16 %v1268
    %v1595 = vunpack.c.l.b16 %v1269
    %v1596 = vunpack.c.h.b16 %v1269
    %v1597 = vunpack.c.l.b16 %v1270
    %v1598 = vunpack.c.h.b16 %v1270
    %v1599 = vunpack.c.l.b16 %v1271
    %v1600 = vunpack.c.h.b16 %v1271
    %v1601 = vunpack.c.l.b16 %v1272
    %v1602 = vunpack.c.h.b16 %v1272
    %v1603 = vunpack.c.l.b16 %v1273
    %v1604 = vunpack.c.h.b16 %v1273
    %v1605 = vpack.c.b16 %v1543, %v1541
    %v1606 = vpack.c.b16 %v1544, %v1542
    %v1607 = vpack.c.b16 %v1547, %v1545
    %v1608 = vpack.c.b16 %v1548, %v1546
    %v1609 = vpack.c.b16 %v1551, %v1549
    %v1610 = vpack.c.b16 %v1552, %v1550
    %v1611 = vpack.c.b16 %v1555, %v1553
    %v1612 = vpack.c.b16 %v1556, %v1554
    %v1613 = vpack.c.b16 %v1559, %v1557
    %v1614 = vpack.c.b16 %v1560, %v1558
    %v1615 = vpack.c.b16 %v1563, %v1561
    %v1616 = vpack.c.b16 %v1564, %v1562
    %v1617 = vpack.c.b16 %v1567, %v1565
    %v1618 = vpack.c.b16 %v1568, %v1566
    %v1619 = vpack.c.b16 %v1571, %v1569
    %v1620 = vpack.c.b16 %v1572, %v1570
    %v1621 = vpack.c.b16 %v1575, %v1573
    %v1622 = vpack.c.b16 %v1576, %v1574
    %v1623 = vpack.c.b16 %v1579, %v1577
    %v1624 = vpack.c.b16 %v1580, %v1578
    %v1625 = vpack.c.b16 %v1583, %v1581
    %v1626 = vpack.c.b16 %v1584, %v1582
    %v1627 = vpack.c.b16 %v1587, %v1585
    %v1628 = vpack.c.b16 %v1588, %v1586
    %v1629 = vpack.c.b16 %v1591, %v1589
    %v1630 = vpack.c.b16 %v1592, %v1590
    %v1631 = vpack.c.b16 %v1595, %v1593
    %v1632 = vpack.c.b16 %v1596, %v1594
    %v1633 = vpack.c.b16 %v1599, %v1597
    %v1634 = vpack.c.b16 %v1600, %v1598
    %v1635 = vpack.c.b16 %v1603, %v1601
    %v1636 = vpack.c.b16 %v1604, %v1602
    %1669 = vmatprep.subr.bf16.mxu0 %v1606
    %1670 = vmatpush1.bf16.msra.mxu0 %v1605
    %1671 = vmatprep.subr.bf16.mxu0 %v1608
    %1672 = vmatpush1.bf16.msra.mxu0 %v1607
    %1673 = vmatprep.subr.bf16.mxu0 %v1610
    %1674 = vmatpush1.bf16.msra.mxu0 %v1609
    %1675 = vmatprep.subr.bf16.mxu0 %v1612
    %1676 = vmatpush1.bf16.msra.mxu0 %v1611
    %1677 = vmatprep.subr.bf16.mxu0 %v1614
    %1678 = vmatpush1.bf16.msra.mxu0 %v1613
    %1679 = vmatprep.subr.bf16.mxu0 %v1616
    %1680 = vmatpush1.bf16.msra.mxu0 %v1615
    %1681 = vmatprep.subr.bf16.mxu0 %v1618
    %1682 = vmatpush1.bf16.msra.mxu0 %v1617
    %1683 = vmatprep.subr.bf16.mxu0 %v1620
    %1684 = vmatpush1.bf16.msra.mxu0 %v1619
    %1685 = vmatprep.subr.bf16.mxu0 %v1622
    %1686 = vmatpush1.bf16.msra.mxu0 %v1621
    %1687 = vmatprep.subr.bf16.mxu0 %v1624
    %1688 = vmatpush1.bf16.msra.mxu0 %v1623
    %1689 = vmatprep.subr.bf16.mxu0 %v1626
    %1690 = vmatpush1.bf16.msra.mxu0 %v1625
    %1691 = vmatprep.subr.bf16.mxu0 %v1628
    %1692 = vmatpush1.bf16.msra.mxu0 %v1627
    %1693 = vmatprep.subr.bf16.mxu0 %v1630
    %1694 = vmatpush1.bf16.msra.mxu0 %v1629
    %1695 = vmatprep.subr.bf16.mxu0 %v1632
    %1696 = vmatpush1.bf16.msra.mxu0 %v1631
    %1697 = vmatprep.subr.bf16.mxu0 %v1634
    %1698 = vmatpush1.bf16.msra.mxu0 %v1633
    %1699 = vmatprep.subr.bf16.mxu0 %v1636
    %1700 = vmatpush1.bf16.msra.mxu0 %v1635
    %1701 = vmatprep.mubr.bf16.mxu0 %v1241
    %1702 = vmatmul.mubr.bf16.gmra.mrb[0].mxu0 %v1240
    %v1703 = vpop.f32.mrb[0].mxu0
    %v1704 = vadd.f32 %v1503, %v1703
    %v1705 = vpop.f32.mrb[0].mxu0
    %v1706 = vadd.f32 %v1505, %v1705
    %v1707 = vpop.f32.mrb[0].mxu0
    %v1708 = vpop.f32.mrb[0].mxu0
    %1709 = vdwg.mxu0
    %v1710 = vld [vmem:[%s8] sm:$0x3]
    %v1712 = vlaneseq
    %v1713 = vshrl.u32 %v1712, 7
    %v1714 = vsub.s32 0, %v1713
    %v1715 = vrot.slane %v1710, %v1714
    %v1716 = vlaneseq
    %v1717 = vshrl.u32 %v1716, 7
    %v1718 = vsub.s32 1, %v1717
    %v1719 = vrot.slane %v1710, %v1718
    %v1722 = vadd.f32 %v1704, %v1715
    %v1723 = vadd.f32 %v1706, %v1719
    %vm1724 = vcmp.gt.f32.partialorder %v1722, 0.0
    %vm1725 = vcmp.gt.f32.partialorder %v1723, 0.0
    %v1726 = vmul.f32 %v1722, 0.01
    %v1727 = vmul.f32 %v1723, 0.01
    %v1728 = vsel %vm1724, %v1722, %v1726
    %v1729 = vsel %vm1725, %v1723, %v1727
    %v1730 = vpack.c.bf16 %v1728, %v1728
    %v1731 = vpack.c.bf16 %v1729, %v1729
    %v1732 = vld [vmem:[#allocation13] sm:$0xff]
    %v1733 = vld [vmem:[#allocation13 + $0x8] sm:$0xff]
    %v1734 = vld [vmem:[#allocation13 + $0x10] sm:$0xff]
    %v1735 = vld [vmem:[#allocation13 + $0x18] sm:$0xff]
    %v1736 = vld [vmem:[#allocation13 + $0x20] sm:$0xff]
    %v1737 = vld [vmem:[#allocation13 + $0x28] sm:$0xff]
    %v1738 = vld [vmem:[#allocation13 + $0x30] sm:$0xff]
    %v1739 = vld [vmem:[#allocation13 + $0x38] sm:$0xff]
    %v1740 = vld [vmem:[#allocation13 + $0x40] sm:$0xff]
    %v1741 = vld [vmem:[#allocation13 + $0x48] sm:$0xff]
    %v1742 = vld [vmem:[#allocation13 + $0x50] sm:$0xff]
    %v1743 = vld [vmem:[#allocation13 + $0x58] sm:$0xff]
    %v1744 = vld [vmem:[#allocation13 + $0x60] sm:$0xff]
    %v1745 = vld [vmem:[#allocation13 + $0x68] sm:$0xff]
    %v1746 = vld [vmem:[#allocation13 + $0x70] sm:$0xff]
    %v1747 = vld [vmem:[#allocation13 + $0x78] sm:$0xff]
    %v1748 = vld [vmem:[#allocation13 + $0x80] sm:$0xff]
    %v1749 = vld [vmem:[#allocation13 + $0x88] sm:$0xff]
    %v1750 = vld [vmem:[#allocation13 + $0x90] sm:$0xff]
    %v1751 = vld [vmem:[#allocation13 + $0x98] sm:$0xff]
    %v1752 = vld [vmem:[#allocation13 + $0xa0] sm:$0xff]
    %v1753 = vld [vmem:[#allocation13 + $0xa8] sm:$0xff]
    %v1754 = vld [vmem:[#allocation13 + $0xb0] sm:$0xff]
    %v1755 = vld [vmem:[#allocation13 + $0xb8] sm:$0xff]
    %v1756 = vld [vmem:[#allocation13 + $0xc0] sm:$0xff]
    %v1757 = vld [vmem:[#allocation13 + $0xc8] sm:$0xff]
    %v1758 = vld [vmem:[#allocation13 + $0xd0] sm:$0xff]
    %v1759 = vld [vmem:[#allocation13 + $0xd8] sm:$0xff]
    %v1760 = vld [vmem:[#allocation13 + $0xe0] sm:$0xff]
    %v1761 = vld [vmem:[#allocation13 + $0xe8] sm:$0xff]
    %v1762 = vld [vmem:[#allocation13 + $0xf0] sm:$0xff]
    %v1763 = vld [vmem:[#allocation13 + $0xf8] sm:$0xff]
    %v1764 = vld [vmem:[%s10] sm:$0x3]
    %v1766 = vlaneseq
    %v1767 = vshrl.u32 %v1766, 7
    %v1768 = vsub.s32 0, %v1767
    %v1769 = vrot.slane %v1764, %v1768
    %v1770 = vlaneseq
    %v1771 = vshrl.u32 %v1770, 7
    %v1772 = vsub.s32 1, %v1771
    %v1773 = vrot.slane %v1764, %v1772
    %v1808 = vunpack.c.l.b16 %v1732
    %v1809 = vunpack.c.h.b16 %v1732
    %v1810 = vunpack.c.l.b16 %v1733
    %v1811 = vunpack.c.h.b16 %v1733
    %v1812 = vunpack.c.l.b16 %v1734
    %v1813 = vunpack.c.h.b16 %v1734
    %v1814 = vunpack.c.l.b16 %v1735
    %v1815 = vunpack.c.h.b16 %v1735
    %v1816 = vunpack.c.l.b16 %v1736
    %v1817 = vunpack.c.h.b16 %v1736
    %v1818 = vunpack.c.l.b16 %v1737
    %v1819 = vunpack.c.h.b16 %v1737
    %v1820 = vunpack.c.l.b16 %v1738
    %v1821 = vunpack.c.h.b16 %v1738
    %v1822 = vunpack.c.l.b16 %v1739
    %v1823 = vunpack.c.h.b16 %v1739
    %v1824 = vunpack.c.l.b16 %v1740
    %v1825 = vunpack.c.h.b16 %v1740
    %v1826 = vunpack.c.l.b16 %v1741
    %v1827 = vunpack.c.h.b16 %v1741
    %v1828 = vunpack.c.l.b16 %v1742
    %v1829 = vunpack.c.h.b16 %v1742
    %v1830 = vunpack.c.l.b16 %v1743
    %v1831 = vunpack.c.h.b16 %v1743
    %v1832 = vunpack.c.l.b16 %v1744
    %v1833 = vunpack.c.h.b16 %v1744
    %v1834 = vunpack.c.l.b16 %v1745
    %v1835 = vunpack.c.h.b16 %v1745
    %v1836 = vunpack.c.l.b16 %v1746
    %v1837 = vunpack.c.h.b16 %v1746
    %v1838 = vunpack.c.l.b16 %v1747
    %v1839 = vunpack.c.h.b16 %v1747
    %v1840 = vunpack.c.l.b16 %v1748
    %v1841 = vunpack.c.h.b16 %v1748
    %v1842 = vunpack.c.l.b16 %v1749
    %v1843 = vunpack.c.h.b16 %v1749
    %v1844 = vunpack.c.l.b16 %v1750
    %v1845 = vunpack.c.h.b16 %v1750
    %v1846 = vunpack.c.l.b16 %v1751
    %v1847 = vunpack.c.h.b16 %v1751
    %v1848 = vunpack.c.l.b16 %v1752
    %v1849 = vunpack.c.h.b16 %v1752
    %v1850 = vunpack.c.l.b16 %v1753
    %v1851 = vunpack.c.h.b16 %v1753
    %v1852 = vunpack.c.l.b16 %v1754
    %v1853 = vunpack.c.h.b16 %v1754
    %v1854 = vunpack.c.l.b16 %v1755
    %v1855 = vunpack.c.h.b16 %v1755
    %v1856 = vunpack.c.l.b16 %v1756
    %v1857 = vunpack.c.h.b16 %v1756
    %v1858 = vunpack.c.l.b16 %v1757
    %v1859 = vunpack.c.h.b16 %v1757
    %v1860 = vunpack.c.l.b16 %v1758
    %v1861 = vunpack.c.h.b16 %v1758
    %v1862 = vunpack.c.l.b16 %v1759
    %v1863 = vunpack.c.h.b16 %v1759
    %v1864 = vunpack.c.l.b16 %v1760
    %v1865 = vunpack.c.h.b16 %v1760
    %v1866 = vunpack.c.l.b16 %v1761
    %v1867 = vunpack.c.h.b16 %v1761
    %v1868 = vunpack.c.l.b16 %v1762
    %v1869 = vunpack.c.h.b16 %v1762
    %v1870 = vunpack.c.l.b16 %v1763
    %v1871 = vunpack.c.h.b16 %v1763
    %v1872 = vpack.c.b16 %v1810, %v1808
    %v1873 = vpack.c.b16 %v1811, %v1809
    %v1874 = vpack.c.b16 %v1814, %v1812
    %v1875 = vpack.c.b16 %v1815, %v1813
    %v1876 = vpack.c.b16 %v1818, %v1816
    %v1877 = vpack.c.b16 %v1819, %v1817
    %v1878 = vpack.c.b16 %v1822, %v1820
    %v1879 = vpack.c.b16 %v1823, %v1821
    %v1880 = vpack.c.b16 %v1826, %v1824
    %v1881 = vpack.c.b16 %v1827, %v1825
    %v1882 = vpack.c.b16 %v1830, %v1828
    %v1883 = vpack.c.b16 %v1831, %v1829
    %v1884 = vpack.c.b16 %v1834, %v1832
    %v1885 = vpack.c.b16 %v1835, %v1833
    %v1886 = vpack.c.b16 %v1838, %v1836
    %v1887 = vpack.c.b16 %v1839, %v1837
    %v1888 = vpack.c.b16 %v1842, %v1840
    %v1889 = vpack.c.b16 %v1843, %v1841
    %v1890 = vpack.c.b16 %v1846, %v1844
    %v1891 = vpack.c.b16 %v1847, %v1845
    %v1892 = vpack.c.b16 %v1850, %v1848
    %v1893 = vpack.c.b16 %v1851, %v1849
    %v1894 = vpack.c.b16 %v1854, %v1852
    %v1895 = vpack.c.b16 %v1855, %v1853
    %v1896 = vpack.c.b16 %v1858, %v1856
    %v1897 = vpack.c.b16 %v1859, %v1857
    %v1898 = vpack.c.b16 %v1862, %v1860
    %v1899 = vpack.c.b16 %v1863, %v1861
    %v1900 = vpack.c.b16 %v1866, %v1864
    %v1901 = vpack.c.b16 %v1867, %v1865
    %v1902 = vpack.c.b16 %v1870, %v1868
    %v1903 = vpack.c.b16 %v1871, %v1869
    %1936 = vmatprep.subr.bf16.mxu0 %v1873
    %1937 = vmatpush1.bf16.msra.mxu0 %v1872
    %1938 = vmatprep.subr.bf16.mxu0 %v1875
    %1939 = vmatpush1.bf16.msra.mxu0 %v1874
    %1940 = vmatprep.subr.bf16.mxu0 %v1877
    %1941 = vmatpush1.bf16.msra.mxu0 %v1876
    %1942 = vmatprep.subr.bf16.mxu0 %v1879
    %1943 = vmatpush1.bf16.msra.mxu0 %v1878
    %1944 = vmatprep.subr.bf16.mxu0 %v1881
    %1945 = vmatpush1.bf16.msra.mxu0 %v1880
    %1946 = vmatprep.subr.bf16.mxu0 %v1883
    %1947 = vmatpush1.bf16.msra.mxu0 %v1882
    %1948 = vmatprep.subr.bf16.mxu0 %v1885
    %1949 = vmatpush1.bf16.msra.mxu0 %v1884
    %1950 = vmatprep.subr.bf16.mxu0 %v1887
    %1951 = vmatpush1.bf16.msra.mxu0 %v1886
    %1952 = vmatprep.subr.bf16.mxu0 %v1889
    %1953 = vmatpush1.bf16.msra.mxu0 %v1888
    %1954 = vmatprep.subr.bf16.mxu0 %v1891
    %1955 = vmatpush1.bf16.msra.mxu0 %v1890
    %1956 = vmatprep.subr.bf16.mxu0 %v1893
    %1957 = vmatpush1.bf16.msra.mxu0 %v1892
    %1958 = vmatprep.subr.bf16.mxu0 %v1895
    %1959 = vmatpush1.bf16.msra.mxu0 %v1894
    %1960 = vmatprep.subr.bf16.mxu0 %v1897
    %1961 = vmatpush1.bf16.msra.mxu0 %v1896
    %1962 = vmatprep.subr.bf16.mxu0 %v1899
    %1963 = vmatpush1.bf16.msra.mxu0 %v1898
    %1964 = vmatprep.subr.bf16.mxu0 %v1901
    %1965 = vmatpush1.bf16.msra.mxu0 %v1900
    %1966 = vmatprep.subr.bf16.mxu0 %v1903
    %1967 = vmatpush1.bf16.msra.mxu0 %v1902
    %1968 = vmatprep.mubr.bf16.mxu0 %v1731
    %1969 = vmatmul.mubr.bf16.gmra.mrb[0].mxu0 %v1730
    %v1970 = vpop.f32.mrb[0].mxu0
    %v1971 = vadd.f32 %v1769, %v1970
    %v1972 = vpop.f32.mrb[0].mxu0
    %v1973 = vadd.f32 %v1773, %v1972
    %v1974 = vpop.f32.mrb[0].mxu0
    %v1975 = vpop.f32.mrb[0].mxu0
    %1976 = vdwg.mxu0
    %v1977 = vsub.f32 %v238, %v232
    %v1978 = vsub.f32 %v239, %v233
    %v1979 = vsub.f32 %v240, %v234
    %v1980 = vsub.f32 %v241, %v235
    %v1981 = vsub.f32 %v242, %v236
    %v1982 = vsub.f32 %v243, %v237
    %v1983 = vpack.c.bf16 %v1977, %v1977
    %v1984 = vpack.c.bf16 %v1978, %v1978
    %v1985 = vpack.c.bf16 %v1979, %v1979
    %v1986 = vpack.c.bf16 %v1980, %v1980
    %v1987 = vpack.c.bf16 %v1981, %v1981
    %v1988 = vpack.c.bf16 %v1982, %v1982
    %v1989 = vld [vmem:[#allocation14] sm:$0xff]
    %v1990 = vld [vmem:[#allocation14 + $0x8] sm:$0xff]
    %v1991 = vld [vmem:[#allocation14 + $0x10] sm:$0xff]
    %v1992 = vld [vmem:[#allocation14 + $0x18] sm:$0xff]
    %v1993 = vld [vmem:[#allocation14 + $0x20] sm:$0xff]
    %v1994 = vld [vmem:[#allocation14 + $0x28] sm:$0xff]
    %v1995 = vld [vmem:[#allocation14 + $0x30] sm:$0xff]
    %v1996 = vld [vmem:[#allocation14 + $0x38] sm:$0xff]
    %v1997 = vld [vmem:[#allocation14 + $0x40] sm:$0xff]
    %v1998 = vld [vmem:[#allocation14 + $0x48] sm:$0xff]
    %v1999 = vld [vmem:[#allocation14 + $0x50] sm:$0xff]
    %v2000 = vld [vmem:[#allocation14 + $0x58] sm:$0xff]
    %v2001 = vld [vmem:[#allocation14 + $0x60] sm:$0xff]
    %v2002 = vld [vmem:[#allocation14 + $0x68] sm:$0xff]
    %v2003 = vld [vmem:[#allocation14 + $0x70] sm:$0xff]
    %v2004 = vld [vmem:[#allocation14 + $0x78] sm:$0xff]
    %v2005 = vld [vmem:[#allocation14 + $0x80] sm:$0xff]
    %v2006 = vld [vmem:[#allocation14 + $0x88] sm:$0xff]
    %v2007 = vld [vmem:[#allocation14 + $0x90] sm:$0xff]
    %v2008 = vld [vmem:[#allocation14 + $0x98] sm:$0xff]
    %v2009 = vld [vmem:[#allocation14 + $0xa0] sm:$0xff]
    %v2010 = vld [vmem:[#allocation14 + $0xa8] sm:$0xff]
    %v2011 = vld [vmem:[#allocation14 + $0xb0] sm:$0xff]
    %v2012 = vld [vmem:[#allocation14 + $0xb8] sm:$0xff]
    %v2013 = vld [vmem:[#allocation14 + $0xc0] sm:$0xff]
    %v2014 = vld [vmem:[#allocation14 + $0xc8] sm:$0xff]
    %v2015 = vld [vmem:[#allocation14 + $0xd0] sm:$0xff]
    %v2016 = vld [vmem:[#allocation14 + $0xd8] sm:$0xff]
    %v2017 = vld [vmem:[#allocation14 + $0xe0] sm:$0xff]
    %v2018 = vld [vmem:[#allocation14 + $0xe8] sm:$0xff]
    %v2019 = vld [vmem:[#allocation14 + $0xf0] sm:$0xff]
    %v2020 = vld [vmem:[#allocation14 + $0xf8] sm:$0xff]
    %v2021 = vld [vmem:[#allocation14 + $0x100] sm:$0xff]
    %v2022 = vld [vmem:[#allocation14 + $0x108] sm:$0xff]
    %v2023 = vld [vmem:[#allocation14 + $0x110] sm:$0xff]
    %v2024 = vld [vmem:[#allocation14 + $0x118] sm:$0xff]
    %v2025 = vld [vmem:[#allocation14 + $0x120] sm:$0xff]
    %v2026 = vld [vmem:[#allocation14 + $0x128] sm:$0xff]
    %v2027 = vld [vmem:[#allocation14 + $0x130] sm:$0xff]
    %v2028 = vld [vmem:[#allocation14 + $0x138] sm:$0xff]
    %v2029 = vld [vmem:[#allocation14 + $0x140] sm:$0xff]
    %v2030 = vld [vmem:[#allocation14 + $0x148] sm:$0xff]
    %v2031 = vld [vmem:[#allocation14 + $0x150] sm:$0xff]
    %v2032 = vld [vmem:[#allocation14 + $0x158] sm:$0xff]
    %v2033 = vld [vmem:[#allocation14 + $0x160] sm:$0xff]
    %v2034 = vld [vmem:[#allocation14 + $0x168] sm:$0xff]
    %v2035 = vld [vmem:[#allocation14 + $0x170] sm:$0xff]
    %v2036 = vld [vmem:[#allocation14 + $0x178] sm:$0xff]
    %v2037 = vld [vmem:[#allocation14 + $0x180] sm:$0xff]
    %v2038 = vld [vmem:[#allocation14 + $0x188] sm:$0xff]
    %v2039 = vld [vmem:[#allocation14 + $0x190] sm:$0xff]
    %v2040 = vld [vmem:[#allocation14 + $0x198] sm:$0xff]
    %v2041 = vld [vmem:[#allocation14 + $0x1a0] sm:$0xff]
    %v2042 = vld [vmem:[#allocation14 + $0x1a8] sm:$0xff]
    %v2043 = vld [vmem:[#allocation14 + $0x1b0] sm:$0xff]
    %v2044 = vld [vmem:[#allocation14 + $0x1b8] sm:$0xff]
    %v2045 = vld [vmem:[#allocation14 + $0x1c0] sm:$0xff]
    %v2046 = vld [vmem:[#allocation14 + $0x1c8] sm:$0xff]
    %v2047 = vld [vmem:[#allocation14 + $0x1d0] sm:$0xff]
    %v2048 = vld [vmem:[#allocation14 + $0x1d8] sm:$0xff]
    %v2049 = vld [vmem:[#allocation14 + $0x1e0] sm:$0xff]
    %v2050 = vld [vmem:[#allocation14 + $0x1e8] sm:$0xff]
    %v2051 = vld [vmem:[#allocation14 + $0x1f0] sm:$0xff]
    %v2052 = vld [vmem:[#allocation14 + $0x1f8] sm:$0xff]
    %v2053 = vld [vmem:[#allocation14 + $0x200] sm:$0xff]
    %v2054 = vld [vmem:[#allocation14 + $0x208] sm:$0xff]
    %v2055 = vld [vmem:[#allocation14 + $0x210] sm:$0xff]
    %v2056 = vld [vmem:[#allocation14 + $0x218] sm:$0xff]
    %v2057 = vld [vmem:[#allocation14 + $0x220] sm:$0xff]
    %v2058 = vld [vmem:[#allocation14 + $0x228] sm:$0xff]
    %v2059 = vld [vmem:[#allocation14 + $0x230] sm:$0xff]
    %v2060 = vld [vmem:[#allocation14 + $0x238] sm:$0xff]
    %v2061 = vld [vmem:[#allocation14 + $0x240] sm:$0xff]
    %v2062 = vld [vmem:[#allocation14 + $0x248] sm:$0xff]
    %v2063 = vld [vmem:[#allocation14 + $0x250] sm:$0xff]
    %v2064 = vld [vmem:[#allocation14 + $0x258] sm:$0xff]
    %v2065 = vld [vmem:[#allocation14 + $0x260] sm:$0xff]
    %v2066 = vld [vmem:[#allocation14 + $0x268] sm:$0xff]
    %v2067 = vld [vmem:[#allocation14 + $0x270] sm:$0xff]
    %v2068 = vld [vmem:[#allocation14 + $0x278] sm:$0xff]
    %v2069 = vld [vmem:[#allocation14 + $0x280] sm:$0xff]
    %v2070 = vld [vmem:[#allocation14 + $0x288] sm:$0xff]
    %v2071 = vld [vmem:[#allocation14 + $0x290] sm:$0xff]
    %v2072 = vld [vmem:[#allocation14 + $0x298] sm:$0xff]
    %v2073 = vld [vmem:[#allocation14 + $0x2a0] sm:$0xff]
    %v2074 = vld [vmem:[#allocation14 + $0x2a8] sm:$0xff]
    %v2075 = vld [vmem:[#allocation14 + $0x2b0] sm:$0xff]
    %v2076 = vld [vmem:[#allocation14 + $0x2b8] sm:$0xff]
    %v2077 = vld [vmem:[#allocation14 + $0x2c0] sm:$0xff]
    %v2078 = vld [vmem:[#allocation14 + $0x2c8] sm:$0xff]
    %v2079 = vld [vmem:[#allocation14 + $0x2d0] sm:$0xff]
    %v2080 = vld [vmem:[#allocation14 + $0x2d8] sm:$0xff]
    %v2081 = vld [vmem:[#allocation14 + $0x2e0] sm:$0xff]
    %v2082 = vld [vmem:[#allocation14 + $0x2e8] sm:$0xff]
    %v2083 = vld [vmem:[#allocation14 + $0x2f0] sm:$0xff]
    %v2084 = vld [vmem:[#allocation14 + $0x2f8] sm:$0xff]
    %v2085 = vld [vmem:[%s12] sm:$0x3]
    %v2087 = vlaneseq
    %v2088 = vshrl.u32 %v2087, 7
    %v2089 = vsub.s32 0, %v2088
    %v2090 = vrot.slane %v2085, %v2089
    %v2091 = vlaneseq
    %v2092 = vshrl.u32 %v2091, 7
    %v2093 = vsub.s32 1, %v2092
    %v2094 = vrot.slane %v2085, %v2093
    %v2193 = vunpack.c.l.b16 %v1989
    %v2194 = vunpack.c.h.b16 %v1989
    %v2195 = vunpack.c.l.b16 %v1990
    %v2196 = vunpack.c.h.b16 %v1990
    %v2197 = vunpack.c.l.b16 %v1991
    %v2198 = vunpack.c.h.b16 %v1991
    %v2199 = vunpack.c.l.b16 %v1992
    %v2200 = vunpack.c.h.b16 %v1992
    %v2201 = vunpack.c.l.b16 %v1993
    %v2202 = vunpack.c.h.b16 %v1993
    %v2203 = vunpack.c.l.b16 %v1994
    %v2204 = vunpack.c.h.b16 %v1994
    %v2205 = vunpack.c.l.b16 %v1995
    %v2206 = vunpack.c.h.b16 %v1995
    %v2207 = vunpack.c.l.b16 %v1996
    %v2208 = vunpack.c.h.b16 %v1996
    %v2209 = vunpack.c.l.b16 %v1997
    %v2210 = vunpack.c.h.b16 %v1997
    %v2211 = vunpack.c.l.b16 %v1998
    %v2212 = vunpack.c.h.b16 %v1998
    %v2213 = vunpack.c.l.b16 %v1999
    %v2214 = vunpack.c.h.b16 %v1999
    %v2215 = vunpack.c.l.b16 %v2000
    %v2216 = vunpack.c.h.b16 %v2000
    %v2217 = vunpack.c.l.b16 %v2001
    %v2218 = vunpack.c.h.b16 %v2001
    %v2219 = vunpack.c.l.b16 %v2002
    %v2220 = vunpack.c.h.b16 %v2002
    %v2221 = vunpack.c.l.b16 %v2003
    %v2222 = vunpack.c.h.b16 %v2003
    %v2223 = vunpack.c.l.b16 %v2004
    %v2224 = vunpack.c.h.b16 %v2004
    %v2225 = vunpack.c.l.b16 %v2005
    %v2226 = vunpack.c.h.b16 %v2005
    %v2227 = vunpack.c.l.b16 %v2006
    %v2228 = vunpack.c.h.b16 %v2006
    %v2229 = vunpack.c.l.b16 %v2007
    %v2230 = vunpack.c.h.b16 %v2007
    %v2231 = vunpack.c.l.b16 %v2008
    %v2232 = vunpack.c.h.b16 %v2008
    %v2233 = vunpack.c.l.b16 %v2009
    %v2234 = vunpack.c.h.b16 %v2009
    %v2235 = vunpack.c.l.b16 %v2010
    %v2236 = vunpack.c.h.b16 %v2010
    %v2237 = vunpack.c.l.b16 %v2011
    %v2238 = vunpack.c.h.b16 %v2011
    %v2239 = vunpack.c.l.b16 %v2012
    %v2240 = vunpack.c.h.b16 %v2012
    %v2241 = vunpack.c.l.b16 %v2013
    %v2242 = vunpack.c.h.b16 %v2013
    %v2243 = vunpack.c.l.b16 %v2014
    %v2244 = vunpack.c.h.b16 %v2014
    %v2245 = vunpack.c.l.b16 %v2015
    %v2246 = vunpack.c.h.b16 %v2015
    %v2247 = vunpack.c.l.b16 %v2016
    %v2248 = vunpack.c.h.b16 %v2016
    %v2249 = vunpack.c.l.b16 %v2017
    %v2250 = vunpack.c.h.b16 %v2017
    %v2251 = vunpack.c.l.b16 %v2018
    %v2252 = vunpack.c.h.b16 %v2018
    %v2253 = vunpack.c.l.b16 %v2019
    %v2254 = vunpack.c.h.b16 %v2019
    %v2255 = vunpack.c.l.b16 %v2020
    %v2256 = vunpack.c.h.b16 %v2020
    %v2257 = vunpack.c.l.b16 %v2021
    %v2258 = vunpack.c.h.b16 %v2021
    %v2259 = vunpack.c.l.b16 %v2022
    %v2260 = vunpack.c.h.b16 %v2022
    %v2261 = vunpack.c.l.b16 %v2023
    %v2262 = vunpack.c.h.b16 %v2023
    %v2263 = vunpack.c.l.b16 %v2024
    %v2264 = vunpack.c.h.b16 %v2024
    %v2265 = vunpack.c.l.b16 %v2025
    %v2266 = vunpack.c.h.b16 %v2025
    %v2267 = vunpack.c.l.b16 %v2026
    %v2268 = vunpack.c.h.b16 %v2026
    %v2269 = vunpack.c.l.b16 %v2027
    %v2270 = vunpack.c.h.b16 %v2027
    %v2271 = vunpack.c.l.b16 %v2028
    %v2272 = vunpack.c.h.b16 %v2028
    %v2273 = vunpack.c.l.b16 %v2029
    %v2274 = vunpack.c.h.b16 %v2029
    %v2275 = vunpack.c.l.b16 %v2030
    %v2276 = vunpack.c.h.b16 %v2030
    %v2277 = vunpack.c.l.b16 %v2031
    %v2278 = vunpack.c.h.b16 %v2031
    %v2279 = vunpack.c.l.b16 %v2032
    %v2280 = vunpack.c.h.b16 %v2032
    %v2281 = vunpack.c.l.b16 %v2033
    %v2282 = vunpack.c.h.b16 %v2033
    %v2283 = vunpack.c.l.b16 %v2034
    %v2284 = vunpack.c.h.b16 %v2034
    %v2285 = vunpack.c.l.b16 %v2035
    %v2286 = vunpack.c.h.b16 %v2035
    %v2287 = vunpack.c.l.b16 %v2036
    %v2288 = vunpack.c.h.b16 %v2036
    %v2289 = vunpack.c.l.b16 %v2037
    %v2290 = vunpack.c.h.b16 %v2037
    %v2291 = vunpack.c.l.b16 %v2038
    %v2292 = vunpack.c.h.b16 %v2038
    %v2293 = vunpack.c.l.b16 %v2039
    %v2294 = vunpack.c.h.b16 %v2039
    %v2295 = vunpack.c.l.b16 %v2040
    %v2296 = vunpack.c.h.b16 %v2040
    %v2297 = vunpack.c.l.b16 %v2041
    %v2298 = vunpack.c.h.b16 %v2041
    %v2299 = vunpack.c.l.b16 %v2042
    %v2300 = vunpack.c.h.b16 %v2042
    %v2301 = vunpack.c.l.b16 %v2043
    %v2302 = vunpack.c.h.b16 %v2043
    %v2303 = vunpack.c.l.b16 %v2044
    %v2304 = vunpack.c.h.b16 %v2044
    %v2305 = vunpack.c.l.b16 %v2045
    %v2306 = vunpack.c.h.b16 %v2045
    %v2307 = vunpack.c.l.b16 %v2046
    %v2308 = vunpack.c.h.b16 %v2046
    %v2309 = vunpack.c.l.b16 %v2047
    %v2310 = vunpack.c.h.b16 %v2047
    %v2311 = vunpack.c.l.b16 %v2048
    %v2312 = vunpack.c.h.b16 %v2048
    %v2313 = vunpack.c.l.b16 %v2049
    %v2314 = vunpack.c.h.b16 %v2049
    %v2315 = vunpack.c.l.b16 %v2050
    %v2316 = vunpack.c.h.b16 %v2050
    %v2317 = vunpack.c.l.b16 %v2051
    %v2318 = vunpack.c.h.b16 %v2051
    %v2319 = vunpack.c.l.b16 %v2052
    %v2320 = vunpack.c.h.b16 %v2052
    %v2321 = vunpack.c.l.b16 %v2053
    %v2322 = vunpack.c.h.b16 %v2053
    %v2323 = vunpack.c.l.b16 %v2054
    %v2324 = vunpack.c.h.b16 %v2054
    %v2325 = vunpack.c.l.b16 %v2055
    %v2326 = vunpack.c.h.b16 %v2055
    %v2327 = vunpack.c.l.b16 %v2056
    %v2328 = vunpack.c.h.b16 %v2056
    %v2329 = vunpack.c.l.b16 %v2057
    %v2330 = vunpack.c.h.b16 %v2057
    %v2331 = vunpack.c.l.b16 %v2058
    %v2332 = vunpack.c.h.b16 %v2058
    %v2333 = vunpack.c.l.b16 %v2059
    %v2334 = vunpack.c.h.b16 %v2059
    %v2335 = vunpack.c.l.b16 %v2060
    %v2336 = vunpack.c.h.b16 %v2060
    %v2337 = vunpack.c.l.b16 %v2061
    %v2338 = vunpack.c.h.b16 %v2061
    %v2339 = vunpack.c.l.b16 %v2062
    %v2340 = vunpack.c.h.b16 %v2062
    %v2341 = vunpack.c.l.b16 %v2063
    %v2342 = vunpack.c.h.b16 %v2063
    %v2343 = vunpack.c.l.b16 %v2064
    %v2344 = vunpack.c.h.b16 %v2064
    %v2345 = vunpack.c.l.b16 %v2065
    %v2346 = vunpack.c.h.b16 %v2065
    %v2347 = vunpack.c.l.b16 %v2066
    %v2348 = vunpack.c.h.b16 %v2066
    %v2349 = vunpack.c.l.b16 %v2067
    %v2350 = vunpack.c.h.b16 %v2067
    %v2351 = vunpack.c.l.b16 %v2068
    %v2352 = vunpack.c.h.b16 %v2068
    %v2353 = vunpack.c.l.b16 %v2069
    %v2354 = vunpack.c.h.b16 %v2069
    %v2355 = vunpack.c.l.b16 %v2070
    %v2356 = vunpack.c.h.b16 %v2070
    %v2357 = vunpack.c.l.b16 %v2071
    %v2358 = vunpack.c.h.b16 %v2071
    %v2359 = vunpack.c.l.b16 %v2072
    %v2360 = vunpack.c.h.b16 %v2072
    %v2361 = vunpack.c.l.b16 %v2073
    %v2362 = vunpack.c.h.b16 %v2073
    %v2363 = vunpack.c.l.b16 %v2074
    %v2364 = vunpack.c.h.b16 %v2074
    %v2365 = vunpack.c.l.b16 %v2075
    %v2366 = vunpack.c.h.b16 %v2075
    %v2367 = vunpack.c.l.b16 %v2076
    %v2368 = vunpack.c.h.b16 %v2076
    %v2369 = vunpack.c.l.b16 %v2077
    %v2370 = vunpack.c.h.b16 %v2077
    %v2371 = vunpack.c.l.b16 %v2078
    %v2372 = vunpack.c.h.b16 %v2078
    %v2373 = vunpack.c.l.b16 %v2079
    %v2374 = vunpack.c.h.b16 %v2079
    %v2375 = vunpack.c.l.b16 %v2080
    %v2376 = vunpack.c.h.b16 %v2080
    %v2377 = vunpack.c.l.b16 %v2081
    %v2378 = vunpack.c.h.b16 %v2081
    %v2379 = vunpack.c.l.b16 %v2082
    %v2380 = vunpack.c.h.b16 %v2082
    %v2381 = vunpack.c.l.b16 %v2083
    %v2382 = vunpack.c.h.b16 %v2083
    %v2383 = vunpack.c.l.b16 %v2084
    %v2384 = vunpack.c.h.b16 %v2084
    %v2385 = vpack.c.b16 %v2195, %v2193
    %v2386 = vpack.c.b16 %v2196, %v2194
    %v2387 = vpack.c.b16 %v2199, %v2197
    %v2388 = vpack.c.b16 %v2200, %v2198
    %v2389 = vpack.c.b16 %v2203, %v2201
    %v2390 = vpack.c.b16 %v2204, %v2202
    %v2391 = vpack.c.b16 %v2207, %v2205
    %v2392 = vpack.c.b16 %v2208, %v2206
    %v2393 = vpack.c.b16 %v2211, %v2209
    %v2394 = vpack.c.b16 %v2212, %v2210
    %v2395 = vpack.c.b16 %v2215, %v2213
    %v2396 = vpack.c.b16 %v2216, %v2214
    %v2397 = vpack.c.b16 %v2219, %v2217
    %v2398 = vpack.c.b16 %v2220, %v2218
    %v2399 = vpack.c.b16 %v2223, %v2221
    %v2400 = vpack.c.b16 %v2224, %v2222
    %v2401 = vpack.c.b16 %v2227, %v2225
    %v2402 = vpack.c.b16 %v2228, %v2226
    %v2403 = vpack.c.b16 %v2231, %v2229
    %v2404 = vpack.c.b16 %v2232, %v2230
    %v2405 = vpack.c.b16 %v2235, %v2233
    %v2406 = vpack.c.b16 %v2236, %v2234
    %v2407 = vpack.c.b16 %v2239, %v2237
    %v2408 = vpack.c.b16 %v2240, %v2238
    %v2409 = vpack.c.b16 %v2243, %v2241
    %v2410 = vpack.c.b16 %v2244, %v2242
    %v2411 = vpack.c.b16 %v2247, %v2245
    %v2412 = vpack.c.b16 %v2248, %v2246
    %v2413 = vpack.c.b16 %v2251, %v2249
    %v2414 = vpack.c.b16 %v2252, %v2250
    %v2415 = vpack.c.b16 %v2255, %v2253
    %v2416 = vpack.c.b16 %v2256, %v2254
    %v2417 = vpack.c.b16 %v2259, %v2257
    %v2418 = vpack.c.b16 %v2260, %v2258
    %v2419 = vpack.c.b16 %v2263, %v2261
    %v2420 = vpack.c.b16 %v2264, %v2262
    %v2421 = vpack.c.b16 %v2267, %v2265
    %v2422 = vpack.c.b16 %v2268, %v2266
    %v2423 = vpack.c.b16 %v2271, %v2269
    %v2424 = vpack.c.b16 %v2272, %v2270
    %v2425 = vpack.c.b16 %v2275, %v2273
    %v2426 = vpack.c.b16 %v2276, %v2274
    %v2427 = vpack.c.b16 %v2279, %v2277
    %v2428 = vpack.c.b16 %v2280, %v2278
    %v2429 = vpack.c.b16 %v2283, %v2281
    %v2430 = vpack.c.b16 %v2284, %v2282
    %v2431 = vpack.c.b16 %v2287, %v2285
    %v2432 = vpack.c.b16 %v2288, %v2286
    %v2433 = vpack.c.b16 %v2291, %v2289
    %v2434 = vpack.c.b16 %v2292, %v2290
    %v2435 = vpack.c.b16 %v2295, %v2293
    %v2436 = vpack.c.b16 %v2296, %v2294
    %v2437 = vpack.c.b16 %v2299, %v2297
    %v2438 = vpack.c.b16 %v2300, %v2298
    %v2439 = vpack.c.b16 %v2303, %v2301
    %v2440 = vpack.c.b16 %v2304, %v2302
    %v2441 = vpack.c.b16 %v2307, %v2305
    %v2442 = vpack.c.b16 %v2308, %v2306
    %v2443 = vpack.c.b16 %v2311, %v2309
    %v2444 = vpack.c.b16 %v2312, %v2310
    %v2445 = vpack.c.b16 %v2315, %v2313
    %v2446 = vpack.c.b16 %v2316, %v2314
    %v2447 = vpack.c.b16 %v2319, %v2317
    %v2448 = vpack.c.b16 %v2320, %v2318
    %v2449 = vpack.c.b16 %v2323, %v2321
    %v2450 = vpack.c.b16 %v2324, %v2322
    %v2451 = vpack.c.b16 %v2327, %v2325
    %v2452 = vpack.c.b16 %v2328, %v2326
    %v2453 = vpack.c.b16 %v2331, %v2329
    %v2454 = vpack.c.b16 %v2332, %v2330
    %v2455 = vpack.c.b16 %v2335, %v2333
    %v2456 = vpack.c.b16 %v2336, %v2334
    %v2457 = vpack.c.b16 %v2339, %v2337
    %v2458 = vpack.c.b16 %v2340, %v2338
    %v2459 = vpack.c.b16 %v2343, %v2341
    %v2460 = vpack.c.b16 %v2344, %v2342
    %v2461 = vpack.c.b16 %v2347, %v2345
    %v2462 = vpack.c.b16 %v2348, %v2346
    %v2463 = vpack.c.b16 %v2351, %v2349
    %v2464 = vpack.c.b16 %v2352, %v2350
    %v2465 = vpack.c.b16 %v2355, %v2353
    %v2466 = vpack.c.b16 %v2356, %v2354
    %v2467 = vpack.c.b16 %v2359, %v2357
    %v2468 = vpack.c.b16 %v2360, %v2358
    %v2469 = vpack.c.b16 %v2363, %v2361
    %v2470 = vpack.c.b16 %v2364, %v2362
    %v2471 = vpack.c.b16 %v2367, %v2365
    %v2472 = vpack.c.b16 %v2368, %v2366
    %v2473 = vpack.c.b16 %v2371, %v2369
    %v2474 = vpack.c.b16 %v2372, %v2370
    %v2475 = vpack.c.b16 %v2375, %v2373
    %v2476 = vpack.c.b16 %v2376, %v2374
    %v2477 = vpack.c.b16 %v2379, %v2377
    %v2478 = vpack.c.b16 %v2380, %v2378
    %v2479 = vpack.c.b16 %v2383, %v2381
    %v2480 = vpack.c.b16 %v2384, %v2382
    %2577 = vmatprep.subr.bf16.mxu0 %v2386
    %2578 = vmatpush1.bf16.msra.mxu0 %v2385
    %2579 = vmatprep.subr.bf16.mxu0 %v2388
    %2580 = vmatpush1.bf16.msra.mxu0 %v2387
    %2581 = vmatprep.subr.bf16.mxu0 %v2390
    %2582 = vmatpush1.bf16.msra.mxu0 %v2389
    %2583 = vmatprep.subr.bf16.mxu0 %v2392
    %2584 = vmatpush1.bf16.msra.mxu0 %v2391
    %2585 = vmatprep.subr.bf16.mxu0 %v2394
    %2586 = vmatpush1.bf16.msra.mxu0 %v2393
    %2587 = vmatprep.subr.bf16.mxu0 %v2396
    %2588 = vmatpush1.bf16.msra.mxu0 %v2395
    %2589 = vmatprep.subr.bf16.mxu0 %v2398
    %2590 = vmatpush1.bf16.msra.mxu0 %v2397
    %2591 = vmatprep.subr.bf16.mxu0 %v2400
    %2592 = vmatpush1.bf16.msra.mxu0 %v2399
    %2593 = vmatprep.subr.bf16.mxu0 %v2402
    %2594 = vmatpush1.bf16.msra.mxu0 %v2401
    %2595 = vmatprep.subr.bf16.mxu0 %v2404
    %2596 = vmatpush1.bf16.msra.mxu0 %v2403
    %2597 = vmatprep.subr.bf16.mxu0 %v2406
    %2598 = vmatpush1.bf16.msra.mxu0 %v2405
    %2599 = vmatprep.subr.bf16.mxu0 %v2408
    %2600 = vmatpush1.bf16.msra.mxu0 %v2407
    %2601 = vmatprep.subr.bf16.mxu0 %v2410
    %2602 = vmatpush1.bf16.msra.mxu0 %v2409
    %2603 = vmatprep.subr.bf16.mxu0 %v2412
    %2604 = vmatpush1.bf16.msra.mxu0 %v2411
    %2605 = vmatprep.subr.bf16.mxu0 %v2414
    %2606 = vmatpush1.bf16.msra.mxu0 %v2413
    %2607 = vmatprep.subr.bf16.mxu0 %v2416
    %2608 = vmatpush1.bf16.msra.mxu0 %v2415
    %2609 = vmatprep.mubr.bf16.mxu0 %v1984
    %2610 = vmatmul.mubr.bf16.gmra.mrb[0].mxu0 %v1983
    %v2611 = vpop.f32.mrb[0].mxu0
    %v2612 = vadd.f32 %v2090, %v2611
    %v2613 = vpop.f32.mrb[0].mxu0
    %v2614 = vadd.f32 %v2094, %v2613
    %v2615 = vpop.f32.mrb[0].mxu0
    %v2616 = vpop.f32.mrb[0].mxu0
    %2617 = vdwg.mxu0
    %2618 = vmatprep.subr.bf16.mxu0 %v2418
    %2619 = vmatpush1.bf16.msra.mxu0 %v2417
    %2620 = vmatprep.subr.bf16.mxu0 %v2420
    %2621 = vmatpush1.bf16.msra.mxu0 %v2419
    %2622 = vmatprep.subr.bf16.mxu0 %v2422
    %2623 = vmatpush1.bf16.msra.mxu0 %v2421
    %2624 = vmatprep.subr.bf16.mxu0 %v2424
    %2625 = vmatpush1.bf16.msra.mxu0 %v2423
    %2626 = vmatprep.subr.bf16.mxu0 %v2426
    %2627 = vmatpush1.bf16.msra.mxu0 %v2425
    %2628 = vmatprep.subr.bf16.mxu0 %v2428
    %2629 = vmatpush1.bf16.msra.mxu0 %v2427
    %2630 = vmatprep.subr.bf16.mxu0 %v2430
    %2631 = vmatpush1.bf16.msra.mxu0 %v2429
    %2632 = vmatprep.subr.bf16.mxu0 %v2432
    %2633 = vmatpush1.bf16.msra.mxu0 %v2431
    %2634 = vmatprep.subr.bf16.mxu0 %v2434
    %2635 = vmatpush1.bf16.msra.mxu0 %v2433
    %2636 = vmatprep.subr.bf16.mxu0 %v2436
    %2637 = vmatpush1.bf16.msra.mxu0 %v2435
    %2638 = vmatprep.subr.bf16.mxu0 %v2438
    %2639 = vmatpush1.bf16.msra.mxu0 %v2437
    %2640 = vmatprep.subr.bf16.mxu0 %v2440
    %2641 = vmatpush1.bf16.msra.mxu0 %v2439
    %2642 = vmatprep.subr.bf16.mxu0 %v2442
    %2643 = vmatpush1.bf16.msra.mxu0 %v2441
    %2644 = vmatprep.subr.bf16.mxu0 %v2444
    %2645 = vmatpush1.bf16.msra.mxu0 %v2443
    %2646 = vmatprep.subr.bf16.mxu0 %v2446
    %2647 = vmatpush1.bf16.msra.mxu0 %v2445
    %2648 = vmatprep.subr.bf16.mxu0 %v2448
    %2649 = vmatpush1.bf16.msra.mxu0 %v2447
    %2650 = vmatprep.mubr.bf16.mxu0 %v1986
    %2651 = vmatmul.mubr.bf16.gmra.mrb[0].mxu0 %v1985
    %v2652 = vpop.f32.mrb[0].mxu0
    %v2653 = vadd.f32 %v2612, %v2652
    %v2654 = vpop.f32.mrb[0].mxu0
    %v2655 = vadd.f32 %v2614, %v2654
    %v2656 = vpop.f32.mrb[0].mxu0
    %v2657 = vpop.f32.mrb[0].mxu0
    %2658 = vdwg.mxu0
    %2659 = vmatprep.subr.bf16.mxu0 %v2450
    %2660 = vmatpush1.bf16.msra.mxu0 %v2449
    %2661 = vmatprep.subr.bf16.mxu0 %v2452
    %2662 = vmatpush1.bf16.msra.mxu0 %v2451
    %2663 = vmatprep.subr.bf16.mxu0 %v2454
    %2664 = vmatpush1.bf16.msra.mxu0 %v2453
    %2665 = vmatprep.subr.bf16.mxu0 %v2456
    %2666 = vmatpush1.bf16.msra.mxu0 %v2455
    %2667 = vmatprep.subr.bf16.mxu0 %v2458
    %2668 = vmatpush1.bf16.msra.mxu0 %v2457
    %2669 = vmatprep.subr.bf16.mxu0 %v2460
    %2670 = vmatpush1.bf16.msra.mxu0 %v2459
    %2671 = vmatprep.subr.bf16.mxu0 %v2462
    %2672 = vmatpush1.bf16.msra.mxu0 %v2461
    %2673 = vmatprep.subr.bf16.mxu0 %v2464
    %2674 = vmatpush1.bf16.msra.mxu0 %v2463
    %2675 = vmatprep.subr.bf16.mxu0 %v2466
    %2676 = vmatpush1.bf16.msra.mxu0 %v2465
    %2677 = vmatprep.subr.bf16.mxu0 %v2468
    %2678 = vmatpush1.bf16.msra.mxu0 %v2467
    %2679 = vmatprep.subr.bf16.mxu0 %v2470
    %2680 = vmatpush1.bf16.msra.mxu0 %v2469
    %2681 = vmatprep.subr.bf16.mxu0 %v2472
    %2682 = vmatpush1.bf16.msra.mxu0 %v2471
    %2683 = vmatprep.subr.bf16.mxu0 %v2474
    %2684 = vmatpush1.bf16.msra.mxu0 %v2473
    %2685 = vmatprep.subr.bf16.mxu0 %v2476
    %2686 = vmatpush1.bf16.msra.mxu0 %v2475
    %2687 = vmatprep.subr.bf16.mxu0 %v2478
    %2688 = vmatpush1.bf16.msra.mxu0 %v2477
    %2689 = vmatprep.subr.bf16.mxu0 %v2480
    %2690 = vmatpush1.bf16.msra.mxu0 %v2479
    %2691 = vmatprep.mubr.bf16.mxu0 %v1988
    %2692 = vmatmul.mubr.bf16.gmra.mrb[0].mxu0 %v1987
    %v2693 = vpop.f32.mrb[0].mxu0
    %v2694 = vadd.f32 %v2653, %v2693
    %v2695 = vpop.f32.mrb[0].mxu0
    %v2696 = vadd.f32 %v2655, %v2695
    %v2697 = vpop.f32.mrb[0].mxu0
    %v2698 = vpop.f32.mrb[0].mxu0
    %2699 = vdwg.mxu0
    %vm2700 = vcmp.gt.f32.partialorder %v2694, 0.0
    %vm2701 = vcmp.gt.f32.partialorder %v2696, 0.0
    %v2702 = vmul.f32 %v2694, 0.01
    %v2703 = vmul.f32 %v2696, 0.01
    %v2704 = vsel %vm2700, %v2694, %v2702
    %v2705 = vsel %vm2701, %v2696, %v2703
    %v2706 = vpack.c.bf16 %v2704, %v2704
    %v2707 = vpack.c.bf16 %v2705, %v2705
    %v2708 = vld [vmem:[#allocation16] sm:$0xff]
    %v2709 = vld [vmem:[#allocation16 + $0x8] sm:$0xff]
    %v2710 = vld [vmem:[#allocation16 + $0x10] sm:$0xff]
    %v2711 = vld [vmem:[#allocation16 + $0x18] sm:$0xff]
    %v2712 = vld [vmem:[#allocation16 + $0x20] sm:$0xff]
    %v2713 = vld [vmem:[#allocation16 + $0x28] sm:$0xff]
    %v2714 = vld [vmem:[#allocation16 + $0x30] sm:$0xff]
    %v2715 = vld [vmem:[#allocation16 + $0x38] sm:$0xff]
    %v2716 = vld [vmem:[#allocation16 + $0x40] sm:$0xff]
    %v2717 = vld [vmem:[#allocation16 + $0x48] sm:$0xff]
    %v2718 = vld [vmem:[#allocation16 + $0x50] sm:$0xff]
    %v2719 = vld [vmem:[#allocation16 + $0x58] sm:$0xff]
    %v2720 = vld [vmem:[#allocation16 + $0x60] sm:$0xff]
    %v2721 = vld [vmem:[#allocation16 + $0x68] sm:$0xff]
    %v2722 = vld [vmem:[#allocation16 + $0x70] sm:$0xff]
    %v2723 = vld [vmem:[#allocation16 + $0x78] sm:$0xff]
    %v2724 = vld [vmem:[#allocation16 + $0x80] sm:$0xff]
    %v2725 = vld [vmem:[#allocation16 + $0x88] sm:$0xff]
    %v2726 = vld [vmem:[#allocation16 + $0x90] sm:$0xff]
    %v2727 = vld [vmem:[#allocation16 + $0x98] sm:$0xff]
    %v2728 = vld [vmem:[#allocation16 + $0xa0] sm:$0xff]
    %v2729 = vld [vmem:[#allocation16 + $0xa8] sm:$0xff]
    %v2730 = vld [vmem:[#allocation16 + $0xb0] sm:$0xff]
    %v2731 = vld [vmem:[#allocation16 + $0xb8] sm:$0xff]
    %v2732 = vld [vmem:[#allocation16 + $0xc0] sm:$0xff]
    %v2733 = vld [vmem:[#allocation16 + $0xc8] sm:$0xff]
    %v2734 = vld [vmem:[#allocation16 + $0xd0] sm:$0xff]
    %v2735 = vld [vmem:[#allocation16 + $0xd8] sm:$0xff]
    %v2736 = vld [vmem:[#allocation16 + $0xe0] sm:$0xff]
    %v2737 = vld [vmem:[#allocation16 + $0xe8] sm:$0xff]
    %v2738 = vld [vmem:[#allocation16 + $0xf0] sm:$0xff]
    %v2739 = vld [vmem:[#allocation16 + $0xf8] sm:$0xff]
    %v2740 = vld [vmem:[%s14] sm:$0x3]
    %v2742 = vlaneseq
    %v2743 = vshrl.u32 %v2742, 7
    %v2744 = vsub.s32 0, %v2743
    %v2745 = vrot.slane %v2740, %v2744
    %v2746 = vlaneseq
    %v2747 = vshrl.u32 %v2746, 7
    %v2748 = vsub.s32 1, %v2747
    %v2749 = vrot.slane %v2740, %v2748
    %v2784 = vunpack.c.l.b16 %v2708
    %v2785 = vunpack.c.h.b16 %v2708
    %v2786 = vunpack.c.l.b16 %v2709
    %v2787 = vunpack.c.h.b16 %v2709
    %v2788 = vunpack.c.l.b16 %v2710
    %v2789 = vunpack.c.h.b16 %v2710
    %v2790 = vunpack.c.l.b16 %v2711
    %v2791 = vunpack.c.h.b16 %v2711
    %v2792 = vunpack.c.l.b16 %v2712
    %v2793 = vunpack.c.h.b16 %v2712
    %v2794 = vunpack.c.l.b16 %v2713
    %v2795 = vunpack.c.h.b16 %v2713
    %v2796 = vunpack.c.l.b16 %v2714
    %v2797 = vunpack.c.h.b16 %v2714
    %v2798 = vunpack.c.l.b16 %v2715
    %v2799 = vunpack.c.h.b16 %v2715
    %v2800 = vunpack.c.l.b16 %v2716
    %v2801 = vunpack.c.h.b16 %v2716
    %v2802 = vunpack.c.l.b16 %v2717
    %v2803 = vunpack.c.h.b16 %v2717
    %v2804 = vunpack.c.l.b16 %v2718
    %v2805 = vunpack.c.h.b16 %v2718
    %v2806 = vunpack.c.l.b16 %v2719
    %v2807 = vunpack.c.h.b16 %v2719
    %v2808 = vunpack.c.l.b16 %v2720
    %v2809 = vunpack.c.h.b16 %v2720
    %v2810 = vunpack.c.l.b16 %v2721
    %v2811 = vunpack.c.h.b16 %v2721
    %v2812 = vunpack.c.l.b16 %v2722
    %v2813 = vunpack.c.h.b16 %v2722
    %v2814 = vunpack.c.l.b16 %v2723
    %v2815 = vunpack.c.h.b16 %v2723
    %v2816 = vunpack.c.l.b16 %v2724
    %v2817 = vunpack.c.h.b16 %v2724
    %v2818 = vunpack.c.l.b16 %v2725
    %v2819 = vunpack.c.h.b16 %v2725
    %v2820 = vunpack.c.l.b16 %v2726
    %v2821 = vunpack.c.h.b16 %v2726
    %v2822 = vunpack.c.l.b16 %v2727
    %v2823 = vunpack.c.h.b16 %v2727
    %v2824 = vunpack.c.l.b16 %v2728
    %v2825 = vunpack.c.h.b16 %v2728
    %v2826 = vunpack.c.l.b16 %v2729
    %v2827 = vunpack.c.h.b16 %v2729
    %v2828 = vunpack.c.l.b16 %v2730
    %v2829 = vunpack.c.h.b16 %v2730
    %v2830 = vunpack.c.l.b16 %v2731
    %v2831 = vunpack.c.h.b16 %v2731
    %v2832 = vunpack.c.l.b16 %v2732
    %v2833 = vunpack.c.h.b16 %v2732
    %v2834 = vunpack.c.l.b16 %v2733
    %v2835 = vunpack.c.h.b16 %v2733
    %v2836 = vunpack.c.l.b16 %v2734
    %v2837 = vunpack.c.h.b16 %v2734
    %v2838 = vunpack.c.l.b16 %v2735
    %v2839 = vunpack.c.h.b16 %v2735
    %v2840 = vunpack.c.l.b16 %v2736
    %v2841 = vunpack.c.h.b16 %v2736
    %v2842 = vunpack.c.l.b16 %v2737
    %v2843 = vunpack.c.h.b16 %v2737
    %v2844 = vunpack.c.l.b16 %v2738
    %v2845 = vunpack.c.h.b16 %v2738
    %v2846 = vunpack.c.l.b16 %v2739
    %v2847 = vunpack.c.h.b16 %v2739
    %v2848 = vpack.c.b16 %v2786, %v2784
    %v2849 = vpack.c.b16 %v2787, %v2785
    %v2850 = vpack.c.b16 %v2790, %v2788
    %v2851 = vpack.c.b16 %v2791, %v2789
    %v2852 = vpack.c.b16 %v2794, %v2792
    %v2853 = vpack.c.b16 %v2795, %v2793
    %v2854 = vpack.c.b16 %v2798, %v2796
    %v2855 = vpack.c.b16 %v2799, %v2797
    %v2856 = vpack.c.b16 %v2802, %v2800
    %v2857 = vpack.c.b16 %v2803, %v2801
    %v2858 = vpack.c.b16 %v2806, %v2804
    %v2859 = vpack.c.b16 %v2807, %v2805
    %v2860 = vpack.c.b16 %v2810, %v2808
    %v2861 = vpack.c.b16 %v2811, %v2809
    %v2862 = vpack.c.b16 %v2814, %v2812
    %v2863 = vpack.c.b16 %v2815, %v2813
    %v2864 = vpack.c.b16 %v2818, %v2816
    %v2865 = vpack.c.b16 %v2819, %v2817
    %v2866 = vpack.c.b16 %v2822, %v2820
    %v2867 = vpack.c.b16 %v2823, %v2821
    %v2868 = vpack.c.b16 %v2826, %v2824
    %v2869 = vpack.c.b16 %v2827, %v2825
    %v2870 = vpack.c.b16 %v2830, %v2828
    %v2871 = vpack.c.b16 %v2831, %v2829
    %v2872 = vpack.c.b16 %v2834, %v2832
    %v2873 = vpack.c.b16 %v2835, %v2833
    %v2874 = vpack.c.b16 %v2838, %v2836
    %v2875 = vpack.c.b16 %v2839, %v2837
    %v2876 = vpack.c.b16 %v2842, %v2840
    %v2877 = vpack.c.b16 %v2843, %v2841
    %v2878 = vpack.c.b16 %v2846, %v2844
    %v2879 = vpack.c.b16 %v2847, %v2845
    %2912 = vmatprep.subr.bf16.mxu0 %v2849
    %2913 = vmatpush1.bf16.msra.mxu0 %v2848
    %2914 = vmatprep.subr.bf16.mxu0 %v2851
    %2915 = vmatpush1.bf16.msra.mxu0 %v2850
    %2916 = vmatprep.subr.bf16.mxu0 %v2853
    %2917 = vmatpush1.bf16.msra.mxu0 %v2852
    %2918 = vmatprep.subr.bf16.mxu0 %v2855
    %2919 = vmatpush1.bf16.msra.mxu0 %v2854
    %2920 = vmatprep.subr.bf16.mxu0 %v2857
    %2921 = vmatpush1.bf16.msra.mxu0 %v2856
    %2922 = vmatprep.subr.bf16.mxu0 %v2859
    %2923 = vmatpush1.bf16.msra.mxu0 %v2858
    %2924 = vmatprep.subr.bf16.mxu0 %v2861
    %2925 = vmatpush1.bf16.msra.mxu0 %v2860
    %2926 = vmatprep.subr.bf16.mxu0 %v2863
    %2927 = vmatpush1.bf16.msra.mxu0 %v2862
    %2928 = vmatprep.subr.bf16.mxu0 %v2865
    %2929 = vmatpush1.bf16.msra.mxu0 %v2864
    %2930 = vmatprep.subr.bf16.mxu0 %v2867
    %2931 = vmatpush1.bf16.msra.mxu0 %v2866
    %2932 = vmatprep.subr.bf16.mxu0 %v2869
    %2933 = vmatpush1.bf16.msra.mxu0 %v2868
    %2934 = vmatprep.subr.bf16.mxu0 %v2871
    %2935 = vmatpush1.bf16.msra.mxu0 %v2870
    %2936 = vmatprep.subr.bf16.mxu0 %v2873
    %2937 = vmatpush1.bf16.msra.mxu0 %v2872
    %2938 = vmatprep.subr.bf16.mxu0 %v2875
    %2939 = vmatpush1.bf16.msra.mxu0 %v2874
    %2940 = vmatprep.subr.bf16.mxu0 %v2877
    %2941 = vmatpush1.bf16.msra.mxu0 %v2876
    %2942 = vmatprep.subr.bf16.mxu0 %v2879
    %2943 = vmatpush1.bf16.msra.mxu0 %v2878
    %2944 = vmatprep.mubr.bf16.mxu0 %v2707
    %2945 = vmatmul.mubr.bf16.gmra.mrb[0].mxu0 %v2706
    %v2946 = vpop.f32.mrb[0].mxu0
    %v2947 = vadd.f32 %v2745, %v2946
    %v2948 = vpop.f32.mrb[0].mxu0
    %v2949 = vadd.f32 %v2749, %v2948
    %v2950 = vpop.f32.mrb[0].mxu0
    %v2951 = vpop.f32.mrb[0].mxu0
    %2952 = vdwg.mxu0
    %vm2953 = vcmp.gt.f32.partialorder %v2947, 0.0
    %vm2954 = vcmp.gt.f32.partialorder %v2949, 0.0
    %v2955 = vmul.f32 %v2947, 0.01
    %v2956 = vmul.f32 %v2949, 0.01
    %v2957 = vsel %vm2953, %v2947, %v2955
    %v2958 = vsel %vm2954, %v2949, %v2956
    %v2959 = vpack.c.bf16 %v2957, %v2957
    %v2960 = vpack.c.bf16 %v2958, %v2958
    %v2961 = vld [vmem:[#allocation17] sm:$0xff]
    %v2962 = vld [vmem:[#allocation17 + $0x8] sm:$0xff]
    %v2963 = vld [vmem:[#allocation17 + $0x10] sm:$0xff]
    %v2964 = vld [vmem:[#allocation17 + $0x18] sm:$0xff]
    %v2965 = vld [vmem:[#allocation17 + $0x20] sm:$0xff]
    %v2966 = vld [vmem:[#allocation17 + $0x28] sm:$0xff]
    %v2967 = vld [vmem:[#allocation17 + $0x30] sm:$0xff]
    %v2968 = vld [vmem:[#allocation17 + $0x38] sm:$0xff]
    %v2969 = vld [vmem:[#allocation17 + $0x40] sm:$0xff]
    %v2970 = vld [vmem:[#allocation17 + $0x48] sm:$0xff]
    %v2971 = vld [vmem:[#allocation17 + $0x50] sm:$0xff]
    %v2972 = vld [vmem:[#allocation17 + $0x58] sm:$0xff]
    %v2973 = vld [vmem:[#allocation17 + $0x60] sm:$0xff]
    %v2974 = vld [vmem:[#allocation17 + $0x68] sm:$0xff]
    %v2975 = vld [vmem:[#allocation17 + $0x70] sm:$0xff]
    %v2976 = vld [vmem:[#allocation17 + $0x78] sm:$0xff]
    %v2977 = vld [vmem:[#allocation17 + $0x80] sm:$0xff]
    %v2978 = vld [vmem:[#allocation17 + $0x88] sm:$0xff]
    %v2979 = vld [vmem:[#allocation17 + $0x90] sm:$0xff]
    %v2980 = vld [vmem:[#allocation17 + $0x98] sm:$0xff]
    %v2981 = vld [vmem:[#allocation17 + $0xa0] sm:$0xff]
    %v2982 = vld [vmem:[#allocation17 + $0xa8] sm:$0xff]
    %v2983 = vld [vmem:[#allocation17 + $0xb0] sm:$0xff]
    %v2984 = vld [vmem:[#allocation17 + $0xb8] sm:$0xff]
    %v2985 = vld [vmem:[#allocation17 + $0xc0] sm:$0xff]
    %v2986 = vld [vmem:[#allocation17 + $0xc8] sm:$0xff]
    %v2987 = vld [vmem:[#allocation17 + $0xd0] sm:$0xff]
    %v2988 = vld [vmem:[#allocation17 + $0xd8] sm:$0xff]
    %v2989 = vld [vmem:[#allocation17 + $0xe0] sm:$0xff]
    %v2990 = vld [vmem:[#allocation17 + $0xe8] sm:$0xff]
    %v2991 = vld [vmem:[#allocation17 + $0xf0] sm:$0xff]
    %v2992 = vld [vmem:[#allocation17 + $0xf8] sm:$0xff]
    %v2993 = vld [vmem:[%s16] sm:$0x3]
    %v2995 = vlaneseq
    %v2996 = vshrl.u32 %v2995, 7
    %v2997 = vsub.s32 0, %v2996
    %v2998 = vrot.slane %v2993, %v2997
    %v2999 = vlaneseq
    %v3000 = vshrl.u32 %v2999, 7
    %v3001 = vsub.s32 1, %v3000
    %v3002 = vrot.slane %v2993, %v3001
    %v3037 = vunpack.c.l.b16 %v2961
    %v3038 = vunpack.c.h.b16 %v2961
    %v3039 = vunpack.c.l.b16 %v2962
    %v3040 = vunpack.c.h.b16 %v2962
    %v3041 = vunpack.c.l.b16 %v2963
    %v3042 = vunpack.c.h.b16 %v2963
    %v3043 = vunpack.c.l.b16 %v2964
    %v3044 = vunpack.c.h.b16 %v2964
    %v3045 = vunpack.c.l.b16 %v2965
    %v3046 = vunpack.c.h.b16 %v2965
    %v3047 = vunpack.c.l.b16 %v2966
    %v3048 = vunpack.c.h.b16 %v2966
    %v3049 = vunpack.c.l.b16 %v2967
    %v3050 = vunpack.c.h.b16 %v2967
    %v3051 = vunpack.c.l.b16 %v2968
    %v3052 = vunpack.c.h.b16 %v2968
    %v3053 = vunpack.c.l.b16 %v2969
    %v3054 = vunpack.c.h.b16 %v2969
    %v3055 = vunpack.c.l.b16 %v2970
    %v3056 = vunpack.c.h.b16 %v2970
    %v3057 = vunpack.c.l.b16 %v2971
    %v3058 = vunpack.c.h.b16 %v2971
    %v3059 = vunpack.c.l.b16 %v2972
    %v3060 = vunpack.c.h.b16 %v2972
    %v3061 = vunpack.c.l.b16 %v2973
    %v3062 = vunpack.c.h.b16 %v2973
    %v3063 = vunpack.c.l.b16 %v2974
    %v3064 = vunpack.c.h.b16 %v2974
    %v3065 = vunpack.c.l.b16 %v2975
    %v3066 = vunpack.c.h.b16 %v2975
    %v3067 = vunpack.c.l.b16 %v2976
    %v3068 = vunpack.c.h.b16 %v2976
    %v3069 = vunpack.c.l.b16 %v2977
    %v3070 = vunpack.c.h.b16 %v2977
    %v3071 = vunpack.c.l.b16 %v2978
    %v3072 = vunpack.c.h.b16 %v2978
    %v3073 = vunpack.c.l.b16 %v2979
    %v3074 = vunpack.c.h.b16 %v2979
    %v3075 = vunpack.c.l.b16 %v2980
    %v3076 = vunpack.c.h.b16 %v2980
    %v3077 = vunpack.c.l.b16 %v2981
    %v3078 = vunpack.c.h.b16 %v2981
    %v3079 = vunpack.c.l.b16 %v2982
    %v3080 = vunpack.c.h.b16 %v2982
    %v3081 = vunpack.c.l.b16 %v2983
    %v3082 = vunpack.c.h.b16 %v2983
    %v3083 = vunpack.c.l.b16 %v2984
    %v3084 = vunpack.c.h.b16 %v2984
    %v3085 = vunpack.c.l.b16 %v2985
    %v3086 = vunpack.c.h.b16 %v2985
    %v3087 = vunpack.c.l.b16 %v2986
    %v3088 = vunpack.c.h.b16 %v2986
    %v3089 = vunpack.c.l.b16 %v2987
    %v3090 = vunpack.c.h.b16 %v2987
    %v3091 = vunpack.c.l.b16 %v2988
    %v3092 = vunpack.c.h.b16 %v2988
    %v3093 = vunpack.c.l.b16 %v2989
    %v3094 = vunpack.c.h.b16 %v2989
    %v3095 = vunpack.c.l.b16 %v2990
    %v3096 = vunpack.c.h.b16 %v2990
    %v3097 = vunpack.c.l.b16 %v2991
    %v3098 = vunpack.c.h.b16 %v2991
    %v3099 = vunpack.c.l.b16 %v2992
    %v3100 = vunpack.c.h.b16 %v2992
    %v3101 = vpack.c.b16 %v3039, %v3037
    %v3102 = vpack.c.b16 %v3040, %v3038
    %v3103 = vpack.c.b16 %v3043, %v3041
    %v3104 = vpack.c.b16 %v3044, %v3042
    %v3105 = vpack.c.b16 %v3047, %v3045
    %v3106 = vpack.c.b16 %v3048, %v3046
    %v3107 = vpack.c.b16 %v3051, %v3049
    %v3108 = vpack.c.b16 %v3052, %v3050
    %v3109 = vpack.c.b16 %v3055, %v3053
    %v3110 = vpack.c.b16 %v3056, %v3054
    %v3111 = vpack.c.b16 %v3059, %v3057
    %v3112 = vpack.c.b16 %v3060, %v3058
    %v3113 = vpack.c.b16 %v3063, %v3061
    %v3114 = vpack.c.b16 %v3064, %v3062
    %v3115 = vpack.c.b16 %v3067, %v3065
    %v3116 = vpack.c.b16 %v3068, %v3066
    %v3117 = vpack.c.b16 %v3071, %v3069
    %v3118 = vpack.c.b16 %v3072, %v3070
    %v3119 = vpack.c.b16 %v3075, %v3073
    %v3120 = vpack.c.b16 %v3076, %v3074
    %v3121 = vpack.c.b16 %v3079, %v3077
    %v3122 = vpack.c.b16 %v3080, %v3078
    %v3123 = vpack.c.b16 %v3083, %v3081
    %v3124 = vpack.c.b16 %v3084, %v3082
    %v3125 = vpack.c.b16 %v3087, %v3085
    %v3126 = vpack.c.b16 %v3088, %v3086
    %v3127 = vpack.c.b16 %v3091, %v3089
    %v3128 = vpack.c.b16 %v3092, %v3090
    %v3129 = vpack.c.b16 %v3095, %v3093
    %v3130 = vpack.c.b16 %v3096, %v3094
    %v3131 = vpack.c.b16 %v3099, %v3097
    %v3132 = vpack.c.b16 %v3100, %v3098
    %3165 = vmatprep.subr.bf16.mxu0 %v3102
    %3166 = vmatpush1.bf16.msra.mxu0 %v3101
    %3167 = vmatprep.subr.bf16.mxu0 %v3104
    %3168 = vmatpush1.bf16.msra.mxu0 %v3103
    %3169 = vmatprep.subr.bf16.mxu0 %v3106
    %3170 = vmatpush1.bf16.msra.mxu0 %v3105
    %3171 = vmatprep.subr.bf16.mxu0 %v3108
    %3172 = vmatpush1.bf16.msra.mxu0 %v3107
    %3173 = vmatprep.subr.bf16.mxu0 %v3110
    %3174 = vmatpush1.bf16.msra.mxu0 %v3109
    %3175 = vmatprep.subr.bf16.mxu0 %v3112
    %3176 = vmatpush1.bf16.msra.mxu0 %v3111
    %3177 = vmatprep.subr.bf16.mxu0 %v3114
    %3178 = vmatpush1.bf16.msra.mxu0 %v3113
    %3179 = vmatprep.subr.bf16.mxu0 %v3116
    %3180 = vmatpush1.bf16.msra.mxu0 %v3115
    %3181 = vmatprep.subr.bf16.mxu0 %v3118
    %3182 = vmatpush1.bf16.msra.mxu0 %v3117
    %3183 = vmatprep.subr.bf16.mxu0 %v3120
    %3184 = vmatpush1.bf16.msra.mxu0 %v3119
    %3185 = vmatprep.subr.bf16.mxu0 %v3122
    %3186 = vmatpush1.bf16.msra.mxu0 %v3121
    %3187 = vmatprep.subr.bf16.mxu0 %v3124
    %3188 = vmatpush1.bf16.msra.mxu0 %v3123
    %3189 = vmatprep.subr.bf16.mxu0 %v3126
    %3190 = vmatpush1.bf16.msra.mxu0 %v3125
    %3191 = vmatprep.subr.bf16.mxu0 %v3128
    %3192 = vmatpush1.bf16.msra.mxu0 %v3127
    %3193 = vmatprep.subr.bf16.mxu0 %v3130
    %3194 = vmatpush1.bf16.msra.mxu0 %v3129
    %3195 = vmatprep.subr.bf16.mxu0 %v3132
    %3196 = vmatpush1.bf16.msra.mxu0 %v3131
    %3197 = vmatprep.mubr.bf16.mxu0 %v2960
    %3198 = vmatmul.mubr.bf16.gmra.mrb[0].mxu0 %v2959
    %v3199 = vpop.f32.mrb[0].mxu0
    %v3200 = vadd.f32 %v2998, %v3199
    %v3201 = vpop.f32.mrb[0].mxu0
    %v3202 = vadd.f32 %v3002, %v3201
    %v3203 = vpop.f32.mrb[0].mxu0
    %v3204 = vpop.f32.mrb[0].mxu0
    %3205 = vdwg.mxu0
    %v3206 = vpack.c.bf16 %v1971, %v1971
    %v3207 = vpack.c.bf16 %v1973, %v1973
    %v3208 = vld [vmem:[#allocation19] sm:$0xff]
    %v3209 = vld [vmem:[#allocation19 + $0x8] sm:$0xff]
    %v3210 = vld [vmem:[#allocation19 + $0x10] sm:$0xff]
    %v3211 = vld [vmem:[#allocation19 + $0x18] sm:$0xff]
    %v3212 = vld [vmem:[#allocation19 + $0x20] sm:$0xff]
    %v3213 = vld [vmem:[#allocation19 + $0x28] sm:$0xff]
    %v3214 = vld [vmem:[#allocation19 + $0x30] sm:$0xff]
    %v3215 = vld [vmem:[#allocation19 + $0x38] sm:$0xff]
    %v3216 = vld [vmem:[#allocation19 + $0x40] sm:$0xff]
    %v3217 = vld [vmem:[#allocation19 + $0x48] sm:$0xff]
    %v3218 = vld [vmem:[#allocation19 + $0x50] sm:$0xff]
    %v3219 = vld [vmem:[#allocation19 + $0x58] sm:$0xff]
    %v3220 = vld [vmem:[#allocation19 + $0x60] sm:$0xff]
    %v3221 = vld [vmem:[#allocation19 + $0x68] sm:$0xff]
    %v3222 = vld [vmem:[#allocation19 + $0x70] sm:$0xff]
    %v3223 = vld [vmem:[#allocation19 + $0x78] sm:$0xff]
    %v3224 = vld [vmem:[#allocation19 + $0x80] sm:$0xff]
    %v3225 = vld [vmem:[#allocation19 + $0x88] sm:$0xff]
    %v3226 = vld [vmem:[#allocation19 + $0x90] sm:$0xff]
    %v3227 = vld [vmem:[#allocation19 + $0x98] sm:$0xff]
    %v3228 = vld [vmem:[#allocation19 + $0xa0] sm:$0xff]
    %v3229 = vld [vmem:[#allocation19 + $0xa8] sm:$0xff]
    %v3230 = vld [vmem:[#allocation19 + $0xb0] sm:$0xff]
    %v3231 = vld [vmem:[#allocation19 + $0xb8] sm:$0xff]
    %v3232 = vld [vmem:[#allocation19 + $0xc0] sm:$0xff]
    %v3233 = vld [vmem:[#allocation19 + $0xc8] sm:$0xff]
    %v3234 = vld [vmem:[#allocation19 + $0xd0] sm:$0xff]
    %v3235 = vld [vmem:[#allocation19 + $0xd8] sm:$0xff]
    %v3236 = vld [vmem:[#allocation19 + $0xe0] sm:$0xff]
    %v3237 = vld [vmem:[#allocation19 + $0xe8] sm:$0xff]
    %v3238 = vld [vmem:[#allocation19 + $0xf0] sm:$0xff]
    %v3239 = vld [vmem:[#allocation19 + $0xf8] sm:$0xff]
    %v3240 = vpack.c.bf16 %v3200, %v3200
    %v3241 = vpack.c.bf16 %v3202, %v3202
    %v3242 = vld [vmem:[#allocation20] sm:$0xff]
    %v3243 = vld [vmem:[#allocation20 + $0x8] sm:$0xff]
    %v3244 = vld [vmem:[#allocation20 + $0x10] sm:$0xff]
    %v3245 = vld [vmem:[#allocation20 + $0x18] sm:$0xff]
    %v3246 = vld [vmem:[#allocation20 + $0x20] sm:$0xff]
    %v3247 = vld [vmem:[#allocation20 + $0x28] sm:$0xff]
    %v3248 = vld [vmem:[#allocation20 + $0x30] sm:$0xff]
    %v3249 = vld [vmem:[#allocation20 + $0x38] sm:$0xff]
    %v3250 = vld [vmem:[#allocation20 + $0x40] sm:$0xff]
    %v3251 = vld [vmem:[#allocation20 + $0x48] sm:$0xff]
    %v3252 = vld [vmem:[#allocation20 + $0x50] sm:$0xff]
    %v3253 = vld [vmem:[#allocation20 + $0x58] sm:$0xff]
    %v3254 = vld [vmem:[#allocation20 + $0x60] sm:$0xff]
    %v3255 = vld [vmem:[#allocation20 + $0x68] sm:$0xff]
    %v3256 = vld [vmem:[#allocation20 + $0x70] sm:$0xff]
    %v3257 = vld [vmem:[#allocation20 + $0x78] sm:$0xff]
    %v3258 = vld [vmem:[#allocation20 + $0x80] sm:$0xff]
    %v3259 = vld [vmem:[#allocation20 + $0x88] sm:$0xff]
    %v3260 = vld [vmem:[#allocation20 + $0x90] sm:$0xff]
    %v3261 = vld [vmem:[#allocation20 + $0x98] sm:$0xff]
    %v3262 = vld [vmem:[#allocation20 + $0xa0] sm:$0xff]
    %v3263 = vld [vmem:[#allocation20 + $0xa8] sm:$0xff]
    %v3264 = vld [vmem:[#allocation20 + $0xb0] sm:$0xff]
    %v3265 = vld [vmem:[#allocation20 + $0xb8] sm:$0xff]
    %v3266 = vld [vmem:[#allocation20 + $0xc0] sm:$0xff]
    %v3267 = vld [vmem:[#allocation20 + $0xc8] sm:$0xff]
    %v3268 = vld [vmem:[#allocation20 + $0xd0] sm:$0xff]
    %v3269 = vld [vmem:[#allocation20 + $0xd8] sm:$0xff]
    %v3270 = vld [vmem:[#allocation20 + $0xe0] sm:$0xff]
    %v3271 = vld [vmem:[#allocation20 + $0xe8] sm:$0xff]
    %v3272 = vld [vmem:[#allocation20 + $0xf0] sm:$0xff]
    %v3273 = vld [vmem:[#allocation20 + $0xf8] sm:$0xff]
    %v3306 = vunpack.c.l.b16 %v3242
    %v3307 = vunpack.c.h.b16 %v3242
    %v3308 = vunpack.c.l.b16 %v3243
    %v3309 = vunpack.c.h.b16 %v3243
    %v3310 = vunpack.c.l.b16 %v3244
    %v3311 = vunpack.c.h.b16 %v3244
    %v3312 = vunpack.c.l.b16 %v3245
    %v3313 = vunpack.c.h.b16 %v3245
    %v3314 = vunpack.c.l.b16 %v3246
    %v3315 = vunpack.c.h.b16 %v3246
    %v3316 = vunpack.c.l.b16 %v3247
    %v3317 = vunpack.c.h.b16 %v3247
    %v3318 = vunpack.c.l.b16 %v3248
    %v3319 = vunpack.c.h.b16 %v3248
    %v3320 = vunpack.c.l.b16 %v3249
    %v3321 = vunpack.c.h.b16 %v3249
    %v3322 = vunpack.c.l.b16 %v3250
    %v3323 = vunpack.c.h.b16 %v3250
    %v3324 = vunpack.c.l.b16 %v3251
    %v3325 = vunpack.c.h.b16 %v3251
    %v3326 = vunpack.c.l.b16 %v3252
    %v3327 = vunpack.c.h.b16 %v3252
    %v3328 = vunpack.c.l.b16 %v3253
    %v3329 = vunpack.c.h.b16 %v3253
    %v3330 = vunpack.c.l.b16 %v3254
    %v3331 = vunpack.c.h.b16 %v3254
    %v3332 = vunpack.c.l.b16 %v3255
    %v3333 = vunpack.c.h.b16 %v3255
    %v3334 = vunpack.c.l.b16 %v3256
    %v3335 = vunpack.c.h.b16 %v3256
    %v3336 = vunpack.c.l.b16 %v3257
    %v3337 = vunpack.c.h.b16 %v3257
    %v3338 = vunpack.c.l.b16 %v3258
    %v3339 = vunpack.c.h.b16 %v3258
    %v3340 = vunpack.c.l.b16 %v3259
    %v3341 = vunpack.c.h.b16 %v3259
    %v3342 = vunpack.c.l.b16 %v3260
    %v3343 = vunpack.c.h.b16 %v3260
    %v3344 = vunpack.c.l.b16 %v3261
    %v3345 = vunpack.c.h.b16 %v3261
    %v3346 = vunpack.c.l.b16 %v3262
    %v3347 = vunpack.c.h.b16 %v3262
    %v3348 = vunpack.c.l.b16 %v3263
    %v3349 = vunpack.c.h.b16 %v3263
    %v3350 = vunpack.c.l.b16 %v3264
    %v3351 = vunpack.c.h.b16 %v3264
    %v3352 = vunpack.c.l.b16 %v3265
    %v3353 = vunpack.c.h.b16 %v3265
    %v3354 = vunpack.c.l.b16 %v3266
    %v3355 = vunpack.c.h.b16 %v3266
    %v3356 = vunpack.c.l.b16 %v3267
    %v3357 = vunpack.c.h.b16 %v3267
    %v3358 = vunpack.c.l.b16 %v3268
    %v3359 = vunpack.c.h.b16 %v3268
    %v3360 = vunpack.c.l.b16 %v3269
    %v3361 = vunpack.c.h.b16 %v3269
    %v3362 = vunpack.c.l.b16 %v3270
    %v3363 = vunpack.c.h.b16 %v3270
    %v3364 = vunpack.c.l.b16 %v3271
    %v3365 = vunpack.c.h.b16 %v3271
    %v3366 = vunpack.c.l.b16 %v3272
    %v3367 = vunpack.c.h.b16 %v3272
    %v3368 = vunpack.c.l.b16 %v3273
    %v3369 = vunpack.c.h.b16 %v3273
    %v3370 = vpack.c.b16 %v3308, %v3306
    %v3371 = vpack.c.b16 %v3309, %v3307
    %v3372 = vpack.c.b16 %v3312, %v3310
    %v3373 = vpack.c.b16 %v3313, %v3311
    %v3374 = vpack.c.b16 %v3316, %v3314
    %v3375 = vpack.c.b16 %v3317, %v3315
    %v3376 = vpack.c.b16 %v3320, %v3318
    %v3377 = vpack.c.b16 %v3321, %v3319
    %v3378 = vpack.c.b16 %v3324, %v3322
    %v3379 = vpack.c.b16 %v3325, %v3323
    %v3380 = vpack.c.b16 %v3328, %v3326
    %v3381 = vpack.c.b16 %v3329, %v3327
    %v3382 = vpack.c.b16 %v3332, %v3330
    %v3383 = vpack.c.b16 %v3333, %v3331
    %v3384 = vpack.c.b16 %v3336, %v3334
    %v3385 = vpack.c.b16 %v3337, %v3335
    %v3386 = vpack.c.b16 %v3340, %v3338
    %v3387 = vpack.c.b16 %v3341, %v3339
    %v3388 = vpack.c.b16 %v3344, %v3342
    %v3389 = vpack.c.b16 %v3345, %v3343
    %v3390 = vpack.c.b16 %v3348, %v3346
    %v3391 = vpack.c.b16 %v3349, %v3347
    %v3392 = vpack.c.b16 %v3352, %v3350
    %v3393 = vpack.c.b16 %v3353, %v3351
    %v3394 = vpack.c.b16 %v3356, %v3354
    %v3395 = vpack.c.b16 %v3357, %v3355
    %v3396 = vpack.c.b16 %v3360, %v3358
    %v3397 = vpack.c.b16 %v3361, %v3359
    %v3398 = vpack.c.b16 %v3364, %v3362
    %v3399 = vpack.c.b16 %v3365, %v3363
    %v3400 = vpack.c.b16 %v3368, %v3366
    %v3401 = vpack.c.b16 %v3369, %v3367
    %3434 = vmatprep.subr.bf16.mxu0 %v3371
    %3435 = vmatpush1.bf16.msra.mxu0 %v3370
    %3436 = vmatprep.subr.bf16.mxu0 %v3373
    %3437 = vmatpush1.bf16.msra.mxu0 %v3372
    %3438 = vmatprep.subr.bf16.mxu0 %v3375
    %3439 = vmatpush1.bf16.msra.mxu0 %v3374
    %3440 = vmatprep.subr.bf16.mxu0 %v3377
    %3441 = vmatpush1.bf16.msra.mxu0 %v3376
    %3442 = vmatprep.subr.bf16.mxu0 %v3379
    %3443 = vmatpush1.bf16.msra.mxu0 %v3378
    %3444 = vmatprep.subr.bf16.mxu0 %v3381
    %3445 = vmatpush1.bf16.msra.mxu0 %v3380
    %3446 = vmatprep.subr.bf16.mxu0 %v3383
    %3447 = vmatpush1.bf16.msra.mxu0 %v3382
    %3448 = vmatprep.subr.bf16.mxu0 %v3385
    %3449 = vmatpush1.bf16.msra.mxu0 %v3384
    %3450 = vmatprep.subr.bf16.mxu0 %v3387
    %3451 = vmatpush1.bf16.msra.mxu0 %v3386
    %3452 = vmatprep.subr.bf16.mxu0 %v3389
    %3453 = vmatpush1.bf16.msra.mxu0 %v3388
    %3454 = vmatprep.subr.bf16.mxu0 %v3391
    %3455 = vmatpush1.bf16.msra.mxu0 %v3390
    %3456 = vmatprep.subr.bf16.mxu0 %v3393
    %3457 = vmatpush1.bf16.msra.mxu0 %v3392
    %3458 = vmatprep.subr.bf16.mxu0 %v3395
    %3459 = vmatpush1.bf16.msra.mxu0 %v3394
    %3460 = vmatprep.subr.bf16.mxu0 %v3397
    %3461 = vmatpush1.bf16.msra.mxu0 %v3396
    %3462 = vmatprep.subr.bf16.mxu0 %v3399
    %3463 = vmatpush1.bf16.msra.mxu0 %v3398
    %3464 = vmatprep.subr.bf16.mxu0 %v3401
    %3465 = vmatpush1.bf16.msra.mxu0 %v3400
    %3466 = vmatprep.mubr.bf16.mxu0 %v3241
    %3467 = vmatmul.mubr.bf16.gmra.mrb[0].mxu0 %v3240
    %v3468 = vpop.f32.mrb[0].mxu0
    %v3469 = vadd.f32 0.0, %v3468
    %v3470 = vpop.f32.mrb[0].mxu0
    %v3471 = vadd.f32 0.0, %v3470
    %v3472 = vpop.f32.mrb[0].mxu0
    %v3473 = vpop.f32.mrb[0].mxu0
    %3474 = vdwg.mxu0
    %v3507 = vunpack.c.l.b16 %v3208
    %v3508 = vunpack.c.h.b16 %v3208
    %v3509 = vunpack.c.l.b16 %v3209
    %v3510 = vunpack.c.h.b16 %v3209
    %v3511 = vunpack.c.l.b16 %v3210
    %v3512 = vunpack.c.h.b16 %v3210
    %v3513 = vunpack.c.l.b16 %v3211
    %v3514 = vunpack.c.h.b16 %v3211
    %v3515 = vunpack.c.l.b16 %v3212
    %v3516 = vunpack.c.h.b16 %v3212
    %v3517 = vunpack.c.l.b16 %v3213
    %v3518 = vunpack.c.h.b16 %v3213
    %v3519 = vunpack.c.l.b16 %v3214
    %v3520 = vunpack.c.h.b16 %v3214
    %v3521 = vunpack.c.l.b16 %v3215
    %v3522 = vunpack.c.h.b16 %v3215
    %v3523 = vunpack.c.l.b16 %v3216
    %v3524 = vunpack.c.h.b16 %v3216
    %v3525 = vunpack.c.l.b16 %v3217
    %v3526 = vunpack.c.h.b16 %v3217
    %v3527 = vunpack.c.l.b16 %v3218
    %v3528 = vunpack.c.h.b16 %v3218
    %v3529 = vunpack.c.l.b16 %v3219
    %v3530 = vunpack.c.h.b16 %v3219
    %v3531 = vunpack.c.l.b16 %v3220
    %v3532 = vunpack.c.h.b16 %v3220
    %v3533 = vunpack.c.l.b16 %v3221
    %v3534 = vunpack.c.h.b16 %v3221
    %v3535 = vunpack.c.l.b16 %v3222
    %v3536 = vunpack.c.h.b16 %v3222
    %v3537 = vunpack.c.l.b16 %v3223
    %v3538 = vunpack.c.h.b16 %v3223
    %v3539 = vunpack.c.l.b16 %v3224
    %v3540 = vunpack.c.h.b16 %v3224
    %v3541 = vunpack.c.l.b16 %v3225
    %v3542 = vunpack.c.h.b16 %v3225
    %v3543 = vunpack.c.l.b16 %v3226
    %v3544 = vunpack.c.h.b16 %v3226
    %v3545 = vunpack.c.l.b16 %v3227
    %v3546 = vunpack.c.h.b16 %v3227
    %v3547 = vunpack.c.l.b16 %v3228
    %v3548 = vunpack.c.h.b16 %v3228
    %v3549 = vunpack.c.l.b16 %v3229
    %v3550 = vunpack.c.h.b16 %v3229
    %v3551 = vunpack.c.l.b16 %v3230
    %v3552 = vunpack.c.h.b16 %v3230
    %v3553 = vunpack.c.l.b16 %v3231
    %v3554 = vunpack.c.h.b16 %v3231
    %v3555 = vunpack.c.l.b16 %v3232
    %v3556 = vunpack.c.h.b16 %v3232
    %v3557 = vunpack.c.l.b16 %v3233
    %v3558 = vunpack.c.h.b16 %v3233
    %v3559 = vunpack.c.l.b16 %v3234
    %v3560 = vunpack.c.h.b16 %v3234
    %v3561 = vunpack.c.l.b16 %v3235
    %v3562 = vunpack.c.h.b16 %v3235
    %v3563 = vunpack.c.l.b16 %v3236
    %v3564 = vunpack.c.h.b16 %v3236
    %v3565 = vunpack.c.l.b16 %v3237
    %v3566 = vunpack.c.h.b16 %v3237
    %v3567 = vunpack.c.l.b16 %v3238
    %v3568 = vunpack.c.h.b16 %v3238
    %v3569 = vunpack.c.l.b16 %v3239
    %v3570 = vunpack.c.h.b16 %v3239
    %v3571 = vpack.c.b16 %v3509, %v3507
    %v3572 = vpack.c.b16 %v3510, %v3508
    %v3573 = vpack.c.b16 %v3513, %v3511
    %v3574 = vpack.c.b16 %v3514, %v3512
    %v3575 = vpack.c.b16 %v3517, %v3515
    %v3576 = vpack.c.b16 %v3518, %v3516
    %v3577 = vpack.c.b16 %v3521, %v3519
    %v3578 = vpack.c.b16 %v3522, %v3520
    %v3579 = vpack.c.b16 %v3525, %v3523
    %v3580 = vpack.c.b16 %v3526, %v3524
    %v3581 = vpack.c.b16 %v3529, %v3527
    %v3582 = vpack.c.b16 %v3530, %v3528
    %v3583 = vpack.c.b16 %v3533, %v3531
    %v3584 = vpack.c.b16 %v3534, %v3532
    %v3585 = vpack.c.b16 %v3537, %v3535
    %v3586 = vpack.c.b16 %v3538, %v3536
    %v3587 = vpack.c.b16 %v3541, %v3539
    %v3588 = vpack.c.b16 %v3542, %v3540
    %v3589 = vpack.c.b16 %v3545, %v3543
    %v3590 = vpack.c.b16 %v3546, %v3544
    %v3591 = vpack.c.b16 %v3549, %v3547
    %v3592 = vpack.c.b16 %v3550, %v3548
    %v3593 = vpack.c.b16 %v3553, %v3551
    %v3594 = vpack.c.b16 %v3554, %v3552
    %v3595 = vpack.c.b16 %v3557, %v3555
    %v3596 = vpack.c.b16 %v3558, %v3556
    %v3597 = vpack.c.b16 %v3561, %v3559
    %v3598 = vpack.c.b16 %v3562, %v3560
    %v3599 = vpack.c.b16 %v3565, %v3563
    %v3600 = vpack.c.b16 %v3566, %v3564
    %v3601 = vpack.c.b16 %v3569, %v3567
    %v3602 = vpack.c.b16 %v3570, %v3568
    %3635 = vmatprep.subr.bf16.mxu0 %v3572
    %3636 = vmatpush1.bf16.msra.mxu0 %v3571
    %3637 = vmatprep.subr.bf16.mxu0 %v3574
    %3638 = vmatpush1.bf16.msra.mxu0 %v3573
    %3639 = vmatprep.subr.bf16.mxu0 %v3576
    %3640 = vmatpush1.bf16.msra.mxu0 %v3575
    %3641 = vmatprep.subr.bf16.mxu0 %v3578
    %3642 = vmatpush1.bf16.msra.mxu0 %v3577
    %3643 = vmatprep.subr.bf16.mxu0 %v3580
    %3644 = vmatpush1.bf16.msra.mxu0 %v3579
    %3645 = vmatprep.subr.bf16.mxu0 %v3582
    %3646 = vmatpush1.bf16.msra.mxu0 %v3581
    %3647 = vmatprep.subr.bf16.mxu0 %v3584
    %3648 = vmatpush1.bf16.msra.mxu0 %v3583
    %3649 = vmatprep.subr.bf16.mxu0 %v3586
    %3650 = vmatpush1.bf16.msra.mxu0 %v3585
    %3651 = vmatprep.subr.bf16.mxu0 %v3588
    %3652 = vmatpush1.bf16.msra.mxu0 %v3587
    %3653 = vmatprep.subr.bf16.mxu0 %v3590
    %3654 = vmatpush1.bf16.msra.mxu0 %v3589
    %3655 = vmatprep.subr.bf16.mxu0 %v3592
    %3656 = vmatpush1.bf16.msra.mxu0 %v3591
    %3657 = vmatprep.subr.bf16.mxu0 %v3594
    %3658 = vmatpush1.bf16.msra.mxu0 %v3593
    %3659 = vmatprep.subr.bf16.mxu0 %v3596
    %3660 = vmatpush1.bf16.msra.mxu0 %v3595
    %3661 = vmatprep.subr.bf16.mxu0 %v3598
    %3662 = vmatpush1.bf16.msra.mxu0 %v3597
    %3663 = vmatprep.subr.bf16.mxu0 %v3600
    %3664 = vmatpush1.bf16.msra.mxu0 %v3599
    %3665 = vmatprep.subr.bf16.mxu0 %v3602
    %3666 = vmatpush1.bf16.msra.mxu0 %v3601
    %3667 = vmatprep.mubr.bf16.mxu0 %v3207
    %3668 = vmatmul.mubr.bf16.gmra.mrb[0].mxu0 %v3206
    %v3669 = vpop.f32.mrb[0].mxu0
    %v3670 = vadd.f32 %v3469, %v3669
    %v3671 = vpop.f32.mrb[0].mxu0
    %v3672 = vadd.f32 %v3471, %v3671
    %v3673 = vpop.f32.mrb[0].mxu0
    %v3674 = vpop.f32.mrb[0].mxu0
    %3675 = vdwg.mxu0
    %v3676 = vld [vmem:[%s19] sm:$0x3]
    %v3678 = vlaneseq
    %v3679 = vshrl.u32 %v3678, 7
    %v3680 = vsub.s32 0, %v3679
    %v3681 = vrot.slane %v3676, %v3680
    %v3682 = vlaneseq
    %v3683 = vshrl.u32 %v3682, 7
    %v3684 = vsub.s32 1, %v3683
    %v3685 = vrot.slane %v3676, %v3684
    %v3688 = vadd.f32 %v3670, %v3681
    %v3689 = vadd.f32 %v3672, %v3685
    %vm3690 = vcmp.gt.f32.partialorder %v3688, 0.0
    %vm3691 = vcmp.gt.f32.partialorder %v3689, 0.0
    %v3692 = vmul.f32 %v3688, 0.01
    %v3693 = vmul.f32 %v3689, 0.01
    %v3694 = vsel %vm3690, %v3688, %v3692
    %v3695 = vsel %vm3691, %v3689, %v3693
    %v3696 = vld [vmem:[%s20] sm:$0x3]
    %v3698 = vlaneseq
    %v3699 = vshrl.u32 %v3698, 7
    %v3700 = vsub.s32 0, %v3699
    %v3701 = vrot.slane %v3696, %v3700
    %v3702 = vlaneseq
    %v3703 = vshrl.u32 %v3702, 7
    %v3704 = vsub.s32 1, %v3703
    %v3705 = vrot.slane %v3696, %v3704
    %v3708 = vmul.f32 %v3694, %v3701
    %v3709 = vmul.f32 %v3695, %v3705
    %v3710 = vadd.f32 %v3708, %v3709
    %3711 = vadd.xlane.f32.xlu0 %v3710
    %v3712 = vpop.xlane.xlu0 %3711
    %v3713 = vld [vmem:[#allocation2] sm:$0x1]
    %v3715 = vlaneseq
    %v3716 = vshrl.u32 %v3715, 7
    %v3717 = vsub.s32 0, %v3716
    %v3718 = vrot.slane %v3713, %v3717
    %v3720 = vadd.f32 %v3712, %v3718
    %vm3721 = vcmask 7168
    %3722 = vst.msk [vmem:[%s22] sm:$0xff] %vm3721, %v3720
    // Predicated region
    $region138: #{tpu_custom_call.1} parent=1 // pred_check
      _
    $region139: #{tpu_custom_call.1} parent=1 // pred_check_branch
      %3724 = sbr.rel (0) target = $region141
    $region140: #{tpu_custom_call.1} parent=1 // pred_region
      _
    $region141: #{tpu_custom_call.1} parent=1 // pred_fallthru
      _
    // Predicated region
    $region142: #{tpu_custom_call.1} parent=1 // pred_check
      _
    $region143: #{tpu_custom_call.1} parent=1 // pred_check_branch
      %3726 = sbr.rel (0) target = $region145
    $region144: #{tpu_custom_call.1} parent=1 // pred_region
      _
    $region145: #{tpu_custom_call.1} parent=1 // pred_fallthru
      _
    %3727 = vsyncpa [#allocation4], 1
    %3728 = vsyncpa [#allocation6], 1
    %3729 = vsyncpa [#allocation9], 1
    %3730 = vsyncpa [#allocation12], 1
    %3731 = vsyncpa [#allocation15], 1
    %3732 = vsyncpa [#allocation18], 1
    %3733 = vsyncpa [#allocation21], 1

</llo_original>
